<compile_context>
chip_gen: v7x
topology: tpu7x:2x2x1
jax: 0.10.0
libtpu: 0.0.40
codegen_flags: <defaults>
</compile_context>

<pallas_src>
import functools

import jax
import jax.numpy as jnp
from jax import lax
from jax.experimental import pallas as pl
from jax.experimental.pallas import tpu as pltpu

NEG_BIG = -1e30  # Python float literal, never a captured constant


# ---------------------------------------------------------------------------
# Fused forward kernel (single grid point, everything VMEM-resident).
# ---------------------------------------------------------------------------
def _fused_kernel(betas_ref, x_ref, w1_ref, b1_ref, adj_bias_ref,
                  w2_ref, b2_ref, onehot_t_ref, inv_counts_ref,
                  w3a_ref, w3b_ref, b3_ref, o_ref, *, num_graphs):
    # fc1: bf16 operands, f32 accumulate on the MXU; bias + relu.
    h = jnp.maximum(
        jnp.dot(x_ref[...], w1_ref[...], preferred_element_type=jnp.float32)
        + b1_ref[...], 0.0)                                          # (N, 512) f32

    bias = adj_bias_ref[...]                                         # (N, N) additive mask

    def prop(h, beta):
        # F.normalize(p=2, eps=1e-12) == h * rsqrt(max(sum(h^2), 1e-24))
        sumsq = jnp.sum(h * h, axis=-1, keepdims=True)
        xn = (h * lax.rsqrt(jnp.maximum(sumsq, 1e-24))).astype(jnp.bfloat16)
        # cosine similarity (contraction on the feature axis) + edge bias
        s = beta * lax.dot_general(
            xn, xn, (((1,), (1,)), ((), ())),
            preferred_element_type=jnp.float32) + bias               # (N, N) f32
        m = jnp.max(s, axis=-1, keepdims=True)
        p = jnp.exp(s - m)                                           # masked entries -> 0
        alpha = p * pl.reciprocal(
            jnp.sum(p, axis=-1, keepdims=True), approx=True)
        return jnp.dot(alpha.astype(jnp.bfloat16), h.astype(jnp.bfloat16),
                       preferred_element_type=jnp.float32)

    h = prop(h, betas_ref[0])                                        # prop1 (fixed beta)
    h = prop(h, betas_ref[1])                                        # prop2 (learnable beta)

    # fc2 + relu (bf16 in, f32 acc)
    h = jnp.maximum(
        jnp.dot(h.astype(jnp.bfloat16), w2_ref[...],
                preferred_element_type=jnp.float32) + b2_ref[...], 0.0)  # (N, 256)

    oh_t = onehot_t_ref[...]                                         # (N, G)

    # global mean pool: one MXU contraction over the node axis, then * 1/counts
    sums = lax.dot_general(oh_t, h, (((0,), (0,)), ((), ())),
                           preferred_element_type=jnp.float32)       # (G, 256)
    mean = sums * inv_counts_ref[...]

    # global max pool: G tiny -> static unroll
    max_rows = []
    for g in range(num_graphs):
        col = oh_t[:, g:g + 1] > 0.0                                 # (N, 1)
        max_rows.append(jnp.max(jnp.where(col, h, NEG_BIG), axis=0, keepdims=True))
    gmax = jnp.concatenate(max_rows, axis=0)                         # (G, 256)

    # fc3(cat([gmax, mean])) == gmax @ w3[:256] + mean @ w3[256:] + b3
    o_ref[...] = (
        jnp.dot(gmax, w3a_ref[...], preferred_element_type=jnp.float32)
        + jnp.dot(mean, w3b_ref[...], preferred_element_type=jnp.float32)
        + b3_ref[...])


def model_forward(params, x, adj_bias, onehot_t, inv_counts):
    g = onehot_t.shape[1]
    c = params["w3a"].shape[1]

    betas = jnp.concatenate([params["beta1"], params["beta2"]])      # (2,) f32 -> SMEM
    x_bf16 = x.astype(jnp.bfloat16)                                  # pre-cast in wrapper

    vmem = pl.BlockSpec(memory_space=pltpu.MemorySpace.VMEM)
    smem = pl.BlockSpec(memory_space=pltpu.MemorySpace.SMEM)

    return pl.pallas_call(
        functools.partial(_fused_kernel, num_graphs=g),
        out_shape=jax.ShapeDtypeStruct((g, c), jnp.float32),
        in_specs=[
            smem,    # betas
            vmem,    # x (bf16)
            vmem,    # w1 (bf16)
            vmem,    # b1
            vmem,    # adj_bias
            vmem,    # w2 (bf16)
            vmem,    # b2
            vmem,    # onehot_t
            vmem,    # 1/counts
            vmem,    # w3[:256]
            vmem,    # w3[256:]
            vmem,    # b3
        ],
        out_specs=vmem,
    )(betas, x_bf16, params["w1"], params["b1"], adj_bias,
      params["w2"], params["b2"], onehot_t, inv_counts,
      params["w3a"], params["w3b"], params["b3"])


# ---------------------------------------------------------------------------
# Pure-JAX reference (same math / precision as the kernel) for correctness.
# ---------------------------------------------------------------------------
def ref_forward(params, x, adj_bias, onehot_t, inv_counts):
    h = jax.nn.relu(
        jnp.dot(x.astype(jnp.bfloat16), params["w1"],
                preferred_element_type=jnp.float32) + params["b1"])

    def prop(h, beta):
        xn = (h * lax.rsqrt(jnp.maximum(jnp.sum(h * h, -1, keepdims=True),
                                        1e-24))).astype(jnp.bfloat16)
        s = beta * jnp.dot(xn, xn.T, preferred_element_type=jnp.float32) + adj_bias
        a = jax.nn.softmax(s, axis=-1)
        return jnp.dot(a.astype(jnp.bfloat16), h.astype(jnp.bfloat16),
                       preferred_element_type=jnp.float32)

    h = prop(h, params["beta1"][0])
    h = prop(h, params["beta2"][0])
    h = jax.nn.relu(
        jnp.dot(h.astype(jnp.bfloat16), params["w2"],
                preferred_element_type=jnp.float32) + params["b2"])
    mean = (onehot_t.T @ h) * inv_counts
    gmax = jnp.stack(
        [jnp.max(jnp.where(onehot_t[:, g:g + 1] > 0, h, NEG_BIG), axis=0)
         for g in range(onehot_t.shape[1])])
    return gmax @ params["w3a"] + mean @ params["w3b"] + params["b3"]


# ---------------------------------------------------------------------------
# Parameter / input construction (deterministic, in-script)
# ---------------------------------------------------------------------------
def init_params(key, num_features, num_classes):
    def torch_linear(key, fan_in, fan_out):
        k1, k2 = jax.random.split(key)
        bound = 1.0 / jnp.sqrt(fan_in)
        w = jax.random.uniform(k1, (fan_in, fan_out), jnp.float32, -bound, bound)
        b = jax.random.uniform(k2, (1, fan_out), jnp.float32, -bound, bound)
        return w, b

    k1, k2, k3 = jax.random.split(key, 3)
    w1, b1 = torch_linear(k1, num_features, 512)       # fc1
    w2, b2 = torch_linear(k2, 512, 256)                # fc2
    # TODO(synk): original module declares fc3 = Linear(2*512, C) but the forward
    # feeds it cat([gmp, gap]) of a 256-dim tensor (2*256 = 512); we size fc3 to
    # 2*256 so the forward as written actually runs.
    w3, b3 = torch_linear(k3, 2 * 256, num_classes)    # fc3 (split to skip the concat)
    return {
        "w1": w1.astype(jnp.bfloat16), "b1": b1,
        "w2": w2.astype(jnp.bfloat16), "b2": b2,
        "w3a": w3[:256], "w3b": w3[256:], "b3": b3,
        "beta1": jnp.ones((1,), jnp.float32),           # AGNNConv(requires_grad=False)
        "beta2": jnp.ones((1,), jnp.float32),           # AGNNConv(requires_grad=True)
    }


def build_adj_bias(edge_index, num_nodes):
    src, tgt = edge_index[0], edge_index[1]
    adj = jnp.zeros((num_nodes, num_nodes), jnp.float32)
    adj = adj.at[tgt, src].set(1.0)                     # message flows src(j) -> tgt(i)
    idx = jnp.arange(num_nodes)
    adj = adj.at[idx, idx].set(1.0)                     # add_self_loops=True
    return jnp.where(adj > 0, 0.0, NEG_BIG).astype(jnp.float32)   # additive mask


if __name__ == "__main__":
    NUM_NODES = 16
    NUM_FEATURES = 1280
    NUM_CLASSES = 6
    NUM_GRAPHS = 2

    key = jax.random.PRNGKey(0)
    k_x, k_p = jax.random.split(key)

    # node features
    x = jax.random.normal(k_x, (NUM_NODES, NUM_FEATURES), jnp.float32)

    # two graphs of 8 nodes each: chain edges (both directions) + one shortcut
    edges = []
    for g in range(NUM_GRAPHS):
        base = g * 8
        for i in range(7):
            edges.append((base + i, base + i + 1))
            edges.append((base + i + 1, base + i))
        edges.append((base, base + 4))
        edges.append((base + 4, base))
    edge_index = jnp.asarray(edges, dtype=jnp.int32).T            # (2, E)

    batch = jnp.asarray([0] * 8 + [1] * 8, dtype=jnp.int32)       # node -> graph id

    adj_bias = build_adj_bias(edge_index, NUM_NODES)              # (N, N)
    onehot_t = jax.nn.one_hot(batch, NUM_GRAPHS, dtype=jnp.float32)  # (N, G)
    counts = jnp.sum(onehot_t, axis=0)[:, None]                   # (G, 1)
    inv_counts = 1.0 / counts

    params = init_params(k_p, NUM_FEATURES, NUM_CLASSES)

    out = jax.block_until_ready(
        model_forward(params, x, adj_bias, onehot_t, inv_counts))

    ref = ref_forward(params, x, adj_bias, onehot_t, inv_counts)
    assert out.shape == (NUM_GRAPHS, NUM_CLASSES)
    assert jnp.allclose(out, ref, rtol=2e-2, atol=2e-2), (out, ref)

    print("KERNEL_OK")
</pallas_src>

<mosaic_0001>
module attributes {stable_mosaic.version = 11 : i64} {
  func.func @_fused_kernel(%arg0: memref<2xf32, #tpu.memory_space<smem>>, %arg1: memref<16x1280xbf16, #tpu.memory_space<vmem>>, %arg2: memref<1280x512xbf16, #tpu.memory_space<vmem>>, %arg3: memref<1x512xf32, #tpu.memory_space<vmem>>, %arg4: memref<16x16xf32, #tpu.memory_space<vmem>>, %arg5: memref<512x256xbf16, #tpu.memory_space<vmem>>, %arg6: memref<1x256xf32, #tpu.memory_space<vmem>>, %arg7: memref<16x2xf32, #tpu.memory_space<vmem>>, %arg8: memref<2x1xf32, #tpu.memory_space<vmem>>, %arg9: memref<256x6xf32, #tpu.memory_space<vmem>>, %arg10: memref<256x6xf32, #tpu.memory_space<vmem>>, %arg11: memref<1x6xf32, #tpu.memory_space<vmem>>, %arg12: memref<2x6xf32, #tpu.memory_space<vmem>>) attributes {dimension_semantics = [], scalar_prefetch = 0 : i64, scratch_operands = 0 : i64, tpu.core_type = #tpu.core_type<tc>} {
    %c0 = arith.constant 0 : index
    %c0_0 = arith.constant 0 : index
    %0 = vector.load %arg1[%c0, %c0_0] : memref<16x1280xbf16, #tpu.memory_space<vmem>>, vector<16x1280xbf16>
    %c0_1 = arith.constant 0 : index
    %c0_2 = arith.constant 0 : index
    %1 = vector.load %arg2[%c0_1, %c0_2] : memref<1280x512xbf16, #tpu.memory_space<vmem>>, vector<1280x512xbf16>
    %cst = arith.constant dense<0.000000e+00> : vector<16x512xf32>
    %2 = tpu.matmul %0, %1, %cst {dimension_numbers = #tpu.dot_dimension_numbers<[1], [0], [0], [1], [0, 0, 1, 1], [], []>} : vector<16x1280xbf16>, vector<1280x512xbf16>, vector<16x512xf32> -> vector<16x512xf32>
    %c0_3 = arith.constant 0 : index
    %c0_4 = arith.constant 0 : index
    %3 = vector.load %arg3[%c0_3, %c0_4] : memref<1x512xf32, #tpu.memory_space<vmem>>, vector<1x512xf32>
    %4 = vector.broadcast %3 : vector<1x512xf32> to vector<16x512xf32>
    %5 = arith.addf %2, %4 : vector<16x512xf32>
    %cst_5 = arith.constant 0.000000e+00 : f32
    %6 = vector.broadcast %cst_5 : f32 to vector<16x512xf32>
    %7 = arith.maximumf %5, %6 : vector<16x512xf32>
    %c0_6 = arith.constant 0 : index
    %c0_7 = arith.constant 0 : index
    %8 = vector.load %arg4[%c0_6, %c0_7] : memref<16x16xf32, #tpu.memory_space<vmem>>, vector<16x16xf32>
    %c0_8 = arith.constant 0 : index
    %9 = memref.load %arg0[%c0_8] : memref<2xf32, #tpu.memory_space<smem>>
    %10 = arith.mulf %7, %7 : vector<16x512xf32>
    %cst_9 = arith.constant dense<0.000000e+00> : vector<16xf32>
    %11 = vector.multi_reduction <add>, %10, %cst_9 [1] : vector<16x512xf32> to vector<16xf32>
    %12 = vector.shape_cast %11 : vector<16xf32> to vector<16x1xf32>
    %cst_10 = arith.constant 1.000000e-24 : f32
    %13 = vector.broadcast %cst_10 : f32 to vector<16x1xf32>
    %14 = arith.maximumf %12, %13 : vector<16x1xf32>
    %15 = math.rsqrt %14 : vector<16x1xf32>
    %16 = vector.broadcast %15 : vector<16x1xf32> to vector<16x512xf32>
    %17 = arith.mulf %7, %16 : vector<16x512xf32>
    %18 = arith.truncf %17 : vector<16x512xf32> to vector<16x512xbf16>
    %cst_11 = arith.constant dense<0.000000e+00> : vector<16x16xf32>
    %19 = tpu.matmul %18, %18, %cst_11 {dimension_numbers = #tpu.dot_dimension_numbers<[1], [1], [0], [0], [0, 0, 1, 0], [], []>} : vector<16x512xbf16>, vector<16x512xbf16>, vector<16x16xf32> -> vector<16x16xf32>
    %20 = vector.broadcast %9 : f32 to vector<16x16xf32>
    %21 = arith.mulf %20, %19 : vector<16x16xf32>
    %22 = arith.addf %21, %8 : vector<16x16xf32>
    %cst_12 = arith.constant dense<0xFF800000> : vector<16xf32>
    %23 = vector.multi_reduction <maximumf>, %22, %cst_12 [1] : vector<16x16xf32> to vector<16xf32>
    %24 = vector.shape_cast %23 : vector<16xf32> to vector<16x1xf32>
    %25 = vector.broadcast %24 : vector<16x1xf32> to vector<16x16xf32>
    %26 = arith.subf %22, %25 : vector<16x16xf32>
    %27 = math.exp %26 : vector<16x16xf32>
    %cst_13 = arith.constant dense<0.000000e+00> : vector<16xf32>
    %28 = vector.multi_reduction <add>, %27, %cst_13 [1] : vector<16x16xf32> to vector<16xf32>
    %29 = vector.shape_cast %28 : vector<16xf32> to vector<16x1xf32>
    %30 = tpu.reciprocal %29 {approx = true} : vector<16x1xf32> -> vector<16x1xf32>
    %31 = vector.broadcast %30 : vector<16x1xf32> to vector<16x16xf32>
    %32 = arith.mulf %27, %31 : vector<16x16xf32>
    %33 = arith.truncf %32 : vector<16x16xf32> to vector<16x16xbf16>
    %34 = arith.truncf %7 : vector<16x512xf32> to vector<16x512xbf16>
    %cst_14 = arith.constant dense<0.000000e+00> : vector<16x512xf32>
    %35 = tpu.matmul %33, %34, %cst_14 {dimension_numbers = #tpu.dot_dimension_numbers<[1], [0], [0], [1], [0, 0, 1, 1], [], []>} : vector<16x16xbf16>, vector<16x512xbf16>, vector<16x512xf32> -> vector<16x512xf32>
    %c1 = arith.constant 1 : index
    %36 = memref.load %arg0[%c1] : memref<2xf32, #tpu.memory_space<smem>>
    %37 = arith.mulf %35, %35 : vector<16x512xf32>
    %cst_15 = arith.constant dense<0.000000e+00> : vector<16xf32>
    %38 = vector.multi_reduction <add>, %37, %cst_15 [1] : vector<16x512xf32> to vector<16xf32>
    %39 = vector.shape_cast %38 : vector<16xf32> to vector<16x1xf32>
    %cst_16 = arith.constant 1.000000e-24 : f32
    %40 = vector.broadcast %cst_16 : f32 to vector<16x1xf32>
    %41 = arith.maximumf %39, %40 : vector<16x1xf32>
    %42 = math.rsqrt %41 : vector<16x1xf32>
    %43 = vector.broadcast %42 : vector<16x1xf32> to vector<16x512xf32>
    %44 = arith.mulf %35, %43 : vector<16x512xf32>
    %45 = arith.truncf %44 : vector<16x512xf32> to vector<16x512xbf16>
    %cst_17 = arith.constant dense<0.000000e+00> : vector<16x16xf32>
    %46 = tpu.matmul %45, %45, %cst_17 {dimension_numbers = #tpu.dot_dimension_numbers<[1], [1], [0], [0], [0, 0, 1, 0], [], []>} : vector<16x512xbf16>, vector<16x512xbf16>, vector<16x16xf32> -> vector<16x16xf32>
    %47 = vector.broadcast %36 : f32 to vector<16x16xf32>
    %48 = arith.mulf %47, %46 : vector<16x16xf32>
    %49 = arith.addf %48, %8 : vector<16x16xf32>
    %cst_18 = arith.constant dense<0xFF800000> : vector<16xf32>
    %50 = vector.multi_reduction <maximumf>, %49, %cst_18 [1] : vector<16x16xf32> to vector<16xf32>
    %51 = vector.shape_cast %50 : vector<16xf32> to vector<16x1xf32>
    %52 = vector.broadcast %51 : vector<16x1xf32> to vector<16x16xf32>
    %53 = arith.subf %49, %52 : vector<16x16xf32>
    %54 = math.exp %53 : vector<16x16xf32>
    %cst_19 = arith.constant dense<0.000000e+00> : vector<16xf32>
    %55 = vector.multi_reduction <add>, %54, %cst_19 [1] : vector<16x16xf32> to vector<16xf32>
    %56 = vector.shape_cast %55 : vector<16xf32> to vector<16x1xf32>
    %57 = tpu.reciprocal %56 {approx = true} : vector<16x1xf32> -> vector<16x1xf32>
    %58 = vector.broadcast %57 : vector<16x1xf32> to vector<16x16xf32>
    %59 = arith.mulf %54, %58 : vector<16x16xf32>
    %60 = arith.truncf %59 : vector<16x16xf32> to vector<16x16xbf16>
    %61 = arith.truncf %35 : vector<16x512xf32> to vector<16x512xbf16>
    %cst_20 = arith.constant dense<0.000000e+00> : vector<16x512xf32>
    %62 = tpu.matmul %60, %61, %cst_20 {dimension_numbers = #tpu.dot_dimension_numbers<[1], [0], [0], [1], [0, 0, 1, 1], [], []>} : vector<16x16xbf16>, vector<16x512xbf16>, vector<16x512xf32> -> vector<16x512xf32>
    %63 = arith.truncf %62 : vector<16x512xf32> to vector<16x512xbf16>
    %c0_21 = arith.constant 0 : index
    %c0_22 = arith.constant 0 : index
    %64 = vector.load %arg5[%c0_21, %c0_22] : memref<512x256xbf16, #tpu.memory_space<vmem>>, vector<512x256xbf16>
    %cst_23 = arith.constant dense<0.000000e+00> : vector<16x256xf32>
    %65 = tpu.matmul %63, %64, %cst_23 {dimension_numbers = #tpu.dot_dimension_numbers<[1], [0], [0], [1], [0, 0, 1, 1], [], []>} : vector<16x512xbf16>, vector<512x256xbf16>, vector<16x256xf32> -> vector<16x256xf32>
    %c0_24 = arith.constant 0 : index
    %c0_25 = arith.constant 0 : index
    %66 = vector.load %arg6[%c0_24, %c0_25] : memref<1x256xf32, #tpu.memory_space<vmem>>, vector<1x256xf32>
    %67 = vector.broadcast %66 : vector<1x256xf32> to vector<16x256xf32>
    %68 = arith.addf %65, %67 : vector<16x256xf32>
    %cst_26 = arith.constant 0.000000e+00 : f32
    %69 = vector.broadcast %cst_26 : f32 to vector<16x256xf32>
    %70 = arith.maximumf %68, %69 : vector<16x256xf32>
    %c0_27 = arith.constant 0 : index
    %c0_28 = arith.constant 0 : index
    %71 = vector.load %arg7[%c0_27, %c0_28] : memref<16x2xf32, #tpu.memory_space<vmem>>, vector<16x2xf32>
    %cst_29 = arith.constant dense<0.000000e+00> : vector<2x256xf32>
    %72 = tpu.matmul %71, %70, %cst_29 {dimension_numbers = #tpu.dot_dimension_numbers<[0], [0], [1], [1], [0, 1, 1, 1], [], []>} : vector<16x2xf32>, vector<16x256xf32>, vector<2x256xf32> -> vector<2x256xf32>
    %c0_30 = arith.constant 0 : index
    %c0_31 = arith.constant 0 : index
    %73 = vector.load %arg8[%c0_30, %c0_31] : memref<2x1xf32, #tpu.memory_space<vmem>>, vector<2x1xf32>
    %74 = vector.broadcast %73 : vector<2x1xf32> to vector<2x256xf32>
    %75 = arith.mulf %72, %74 : vector<2x256xf32>
    %76 = vector.extract_strided_slice %71 {offsets = [0, 0], sizes = [16, 1], strides = [1, 1]} : vector<16x2xf32> to vector<16x1xf32>
    %cst_32 = arith.constant 0.000000e+00 : f32
    %77 = vector.broadcast %cst_32 : f32 to vector<16x1xf32>
    %78 = arith.cmpf ogt, %76, %77 : vector<16x1xf32>
    %cst_33 = arith.constant -1.000000e+30 : f32
    %79 = vector.shape_cast %78 : vector<16x1xi1> to vector<16x1xi1>
    %80 = vector.broadcast %79 : vector<16x1xi1> to vector<16x256xi1>
    %81 = vector.broadcast %cst_33 : f32 to vector<16x256xf32>
    %82 = arith.select %80, %70, %81 : vector<16x256xi1>, vector<16x256xf32>
    %cst_34 = arith.constant dense<0xFF800000> : vector<256xf32>
    %83 = vector.multi_reduction <maximumf>, %82, %cst_34 [0] : vector<16x256xf32> to vector<256xf32>
    %84 = vector.shape_cast %83 : vector<256xf32> to vector<1x256xf32>
    %85 = vector.extract_strided_slice %71 {offsets = [0, 1], sizes = [16, 1], strides = [1, 1]} : vector<16x2xf32> to vector<16x1xf32>
    %cst_35 = arith.constant 0.000000e+00 : f32
    %86 = vector.broadcast %cst_35 : f32 to vector<16x1xf32>
    %87 = arith.cmpf ogt, %85, %86 : vector<16x1xf32>
    %cst_36 = arith.constant -1.000000e+30 : f32
    %88 = vector.shape_cast %87 : vector<16x1xi1> to vector<16x1xi1>
    %89 = vector.broadcast %88 : vector<16x1xi1> to vector<16x256xi1>
    %90 = vector.broadcast %cst_36 : f32 to vector<16x256xf32>
    %91 = arith.select %89, %70, %90 : vector<16x256xi1>, vector<16x256xf32>
    %cst_37 = arith.constant dense<0xFF800000> : vector<256xf32>
    %92 = vector.multi_reduction <maximumf>, %91, %cst_37 [0] : vector<16x256xf32> to vector<256xf32>
    %93 = vector.shape_cast %92 : vector<256xf32> to vector<1x256xf32>
    %94 = tpu.concatenate %84, %93 in 0 : vector<1x256xf32>, vector<1x256xf32> -> vector<2x256xf32>
    %c0_38 = arith.constant 0 : index
    %c0_39 = arith.constant 0 : index
    %95 = vector.load %arg9[%c0_38, %c0_39] : memref<256x6xf32, #tpu.memory_space<vmem>>, vector<256x6xf32>
    %cst_40 = arith.constant dense<0.000000e+00> : vector<2x6xf32>
    %96 = tpu.matmul %94, %95, %cst_40 {dimension_numbers = #tpu.dot_dimension_numbers<[1], [0], [0], [1], [0, 0, 1, 1], [], []>} : vector<2x256xf32>, vector<256x6xf32>, vector<2x6xf32> -> vector<2x6xf32>
    %c0_41 = arith.constant 0 : index
    %c0_42 = arith.constant 0 : index
    %97 = vector.load %arg10[%c0_41, %c0_42] : memref<256x6xf32, #tpu.memory_space<vmem>>, vector<256x6xf32>
    %cst_43 = arith.constant dense<0.000000e+00> : vector<2x6xf32>
    %98 = tpu.matmul %75, %97, %cst_43 {dimension_numbers = #tpu.dot_dimension_numbers<[1], [0], [0], [1], [0, 0, 1, 1], [], []>} : vector<2x256xf32>, vector<256x6xf32>, vector<2x6xf32> -> vector<2x6xf32>
    %99 = arith.addf %96, %98 : vector<2x6xf32>
    %c0_44 = arith.constant 0 : index
    %c0_45 = arith.constant 0 : index
    %100 = vector.load %arg11[%c0_44, %c0_45] : memref<1x6xf32, #tpu.memory_space<vmem>>, vector<1x6xf32>
    %101 = vector.broadcast %100 : vector<1x6xf32> to vector<2x6xf32>
    %102 = arith.addf %99, %101 : vector<2x6xf32>
    %c0_46 = arith.constant 0 : index
    %c0_47 = arith.constant 0 : index
    %103 = vector.load %arg12[%c0_46, %c0_47] : memref<2x6xf32, #tpu.memory_space<vmem>>, vector<2x6xf32>
    tpu.vector_store %arg12[%c0_46, %c0_47], %102 {strides = array<i32>} : memref<2x6xf32, #tpu.memory_space<vmem>>, vector<2x6xf32>,
    return
  }
}

</mosaic_0001>

<llo_original>
// kernel: tpu_custom_call.1
$region0: #{tpu_custom_call.1}
  #allocation0 [shape = 'u32[]', space=smem, size = 0x4, offset = 0x4, fixed_abs, tag = 'smem constant byte address 0x4 - core index']
  #allocation1 [shape = 'u32[144,128]{1,0:T(1,128)}', space=vmem, size = 0x12000, scoped, tag = 'internal scratch']
  %s0 = inlined_call_operand.hbm [shape: f32[2], index: 0, kind: input, shape index: {}]
  %s1 = inlined_call_operand.hbm [shape: bf16[16,1280], index: 1, kind: input, shape index: {}]
  %s2 = inlined_call_operand.hbm [shape: bf16[1280,512], index: 2, kind: input, shape index: {}]
  %s3 = inlined_call_operand.hbm [shape: f32[1,512], index: 3, kind: input, shape index: {}]
  %s4 = inlined_call_operand.hbm [shape: f32[16,16], index: 4, kind: input, shape index: {}]
  %s5 = inlined_call_operand.hbm [shape: bf16[512,256], index: 5, kind: input, shape index: {}]
  %s6 = inlined_call_operand.hbm [shape: f32[1,256], index: 6, kind: input, shape index: {}]
  %s7 = inlined_call_operand.vmem [shape: f32[16,2], index: 7, kind: input, shape index: {}]
  %s8 = inlined_call_operand.vmem [shape: f32[2,1], index: 8, kind: input, shape index: {}]
  %s9 = inlined_call_operand.vmem [shape: f32[256,6], index: 9, kind: input, shape index: {}]
  %s10 = inlined_call_operand.vmem [shape: f32[256,6], index: 10, kind: input, shape index: {}]
  %s11 = inlined_call_operand.hbm [shape: f32[1,6], index: 11, kind: input, shape index: {}]
  %s12 = inlined_call_operand.hbm [shape: f32[2,6], index: 12, kind: output, shape index: {}]
  %s13 = sld [smem:[#allocation0]]
  $region90: #{tpu_custom_call.1} parent=0
    _
  %s15 = ssub.s32 1, %s13
  %s16 = scalar_select 0, %s15, %s13
  $region1: #{tpu_custom_call.1} parent=0
    #allocation2 [shape = 'u8[512]{0}', space=smem, size = 0x200, scoped, tag = 'input window, operand 0, single buffered']
    #allocation3 [shape = 's32[1]{0}', space=sflag, size = 0x4, scoped, tag = 'scoped memory for tpu_custom_call.1']
    #allocation4 [shape = 's32[1]{0}', space=sflag, size = 0x4, scoped, tag = 'scoped memory for tpu_custom_call.1']
    #allocation5 [shape = 's32[1]{0}', space=sflag, size = 0x4, scoped, tag = 'scoped memory for tpu_custom_call.1']
    #allocation6 [shape = 'u8[40960]{0}', space=vmem, size = 0xa000, scoped, tag = 'input window, operand 1, single buffered']
    #allocation7 [shape = 'u8[1310720]{0}', space=vmem, size = 0x140000, scoped, tag = 'input window, operand 2, single buffered']
    #allocation8 [shape = 's32[1]{0}', space=sflag, size = 0x4, scoped, tag = 'scoped memory for tpu_custom_call.1']
    #allocation9 [shape = 'u8[2048]{0}', space=vmem, size = 0x800, scoped, tag = 'input window, operand 3, single buffered']
    #allocation10 [shape = 'u8[8192]{0}', space=vmem, size = 0x2000, scoped, tag = 'input window, operand 4, single buffered']
    #allocation11 [shape = 's32[1]{0}', space=sflag, size = 0x4, scoped, tag = 'scoped memory for tpu_custom_call.1']
    #allocation12 [shape = 'u8[262144]{0}', space=vmem, size = 0x40000, scoped, tag = 'input window, operand 5, single buffered']
    #allocation13 [shape = 'u8[1024]{0}', space=vmem, size = 0x400, scoped, tag = 'input window, operand 6, single buffered']
    #allocation14 [shape = 's32[1]{0}', space=sflag, size = 0x4, scoped, tag = 'scoped memory for tpu_custom_call.1']
    #allocation15 [shape = 'u8[512]{0}', space=vmem, size = 0x400, scoped, tag = 'input window, operand 11, single buffered']
    #allocation16 [shape = 'u8[1024]{0}', space=vmem, size = 0x400, scoped, tag = 'output window, operand 0, single buffered']
    %17 = vsyncpa [#allocation5], 0
    %18 = vsyncpa [#allocation3], 0
    %19 = vsyncpa [#allocation8], 0
    %20 = vsyncpa [#allocation11], 0
    %21 = vsyncpa [#allocation14], 0
    %22 = vsyncpa [#allocation4], 0
    // Predicated region
    $region2: #{tpu_custom_call.1} parent=1 // pred_check
      _
    $region3: #{tpu_custom_call.1} parent=1 // pred_check_branch
      %24 = sbr.rel (0) target = $region5
    $region4: #{tpu_custom_call.1} parent=1 // pred_region
      %s26 = ssub.s32 16, 16
      %27 = vsyncadd [#allocation5], %s26
      %30 = dma.hbm_to_smem %s0, 16, [#allocation2], [#allocation5]
    $region5: #{tpu_custom_call.1} parent=1 // pred_fallthru
      _
    // Predicated region
    $region6: #{tpu_custom_call.1} parent=1 // pred_check
      _
    $region7: #{tpu_custom_call.1} parent=1 // pred_check_branch
      %32 = sbr.rel (0) target = $region9
    $region8: #{tpu_custom_call.1} parent=1 // pred_region
      %s34 = ssub.s32 1280, 1280
      %35 = vsyncadd [#allocation3], %s34
      %s36 = sshll.u32 [#allocation6], 4
      %s37 = int_to_ptr.vmem [resolvable:$true] %s36
      %42 = dma.hbm_to_vmem [thread:$0]  %s1, 1280, %s37, [#allocation3], 640, 640, 40
    $region9: #{tpu_custom_call.1} parent=1 // pred_fallthru
      _
    // Predicated region
    $region10: #{tpu_custom_call.1} parent=1 // pred_check
      _
    $region11: #{tpu_custom_call.1} parent=1 // pred_check_branch
      %44 = sbr.rel (0) target = $region13
    $region12: #{tpu_custom_call.1} parent=1 // pred_region
      %s46 = ssub.s32 40960, 40960
      %47 = vsyncadd [#allocation8], %s46
      %s48 = sshll.u32 [#allocation7], 4
      %s49 = int_to_ptr.vmem [resolvable:$true] %s48
      %54 = dma.hbm_to_vmem [thread:$0]  %s2, 40960, %s49, [#allocation8], 256, 256, 16
    $region13: #{tpu_custom_call.1} parent=1 // pred_fallthru
      _
    // Predicated region
    $region14: #{tpu_custom_call.1} parent=1 // pred_check
      _
    $region15: #{tpu_custom_call.1} parent=1 // pred_check_branch
      %56 = sbr.rel (0) target = $region17
    $region16: #{tpu_custom_call.1} parent=1 // pred_region
      %s58 = ssub.s32 64, 64
      %59 = vsyncadd [#allocation8], %s58
      %s61 = sshll.u32 [#allocation9], 4
      %s62 = int_to_ptr.vmem [resolvable:$true] %s61
      %64 = dma.hbm_to_vmem [thread:$0]  %s3, 64, %s62, [#allocation8]
    $region17: #{tpu_custom_call.1} parent=1 // pred_fallthru
      _
    // Predicated region
    $region18: #{tpu_custom_call.1} parent=1 // pred_check
      _
    $region19: #{tpu_custom_call.1} parent=1 // pred_check_branch
      %66 = sbr.rel (0) target = $region21
    $region20: #{tpu_custom_call.1} parent=1 // pred_region
      %s68 = ssub.s32 256, 256
      %69 = vsyncadd [#allocation11], %s68
      %s70 = sshll.u32 [#allocation10], 4
      %s71 = int_to_ptr.vmem [resolvable:$true] %s70
      %76 = dma.hbm_to_vmem [thread:$0]  %s4, 256, %s71, [#allocation11], 128, 128, 8
    $region21: #{tpu_custom_call.1} parent=1 // pred_fallthru
      _
    // Predicated region
    $region22: #{tpu_custom_call.1} parent=1 // pred_check
      _
    $region23: #{tpu_custom_call.1} parent=1 // pred_check_branch
      %78 = sbr.rel (0) target = $region25
    $region24: #{tpu_custom_call.1} parent=1 // pred_region
      %s80 = ssub.s32 8192, 8192
      %81 = vsyncadd [#allocation11], %s80
      %s82 = sshll.u32 [#allocation12], 4
      %s83 = int_to_ptr.vmem [resolvable:$true] %s82
      %88 = dma.hbm_to_vmem [thread:$0]  %s5, 8192, %s83, [#allocation11], 128, 128, 8
    $region25: #{tpu_custom_call.1} parent=1 // pred_fallthru
      _
    // Predicated region
    $region26: #{tpu_custom_call.1} parent=1 // pred_check
      _
    $region27: #{tpu_custom_call.1} parent=1 // pred_check_branch
      %90 = sbr.rel (0) target = $region29
    $region28: #{tpu_custom_call.1} parent=1 // pred_region
      %s92 = ssub.s32 32, 32
      %93 = vsyncadd [#allocation14], %s92
      %s95 = sshll.u32 [#allocation13], 4
      %s96 = int_to_ptr.vmem [resolvable:$true] %s95
      %98 = dma.hbm_to_vmem [thread:$0]  %s6, 32, %s96, [#allocation14]
    $region29: #{tpu_custom_call.1} parent=1 // pred_fallthru
      _
    // Predicated region
    $region30: #{tpu_custom_call.1} parent=1 // pred_check
      _
    $region31: #{tpu_custom_call.1} parent=1 // pred_check_branch
      %100 = sbr.rel (0) target = $region33
    $region32: #{tpu_custom_call.1} parent=1 // pred_region
      _
    $region33: #{tpu_custom_call.1} parent=1 // pred_fallthru
      _
    // Predicated region
    $region34: #{tpu_custom_call.1} parent=1 // pred_check
      _
    $region35: #{tpu_custom_call.1} parent=1 // pred_check_branch
      %102 = sbr.rel (0) target = $region37
    $region36: #{tpu_custom_call.1} parent=1 // pred_region
      _
    $region37: #{tpu_custom_call.1} parent=1 // pred_fallthru
      _
    // Predicated region
    $region38: #{tpu_custom_call.1} parent=1 // pred_check
      _
    $region39: #{tpu_custom_call.1} parent=1 // pred_check_branch
      %104 = sbr.rel (0) target = $region41
    $region40: #{tpu_custom_call.1} parent=1 // pred_region
      _
    $region41: #{tpu_custom_call.1} parent=1 // pred_fallthru
      _
    // Predicated region
    $region42: #{tpu_custom_call.1} parent=1 // pred_check
      _
    $region43: #{tpu_custom_call.1} parent=1 // pred_check_branch
      %106 = sbr.rel (0) target = $region45
    $region44: #{tpu_custom_call.1} parent=1 // pred_region
      _
    $region45: #{tpu_custom_call.1} parent=1 // pred_fallthru
      _
    // Predicated region
    $region46: #{tpu_custom_call.1} parent=1 // pred_check
      _
    $region47: #{tpu_custom_call.1} parent=1 // pred_check_branch
      %108 = sbr.rel (0) target = $region49
    $region48: #{tpu_custom_call.1} parent=1 // pred_region
      %s110 = ssub.s32 16, 16
      %111 = vsyncadd [#allocation14], %s110
      %s113 = sshll.u32 [#allocation15], 4
      %s114 = int_to_ptr.vmem [resolvable:$true] %s113
      %116 = dma.hbm_to_vmem [thread:$0]  %s11, 16, %s114, [#allocation14]
    $region49: #{tpu_custom_call.1} parent=1 // pred_fallthru
      _
    // Predicated region
    $region50: #{tpu_custom_call.1} parent=1 // pred_check
      _
    $region51: #{tpu_custom_call.1} parent=1 // pred_check_branch
      %118 = sbr.rel (0) target = $region53
    $region52: #{tpu_custom_call.1} parent=1 // pred_region
      %119 = dma.done [#allocation5], 16
    $region53: #{tpu_custom_call.1} parent=1 // pred_fallthru
      _
    // Predicated region
    $region54: #{tpu_custom_call.1} parent=1 // pred_check
      _
    $region55: #{tpu_custom_call.1} parent=1 // pred_check_branch
      %121 = sbr.rel (0) target = $region57
    $region56: #{tpu_custom_call.1} parent=1 // pred_region
      %122 = dma.done [#allocation3], 1280
    $region57: #{tpu_custom_call.1} parent=1 // pred_fallthru
      _
    // Predicated region
    $region58: #{tpu_custom_call.1} parent=1 // pred_check
      _
    $region59: #{tpu_custom_call.1} parent=1 // pred_check_branch
      %124 = sbr.rel (0) target = $region61
    $region60: #{tpu_custom_call.1} parent=1 // pred_region
      %125 = dma.done [#allocation8], 40960
    $region61: #{tpu_custom_call.1} parent=1 // pred_fallthru
      _
    // Predicated region
    $region62: #{tpu_custom_call.1} parent=1 // pred_check
      _
    $region63: #{tpu_custom_call.1} parent=1 // pred_check_branch
      %127 = sbr.rel (0) target = $region65
    $region64: #{tpu_custom_call.1} parent=1 // pred_region
      %128 = dma.done [#allocation8], 64
    $region65: #{tpu_custom_call.1} parent=1 // pred_fallthru
      _
    // Predicated region
    $region66: #{tpu_custom_call.1} parent=1 // pred_check
      _
    $region67: #{tpu_custom_call.1} parent=1 // pred_check_branch
      %130 = sbr.rel (0) target = $region69
    $region68: #{tpu_custom_call.1} parent=1 // pred_region
      %131 = dma.done [#allocation11], 256
    $region69: #{tpu_custom_call.1} parent=1 // pred_fallthru
      _
    // Predicated region
    $region70: #{tpu_custom_call.1} parent=1 // pred_check
      _
    $region71: #{tpu_custom_call.1} parent=1 // pred_check_branch
      %133 = sbr.rel (0) target = $region73
    $region72: #{tpu_custom_call.1} parent=1 // pred_region
      %134 = dma.done [#allocation11], 8192
    $region73: #{tpu_custom_call.1} parent=1 // pred_fallthru
      _
    // Predicated region
    $region74: #{tpu_custom_call.1} parent=1 // pred_check
      _
    $region75: #{tpu_custom_call.1} parent=1 // pred_check_branch
      %136 = sbr.rel (0) target = $region77
    $region76: #{tpu_custom_call.1} parent=1 // pred_region
      %137 = dma.done [#allocation14], 32
    $region77: #{tpu_custom_call.1} parent=1 // pred_fallthru
      _
    // Predicated region
    $region78: #{tpu_custom_call.1} parent=1 // pred_check
      _
    $region79: #{tpu_custom_call.1} parent=1 // pred_check_branch
      %139 = sbr.rel (0) target = $region81
    $region80: #{tpu_custom_call.1} parent=1 // pred_region
      %140 = dma.done [#allocation14], 16
    $region81: #{tpu_custom_call.1} parent=1 // pred_fallthru
      _
    %141 = sfence
    %v143 = vld [vmem:[#allocation6] sm:$0xff]
    %v144 = vld [vmem:[#allocation6 + $0x8] sm:$0xff]
    %v145 = vld [vmem:[#allocation6 + $0x10] sm:$0xff]
    %v146 = vld [vmem:[#allocation6 + $0x18] sm:$0xff]
    %v147 = vld [vmem:[#allocation6 + $0x20] sm:$0xff]
    %v148 = vld [vmem:[#allocation6 + $0x28] sm:$0xff]
    %v149 = vld [vmem:[#allocation6 + $0x30] sm:$0xff]
    %v150 = vld [vmem:[#allocation6 + $0x38] sm:$0xff]
    %v151 = vld [vmem:[#allocation6 + $0x40] sm:$0xff]
    %v152 = vld [vmem:[#allocation6 + $0x48] sm:$0xff]
    %v153 = vld [vmem:[#allocation7] sm:$0xff]
    %v154 = vld [vmem:[#allocation7 + $0x8] sm:$0xff]
    %v155 = vld [vmem:[#allocation7 + $0x10] sm:$0xff]
    %v156 = vld [vmem:[#allocation7 + $0x18] sm:$0xff]
    %v157 = vld [vmem:[#allocation7 + $0x20] sm:$0xff]
    %v158 = vld [vmem:[#allocation7 + $0x28] sm:$0xff]
    %v159 = vld [vmem:[#allocation7 + $0x30] sm:$0xff]
    %v160 = vld [vmem:[#allocation7 + $0x38] sm:$0xff]
    %v161 = vld [vmem:[#allocation7 + $0x40] sm:$0xff]
    %v162 = vld [vmem:[#allocation7 + $0x48] sm:$0xff]
    %v163 = vld [vmem:[#allocation7 + $0x50] sm:$0xff]
    %v164 = vld [vmem:[#allocation7 + $0x58] sm:$0xff]
    %v165 = vld [vmem:[#allocation7 + $0x60] sm:$0xff]
    %v166 = vld [vmem:[#allocation7 + $0x68] sm:$0xff]
    %v167 = vld [vmem:[#allocation7 + $0x70] sm:$0xff]
    %v168 = vld [vmem:[#allocation7 + $0x78] sm:$0xff]
    %v169 = vld [vmem:[#allocation7 + $0x80] sm:$0xff]
    %v170 = vld [vmem:[#allocation7 + $0x88] sm:$0xff]
    %v171 = vld [vmem:[#allocation7 + $0x90] sm:$0xff]
    %v172 = vld [vmem:[#allocation7 + $0x98] sm:$0xff]
    %v173 = vld [vmem:[#allocation7 + $0xa0] sm:$0xff]
    %v174 = vld [vmem:[#allocation7 + $0xa8] sm:$0xff]
    %v175 = vld [vmem:[#allocation7 + $0xb0] sm:$0xff]
    %v176 = vld [vmem:[#allocation7 + $0xb8] sm:$0xff]
    %v177 = vld [vmem:[#allocation7 + $0xc0] sm:$0xff]
    %v178 = vld [vmem:[#allocation7 + $0xc8] sm:$0xff]
    %v179 = vld [vmem:[#allocation7 + $0xd0] sm:$0xff]
    %v180 = vld [vmem:[#allocation7 + $0xd8] sm:$0xff]
    %v181 = vld [vmem:[#allocation7 + $0xe0] sm:$0xff]
    %v182 = vld [vmem:[#allocation7 + $0xe8] sm:$0xff]
    %v183 = vld [vmem:[#allocation7 + $0xf0] sm:$0xff]
    %v184 = vld [vmem:[#allocation7 + $0xf8] sm:$0xff]
    %v185 = vld [vmem:[#allocation7 + $0x100] sm:$0xff]
    %v186 = vld [vmem:[#allocation7 + $0x108] sm:$0xff]
    %v187 = vld [vmem:[#allocation7 + $0x110] sm:$0xff]
    %v188 = vld [vmem:[#allocation7 + $0x118] sm:$0xff]
    %v189 = vld [vmem:[#allocation7 + $0x120] sm:$0xff]
    %v190 = vld [vmem:[#allocation7 + $0x128] sm:$0xff]
    %v191 = vld [vmem:[#allocation7 + $0x130] sm:$0xff]
    %v192 = vld [vmem:[#allocation7 + $0x138] sm:$0xff]
    %v193 = vld [vmem:[#allocation7 + $0x140] sm:$0xff]
    %v194 = vld [vmem:[#allocation7 + $0x148] sm:$0xff]
    %v195 = vld [vmem:[#allocation7 + $0x150] sm:$0xff]
    %v196 = vld [vmem:[#allocation7 + $0x158] sm:$0xff]
    %v197 = vld [vmem:[#allocation7 + $0x160] sm:$0xff]
    %v198 = vld [vmem:[#allocation7 + $0x168] sm:$0xff]
    %v199 = vld [vmem:[#allocation7 + $0x170] sm:$0xff]
    %v200 = vld [vmem:[#allocation7 + $0x178] sm:$0xff]
    %v201 = vld [vmem:[#allocation7 + $0x180] sm:$0xff]
    %v202 = vld [vmem:[#allocation7 + $0x188] sm:$0xff]
    %v203 = vld [vmem:[#allocation7 + $0x190] sm:$0xff]
    %v204 = vld [vmem:[#allocation7 + $0x198] sm:$0xff]
    %v205 = vld [vmem:[#allocation7 + $0x1a0] sm:$0xff]
    %v206 = vld [vmem:[#allocation7 + $0x1a8] sm:$0xff]
    %v207 = vld [vmem:[#allocation7 + $0x1b0] sm:$0xff]
    %v208 = vld [vmem:[#allocation7 + $0x1b8] sm:$0xff]
    %v209 = vld [vmem:[#allocation7 + $0x1c0] sm:$0xff]
    %v210 = vld [vmem:[#allocation7 + $0x1c8] sm:$0xff]
    %v211 = vld [vmem:[#allocation7 + $0x1d0] sm:$0xff]
    %v212 = vld [vmem:[#allocation7 + $0x1d8] sm:$0xff]
    %v213 = vld [vmem:[#allocation7 + $0x1e0] sm:$0xff]
    %v214 = vld [vmem:[#allocation7 + $0x1e8] sm:$0xff]
    %v215 = vld [vmem:[#allocation7 + $0x1f0] sm:$0xff]
    %v216 = vld [vmem:[#allocation7 + $0x1f8] sm:$0xff]
    %v217 = vld [vmem:[#allocation7 + $0x200] sm:$0xff]
    %v218 = vld [vmem:[#allocation7 + $0x208] sm:$0xff]
    %v219 = vld [vmem:[#allocation7 + $0x210] sm:$0xff]
    %v220 = vld [vmem:[#allocation7 + $0x218] sm:$0xff]
    %v221 = vld [vmem:[#allocation7 + $0x220] sm:$0xff]
    %v222 = vld [vmem:[#allocation7 + $0x228] sm:$0xff]
    %v223 = vld [vmem:[#allocation7 + $0x230] sm:$0xff]
    %v224 = vld [vmem:[#allocation7 + $0x238] sm:$0xff]
    %v225 = vld [vmem:[#allocation7 + $0x240] sm:$0xff]
    %v226 = vld [vmem:[#allocation7 + $0x248] sm:$0xff]
    %v227 = vld [vmem:[#allocation7 + $0x250] sm:$0xff]
    %v228 = vld [vmem:[#allocation7 + $0x258] sm:$0xff]
    %v229 = vld [vmem:[#allocation7 + $0x260] sm:$0xff]
    %v230 = vld [vmem:[#allocation7 + $0x268] sm:$0xff]
    %v231 = vld [vmem:[#allocation7 + $0x270] sm:$0xff]
    %v232 = vld [vmem:[#allocation7 + $0x278] sm:$0xff]
    %v233 = vld [vmem:[#allocation7 + $0x280] sm:$0xff]
    %v234 = vld [vmem:[#allocation7 + $0x288] sm:$0xff]
    %v235 = vld [vmem:[#allocation7 + $0x290] sm:$0xff]
    %v236 = vld [vmem:[#allocation7 + $0x298] sm:$0xff]
    %v237 = vld [vmem:[#allocation7 + $0x2a0] sm:$0xff]
    %v238 = vld [vmem:[#allocation7 + $0x2a8] sm:$0xff]
    %v239 = vld [vmem:[#allocation7 + $0x2b0] sm:$0xff]
    %v240 = vld [vmem:[#allocation7 + $0x2b8] sm:$0xff]
    %v241 = vld [vmem:[#allocation7 + $0x2c0] sm:$0xff]
    %v242 = vld [vmem:[#allocation7 + $0x2c8] sm:$0xff]
    %v243 = vld [vmem:[#allocation7 + $0x2d0] sm:$0xff]
    %v244 = vld [vmem:[#allocation7 + $0x2d8] sm:$0xff]
    %v245 = vld [vmem:[#allocation7 + $0x2e0] sm:$0xff]
    %v246 = vld [vmem:[#allocation7 + $0x2e8] sm:$0xff]
    %v247 = vld [vmem:[#allocation7 + $0x2f0] sm:$0xff]
    %v248 = vld [vmem:[#allocation7 + $0x2f8] sm:$0xff]
    %v249 = vld [vmem:[#allocation7 + $0x300] sm:$0xff]
    %v250 = vld [vmem:[#allocation7 + $0x308] sm:$0xff]
    %v251 = vld [vmem:[#allocation7 + $0x310] sm:$0xff]
    %v252 = vld [vmem:[#allocation7 + $0x318] sm:$0xff]
    %v253 = vld [vmem:[#allocation7 + $0x320] sm:$0xff]
    %v254 = vld [vmem:[#allocation7 + $0x328] sm:$0xff]
    %v255 = vld [vmem:[#allocation7 + $0x330] sm:$0xff]
    %v256 = vld [vmem:[#allocation7 + $0x338] sm:$0xff]
    %v257 = vld [vmem:[#allocation7 + $0x340] sm:$0xff]
    %v258 = vld [vmem:[#allocation7 + $0x348] sm:$0xff]
    %v259 = vld [vmem:[#allocation7 + $0x350] sm:$0xff]
    %v260 = vld [vmem:[#allocation7 + $0x358] sm:$0xff]
    %v261 = vld [vmem:[#allocation7 + $0x360] sm:$0xff]
    %v262 = vld [vmem:[#allocation7 + $0x368] sm:$0xff]
    %v263 = vld [vmem:[#allocation7 + $0x370] sm:$0xff]
    %v264 = vld [vmem:[#allocation7 + $0x378] sm:$0xff]
    %v265 = vld [vmem:[#allocation7 + $0x380] sm:$0xff]
    %v266 = vld [vmem:[#allocation7 + $0x388] sm:$0xff]
    %v267 = vld [vmem:[#allocation7 + $0x390] sm:$0xff]
    %v268 = vld [vmem:[#allocation7 + $0x398] sm:$0xff]
    %v269 = vld [vmem:[#allocation7 + $0x3a0] sm:$0xff]
    %v270 = vld [vmem:[#allocation7 + $0x3a8] sm:$0xff]
    %v271 = vld [vmem:[#allocation7 + $0x3b0] sm:$0xff]
    %v272 = vld [vmem:[#allocation7 + $0x3b8] sm:$0xff]
    %v273 = vld [vmem:[#allocation7 + $0x3c0] sm:$0xff]
    %v274 = vld [vmem:[#allocation7 + $0x3c8] sm:$0xff]
    %v275 = vld [vmem:[#allocation7 + $0x3d0] sm:$0xff]
    %v276 = vld [vmem:[#allocation7 + $0x3d8] sm:$0xff]
    %v277 = vld [vmem:[#allocation7 + $0x3e0] sm:$0xff]
    %v278 = vld [vmem:[#allocation7 + $0x3e8] sm:$0xff]
    %v279 = vld [vmem:[#allocation7 + $0x3f0] sm:$0xff]
    %v280 = vld [vmem:[#allocation7 + $0x3f8] sm:$0xff]
    %v281 = vld [vmem:[#allocation7 + $0x400] sm:$0xff]
    %v282 = vld [vmem:[#allocation7 + $0x408] sm:$0xff]
    %v283 = vld [vmem:[#allocation7 + $0x410] sm:$0xff]
    %v284 = vld [vmem:[#allocation7 + $0x418] sm:$0xff]
    %v285 = vld [vmem:[#allocation7 + $0x420] sm:$0xff]
    %v286 = vld [vmem:[#allocation7 + $0x428] sm:$0xff]
    %v287 = vld [vmem:[#allocation7 + $0x430] sm:$0xff]
    %v288 = vld [vmem:[#allocation7 + $0x438] sm:$0xff]
    %v289 = vld [vmem:[#allocation7 + $0x440] sm:$0xff]
    %v290 = vld [vmem:[#allocation7 + $0x448] sm:$0xff]
    %v291 = vld [vmem:[#allocation7 + $0x450] sm:$0xff]
    %v292 = vld [vmem:[#allocation7 + $0x458] sm:$0xff]
    %v293 = vld [vmem:[#allocation7 + $0x460] sm:$0xff]
    %v294 = vld [vmem:[#allocation7 + $0x468] sm:$0xff]
    %v295 = vld [vmem:[#allocation7 + $0x470] sm:$0xff]
    %v296 = vld [vmem:[#allocation7 + $0x478] sm:$0xff]
    %v297 = vld [vmem:[#allocation7 + $0x480] sm:$0xff]
    %v298 = vld [vmem:[#allocation7 + $0x488] sm:$0xff]
    %v299 = vld [vmem:[#allocation7 + $0x490] sm:$0xff]
    %v300 = vld [vmem:[#allocation7 + $0x498] sm:$0xff]
    %v301 = vld [vmem:[#allocation7 + $0x4a0] sm:$0xff]
    %v302 = vld [vmem:[#allocation7 + $0x4a8] sm:$0xff]
    %v303 = vld [vmem:[#allocation7 + $0x4b0] sm:$0xff]
    %v304 = vld [vmem:[#allocation7 + $0x4b8] sm:$0xff]
    %v305 = vld [vmem:[#allocation7 + $0x4c0] sm:$0xff]
    %v306 = vld [vmem:[#allocation7 + $0x4c8] sm:$0xff]
    %v307 = vld [vmem:[#allocation7 + $0x4d0] sm:$0xff]
    %v308 = vld [vmem:[#allocation7 + $0x4d8] sm:$0xff]
    %v309 = vld [vmem:[#allocation7 + $0x4e0] sm:$0xff]
    %v310 = vld [vmem:[#allocation7 + $0x4e8] sm:$0xff]
    %v311 = vld [vmem:[#allocation7 + $0x4f0] sm:$0xff]
    %v312 = vld [vmem:[#allocation7 + $0x4f8] sm:$0xff]
    %v313 = vld [vmem:[#allocation7 + $0x500] sm:$0xff]
    %v314 = vld [vmem:[#allocation7 + $0x508] sm:$0xff]
    %v315 = vld [vmem:[#allocation7 + $0x510] sm:$0xff]
    %v316 = vld [vmem:[#allocation7 + $0x518] sm:$0xff]
    %v317 = vld [vmem:[#allocation7 + $0x520] sm:$0xff]
    %v318 = vld [vmem:[#allocation7 + $0x528] sm:$0xff]
    %v319 = vld [vmem:[#allocation7 + $0x530] sm:$0xff]
    %v320 = vld [vmem:[#allocation7 + $0x538] sm:$0xff]
    %v321 = vld [vmem:[#allocation7 + $0x540] sm:$0xff]
    %v322 = vld [vmem:[#allocation7 + $0x548] sm:$0xff]
    %v323 = vld [vmem:[#allocation7 + $0x550] sm:$0xff]
    %v324 = vld [vmem:[#allocation7 + $0x558] sm:$0xff]
    %v325 = vld [vmem:[#allocation7 + $0x560] sm:$0xff]
    %v326 = vld [vmem:[#allocation7 + $0x568] sm:$0xff]
    %v327 = vld [vmem:[#allocation7 + $0x570] sm:$0xff]
    %v328 = vld [vmem:[#allocation7 + $0x578] sm:$0xff]
    %v329 = vld [vmem:[#allocation7 + $0x580] sm:$0xff]
    %v330 = vld [vmem:[#allocation7 + $0x588] sm:$0xff]
    %v331 = vld [vmem:[#allocation7 + $0x590] sm:$0xff]
    %v332 = vld [vmem:[#allocation7 + $0x598] sm:$0xff]
    %v333 = vld [vmem:[#allocation7 + $0x5a0] sm:$0xff]
    %v334 = vld [vmem:[#allocation7 + $0x5a8] sm:$0xff]
    %v335 = vld [vmem:[#allocation7 + $0x5b0] sm:$0xff]
    %v336 = vld [vmem:[#allocation7 + $0x5b8] sm:$0xff]
    %v337 = vld [vmem:[#allocation7 + $0x5c0] sm:$0xff]
    %v338 = vld [vmem:[#allocation7 + $0x5c8] sm:$0xff]
    %v339 = vld [vmem:[#allocation7 + $0x5d0] sm:$0xff]
    %v340 = vld [vmem:[#allocation7 + $0x5d8] sm:$0xff]
    %v341 = vld [vmem:[#allocation7 + $0x5e0] sm:$0xff]
    %v342 = vld [vmem:[#allocation7 + $0x5e8] sm:$0xff]
    %v343 = vld [vmem:[#allocation7 + $0x5f0] sm:$0xff]
    %v344 = vld [vmem:[#allocation7 + $0x5f8] sm:$0xff]
    %v345 = vld [vmem:[#allocation7 + $0x600] sm:$0xff]
    %v346 = vld [vmem:[#allocation7 + $0x608] sm:$0xff]
    %v347 = vld [vmem:[#allocation7 + $0x610] sm:$0xff]
    %v348 = vld [vmem:[#allocation7 + $0x618] sm:$0xff]
    %v349 = vld [vmem:[#allocation7 + $0x620] sm:$0xff]
    %v350 = vld [vmem:[#allocation7 + $0x628] sm:$0xff]
    %v351 = vld [vmem:[#allocation7 + $0x630] sm:$0xff]
    %v352 = vld [vmem:[#allocation7 + $0x638] sm:$0xff]
    %v353 = vld [vmem:[#allocation7 + $0x640] sm:$0xff]
    %v354 = vld [vmem:[#allocation7 + $0x648] sm:$0xff]
    %v355 = vld [vmem:[#allocation7 + $0x650] sm:$0xff]
    %v356 = vld [vmem:[#allocation7 + $0x658] sm:$0xff]
    %v357 = vld [vmem:[#allocation7 + $0x660] sm:$0xff]
    %v358 = vld [vmem:[#allocation7 + $0x668] sm:$0xff]
    %v359 = vld [vmem:[#allocation7 + $0x670] sm:$0xff]
    %v360 = vld [vmem:[#allocation7 + $0x678] sm:$0xff]
    %v361 = vld [vmem:[#allocation7 + $0x680] sm:$0xff]
    %v362 = vld [vmem:[#allocation7 + $0x688] sm:$0xff]
    %v363 = vld [vmem:[#allocation7 + $0x690] sm:$0xff]
    %v364 = vld [vmem:[#allocation7 + $0x698] sm:$0xff]
    %v365 = vld [vmem:[#allocation7 + $0x6a0] sm:$0xff]
    %v366 = vld [vmem:[#allocation7 + $0x6a8] sm:$0xff]
    %v367 = vld [vmem:[#allocation7 + $0x6b0] sm:$0xff]
    %v368 = vld [vmem:[#allocation7 + $0x6b8] sm:$0xff]
    %v369 = vld [vmem:[#allocation7 + $0x6c0] sm:$0xff]
    %v370 = vld [vmem:[#allocation7 + $0x6c8] sm:$0xff]
    %v371 = vld [vmem:[#allocation7 + $0x6d0] sm:$0xff]
    %v372 = vld [vmem:[#allocation7 + $0x6d8] sm:$0xff]
    %v373 = vld [vmem:[#allocation7 + $0x6e0] sm:$0xff]
    %v374 = vld [vmem:[#allocation7 + $0x6e8] sm:$0xff]
    %v375 = vld [vmem:[#allocation7 + $0x6f0] sm:$0xff]
    %v376 = vld [vmem:[#allocation7 + $0x6f8] sm:$0xff]
    %v377 = vld [vmem:[#allocation7 + $0x700] sm:$0xff]
    %v378 = vld [vmem:[#allocation7 + $0x708] sm:$0xff]
    %v379 = vld [vmem:[#allocation7 + $0x710] sm:$0xff]
    %v380 = vld [vmem:[#allocation7 + $0x718] sm:$0xff]
    %v381 = vld [vmem:[#allocation7 + $0x720] sm:$0xff]
    %v382 = vld [vmem:[#allocation7 + $0x728] sm:$0xff]
    %v383 = vld [vmem:[#allocation7 + $0x730] sm:$0xff]
    %v384 = vld [vmem:[#allocation7 + $0x738] sm:$0xff]
    %v385 = vld [vmem:[#allocation7 + $0x740] sm:$0xff]
    %v386 = vld [vmem:[#allocation7 + $0x748] sm:$0xff]
    %v387 = vld [vmem:[#allocation7 + $0x750] sm:$0xff]
    %v388 = vld [vmem:[#allocation7 + $0x758] sm:$0xff]
    %v389 = vld [vmem:[#allocation7 + $0x760] sm:$0xff]
    %v390 = vld [vmem:[#allocation7 + $0x768] sm:$0xff]
    %v391 = vld [vmem:[#allocation7 + $0x770] sm:$0xff]
    %v392 = vld [vmem:[#allocation7 + $0x778] sm:$0xff]
    %v393 = vld [vmem:[#allocation7 + $0x780] sm:$0xff]
    %v394 = vld [vmem:[#allocation7 + $0x788] sm:$0xff]
    %v395 = vld [vmem:[#allocation7 + $0x790] sm:$0xff]
    %v396 = vld [vmem:[#allocation7 + $0x798] sm:$0xff]
    %v397 = vld [vmem:[#allocation7 + $0x7a0] sm:$0xff]
    %v398 = vld [vmem:[#allocation7 + $0x7a8] sm:$0xff]
    %v399 = vld [vmem:[#allocation7 + $0x7b0] sm:$0xff]
    %v400 = vld [vmem:[#allocation7 + $0x7b8] sm:$0xff]
    %v401 = vld [vmem:[#allocation7 + $0x7c0] sm:$0xff]
    %v402 = vld [vmem:[#allocation7 + $0x7c8] sm:$0xff]
    %v403 = vld [vmem:[#allocation7 + $0x7d0] sm:$0xff]
    %v404 = vld [vmem:[#allocation7 + $0x7d8] sm:$0xff]
    %v405 = vld [vmem:[#allocation7 + $0x7e0] sm:$0xff]
    %v406 = vld [vmem:[#allocation7 + $0x7e8] sm:$0xff]
    %v407 = vld [vmem:[#allocation7 + $0x7f0] sm:$0xff]
    %v408 = vld [vmem:[#allocation7 + $0x7f8] sm:$0xff]
    %v409 = vld [vmem:[#allocation7 + $0x800] sm:$0xff]
    %v410 = vld [vmem:[#allocation7 + $0x808] sm:$0xff]
    %v411 = vld [vmem:[#allocation7 + $0x810] sm:$0xff]
    %v412 = vld [vmem:[#allocation7 + $0x818] sm:$0xff]
    %v413 = vld [vmem:[#allocation7 + $0x820] sm:$0xff]
    %v414 = vld [vmem:[#allocation7 + $0x828] sm:$0xff]
    %v415 = vld [vmem:[#allocation7 + $0x830] sm:$0xff]
    %v416 = vld [vmem:[#allocation7 + $0x838] sm:$0xff]
    %v417 = vld [vmem:[#allocation7 + $0x840] sm:$0xff]
    %v418 = vld [vmem:[#allocation7 + $0x848] sm:$0xff]
    %v419 = vld [vmem:[#allocation7 + $0x850] sm:$0xff]
    %v420 = vld [vmem:[#allocation7 + $0x858] sm:$0xff]
    %v421 = vld [vmem:[#allocation7 + $0x860] sm:$0xff]
    %v422 = vld [vmem:[#allocation7 + $0x868] sm:$0xff]
    %v423 = vld [vmem:[#allocation7 + $0x870] sm:$0xff]
    %v424 = vld [vmem:[#allocation7 + $0x878] sm:$0xff]
    %v425 = vld [vmem:[#allocation7 + $0x880] sm:$0xff]
    %v426 = vld [vmem:[#allocation7 + $0x888] sm:$0xff]
    %v427 = vld [vmem:[#allocation7 + $0x890] sm:$0xff]
    %v428 = vld [vmem:[#allocation7 + $0x898] sm:$0xff]
    %v429 = vld [vmem:[#allocation7 + $0x8a0] sm:$0xff]
    %v430 = vld [vmem:[#allocation7 + $0x8a8] sm:$0xff]
    %v431 = vld [vmem:[#allocation7 + $0x8b0] sm:$0xff]
    %v432 = vld [vmem:[#allocation7 + $0x8b8] sm:$0xff]
    %v433 = vld [vmem:[#allocation7 + $0x8c0] sm:$0xff]
    %v434 = vld [vmem:[#allocation7 + $0x8c8] sm:$0xff]
    %v435 = vld [vmem:[#allocation7 + $0x8d0] sm:$0xff]
    %v436 = vld [vmem:[#allocation7 + $0x8d8] sm:$0xff]
    %v437 = vld [vmem:[#allocation7 + $0x8e0] sm:$0xff]
    %v438 = vld [vmem:[#allocation7 + $0x8e8] sm:$0xff]
    %v439 = vld [vmem:[#allocation7 + $0x8f0] sm:$0xff]
    %v440 = vld [vmem:[#allocation7 + $0x8f8] sm:$0xff]
    %v441 = vld [vmem:[#allocation7 + $0x900] sm:$0xff]
    %v442 = vld [vmem:[#allocation7 + $0x908] sm:$0xff]
    %v443 = vld [vmem:[#allocation7 + $0x910] sm:$0xff]
    %v444 = vld [vmem:[#allocation7 + $0x918] sm:$0xff]
    %v445 = vld [vmem:[#allocation7 + $0x920] sm:$0xff]
    %v446 = vld [vmem:[#allocation7 + $0x928] sm:$0xff]
    %v447 = vld [vmem:[#allocation7 + $0x930] sm:$0xff]
    %v448 = vld [vmem:[#allocation7 + $0x938] sm:$0xff]
    %v449 = vld [vmem:[#allocation7 + $0x940] sm:$0xff]
    %v450 = vld [vmem:[#allocation7 + $0x948] sm:$0xff]
    %v451 = vld [vmem:[#allocation7 + $0x950] sm:$0xff]
    %v452 = vld [vmem:[#allocation7 + $0x958] sm:$0xff]
    %v453 = vld [vmem:[#allocation7 + $0x960] sm:$0xff]
    %v454 = vld [vmem:[#allocation7 + $0x968] sm:$0xff]
    %v455 = vld [vmem:[#allocation7 + $0x970] sm:$0xff]
    %v456 = vld [vmem:[#allocation7 + $0x978] sm:$0xff]
    %v457 = vld [vmem:[#allocation7 + $0x980] sm:$0xff]
    %v458 = vld [vmem:[#allocation7 + $0x988] sm:$0xff]
    %v459 = vld [vmem:[#allocation7 + $0x990] sm:$0xff]
    %v460 = vld [vmem:[#allocation7 + $0x998] sm:$0xff]
    %v461 = vld [vmem:[#allocation7 + $0x9a0] sm:$0xff]
    %v462 = vld [vmem:[#allocation7 + $0x9a8] sm:$0xff]
    %v463 = vld [vmem:[#allocation7 + $0x9b0] sm:$0xff]
    %v464 = vld [vmem:[#allocation7 + $0x9b8] sm:$0xff]
    %v465 = vld [vmem:[#allocation7 + $0x9c0] sm:$0xff]
    %v466 = vld [vmem:[#allocation7 + $0x9c8] sm:$0xff]
    %v467 = vld [vmem:[#allocation7 + $0x9d0] sm:$0xff]
    %v468 = vld [vmem:[#allocation7 + $0x9d8] sm:$0xff]
    %v469 = vld [vmem:[#allocation7 + $0x9e0] sm:$0xff]
    %v470 = vld [vmem:[#allocation7 + $0x9e8] sm:$0xff]
    %v471 = vld [vmem:[#allocation7 + $0x9f0] sm:$0xff]
    %v472 = vld [vmem:[#allocation7 + $0x9f8] sm:$0xff]
    %v473 = vld [vmem:[#allocation9] sm:$0xf]
    %v475 = vlaneseq
    %v476 = vshrl.u32 %v475, 7
    %v477 = vsub.s32 0, %v476
    %v478 = vrot.slane %v473, %v477
    %v479 = vlaneseq
    %v480 = vshrl.u32 %v479, 7
    %v481 = vsub.s32 1, %v480
    %v482 = vrot.slane %v473, %v481
    %v483 = vlaneseq
    %v484 = vshrl.u32 %v483, 7
    %v485 = vsub.s32 2, %v484
    %v486 = vrot.slane %v473, %v485
    %v487 = vlaneseq
    %v488 = vshrl.u32 %v487, 7
    %v489 = vsub.s32 3, %v488
    %v490 = vrot.slane %v473, %v489
    %v505 = vunpack.c.l.b16 %v143
    %v506 = vunpack.c.h.b16 %v143
    %v507 = vunpack.c.l.b16 %v144
    %v508 = vunpack.c.h.b16 %v144
    %v509 = vunpack.c.l.b16 %v145
    %v510 = vunpack.c.h.b16 %v145
    %v511 = vunpack.c.l.b16 %v146
    %v512 = vunpack.c.h.b16 %v146
    %v513 = vunpack.c.l.b16 %v147
    %v514 = vunpack.c.h.b16 %v147
    %v515 = vunpack.c.l.b16 %v148
    %v516 = vunpack.c.h.b16 %v148
    %v517 = vunpack.c.l.b16 %v149
    %v518 = vunpack.c.h.b16 %v149
    %v519 = vunpack.c.l.b16 %v150
    %v520 = vunpack.c.h.b16 %v150
    %v521 = vunpack.c.l.b16 %v151
    %v522 = vunpack.c.h.b16 %v151
    %v523 = vunpack.c.l.b16 %v152
    %v524 = vunpack.c.h.b16 %v152
    %v525 = vpack.c.b16 %v515, %v505
    %v526 = vpack.c.b16 %v516, %v506
    %v527 = vpack.c.b16 %v517, %v507
    %v528 = vpack.c.b16 %v518, %v508
    %v529 = vpack.c.b16 %v519, %v509
    %v530 = vpack.c.b16 %v520, %v510
    %v531 = vpack.c.b16 %v521, %v511
    %v532 = vpack.c.b16 %v522, %v512
    %v533 = vpack.c.b16 %v523, %v513
    %v534 = vpack.c.b16 %v524, %v514
    %v865 = vunpack.c.l.b16 %v153
    %v866 = vunpack.c.h.b16 %v153
    %v867 = vunpack.c.l.b16 %v154
    %v868 = vunpack.c.h.b16 %v154
    %v869 = vunpack.c.l.b16 %v155
    %v870 = vunpack.c.h.b16 %v155
    %v871 = vunpack.c.l.b16 %v156
    %v872 = vunpack.c.h.b16 %v156
    %v873 = vunpack.c.l.b16 %v157
    %v874 = vunpack.c.h.b16 %v157
    %v875 = vunpack.c.l.b16 %v158
    %v876 = vunpack.c.h.b16 %v158
    %v877 = vunpack.c.l.b16 %v159
    %v878 = vunpack.c.h.b16 %v159
    %v879 = vunpack.c.l.b16 %v160
    %v880 = vunpack.c.h.b16 %v160
    %v881 = vunpack.c.l.b16 %v161
    %v882 = vunpack.c.h.b16 %v161
    %v883 = vunpack.c.l.b16 %v162
    %v884 = vunpack.c.h.b16 %v162
    %v885 = vunpack.c.l.b16 %v163
    %v886 = vunpack.c.h.b16 %v163
    %v887 = vunpack.c.l.b16 %v164
    %v888 = vunpack.c.h.b16 %v164
    %v889 = vunpack.c.l.b16 %v165
    %v890 = vunpack.c.h.b16 %v165
    %v891 = vunpack.c.l.b16 %v166
    %v892 = vunpack.c.h.b16 %v166
    %v893 = vunpack.c.l.b16 %v167
    %v894 = vunpack.c.h.b16 %v167
    %v895 = vunpack.c.l.b16 %v168
    %v896 = vunpack.c.h.b16 %v168
    %v897 = vunpack.c.l.b16 %v169
    %v898 = vunpack.c.h.b16 %v169
    %v899 = vunpack.c.l.b16 %v170
    %v900 = vunpack.c.h.b16 %v170
    %v901 = vunpack.c.l.b16 %v171
    %v902 = vunpack.c.h.b16 %v171
    %v903 = vunpack.c.l.b16 %v172
    %v904 = vunpack.c.h.b16 %v172
    %v905 = vunpack.c.l.b16 %v173
    %v906 = vunpack.c.h.b16 %v173
    %v907 = vunpack.c.l.b16 %v174
    %v908 = vunpack.c.h.b16 %v174
    %v909 = vunpack.c.l.b16 %v175
    %v910 = vunpack.c.h.b16 %v175
    %v911 = vunpack.c.l.b16 %v176
    %v912 = vunpack.c.h.b16 %v176
    %v913 = vunpack.c.l.b16 %v177
    %v914 = vunpack.c.h.b16 %v177
    %v915 = vunpack.c.l.b16 %v178
    %v916 = vunpack.c.h.b16 %v178
    %v917 = vunpack.c.l.b16 %v179
    %v918 = vunpack.c.h.b16 %v179
    %v919 = vunpack.c.l.b16 %v180
    %v920 = vunpack.c.h.b16 %v180
    %v921 = vunpack.c.l.b16 %v181
    %v922 = vunpack.c.h.b16 %v181
    %v923 = vunpack.c.l.b16 %v182
    %v924 = vunpack.c.h.b16 %v182
    %v925 = vunpack.c.l.b16 %v183
    %v926 = vunpack.c.h.b16 %v183
    %v927 = vunpack.c.l.b16 %v184
    %v928 = vunpack.c.h.b16 %v184
    %v929 = vunpack.c.l.b16 %v185
    %v930 = vunpack.c.h.b16 %v185
    %v931 = vunpack.c.l.b16 %v186
    %v932 = vunpack.c.h.b16 %v186
    %v933 = vunpack.c.l.b16 %v187
    %v934 = vunpack.c.h.b16 %v187
    %v935 = vunpack.c.l.b16 %v188
    %v936 = vunpack.c.h.b16 %v188
    %v937 = vunpack.c.l.b16 %v189
    %v938 = vunpack.c.h.b16 %v189
    %v939 = vunpack.c.l.b16 %v190
    %v940 = vunpack.c.h.b16 %v190
    %v941 = vunpack.c.l.b16 %v191
    %v942 = vunpack.c.h.b16 %v191
    %v943 = vunpack.c.l.b16 %v192
    %v944 = vunpack.c.h.b16 %v192
    %v945 = vunpack.c.l.b16 %v193
    %v946 = vunpack.c.h.b16 %v193
    %v947 = vunpack.c.l.b16 %v194
    %v948 = vunpack.c.h.b16 %v194
    %v949 = vunpack.c.l.b16 %v195
    %v950 = vunpack.c.h.b16 %v195
    %v951 = vunpack.c.l.b16 %v196
    %v952 = vunpack.c.h.b16 %v196
    %v953 = vunpack.c.l.b16 %v197
    %v954 = vunpack.c.h.b16 %v197
    %v955 = vunpack.c.l.b16 %v198
    %v956 = vunpack.c.h.b16 %v198
    %v957 = vunpack.c.l.b16 %v199
    %v958 = vunpack.c.h.b16 %v199
    %v959 = vunpack.c.l.b16 %v200
    %v960 = vunpack.c.h.b16 %v200
    %v961 = vunpack.c.l.b16 %v201
    %v962 = vunpack.c.h.b16 %v201
    %v963 = vunpack.c.l.b16 %v202
    %v964 = vunpack.c.h.b16 %v202
    %v965 = vunpack.c.l.b16 %v203
    %v966 = vunpack.c.h.b16 %v203
    %v967 = vunpack.c.l.b16 %v204
    %v968 = vunpack.c.h.b16 %v204
    %v969 = vunpack.c.l.b16 %v205
    %v970 = vunpack.c.h.b16 %v205
    %v971 = vunpack.c.l.b16 %v206
    %v972 = vunpack.c.h.b16 %v206
    %v973 = vunpack.c.l.b16 %v207
    %v974 = vunpack.c.h.b16 %v207
    %v975 = vunpack.c.l.b16 %v208
    %v976 = vunpack.c.h.b16 %v208
    %v977 = vunpack.c.l.b16 %v209
    %v978 = vunpack.c.h.b16 %v209
    %v979 = vunpack.c.l.b16 %v210
    %v980 = vunpack.c.h.b16 %v210
    %v981 = vunpack.c.l.b16 %v211
    %v982 = vunpack.c.h.b16 %v211
    %v983 = vunpack.c.l.b16 %v212
    %v984 = vunpack.c.h.b16 %v212
    %v985 = vunpack.c.l.b16 %v213
    %v986 = vunpack.c.h.b16 %v213
    %v987 = vunpack.c.l.b16 %v214
    %v988 = vunpack.c.h.b16 %v214
    %v989 = vunpack.c.l.b16 %v215
    %v990 = vunpack.c.h.b16 %v215
    %v991 = vunpack.c.l.b16 %v216
    %v992 = vunpack.c.h.b16 %v216
    %v993 = vunpack.c.l.b16 %v217
    %v994 = vunpack.c.h.b16 %v217
    %v995 = vunpack.c.l.b16 %v218
    %v996 = vunpack.c.h.b16 %v218
    %v997 = vunpack.c.l.b16 %v219
    %v998 = vunpack.c.h.b16 %v219
    %v999 = vunpack.c.l.b16 %v220
    %v1000 = vunpack.c.h.b16 %v220
    %v1001 = vunpack.c.l.b16 %v221
    %v1002 = vunpack.c.h.b16 %v221
    %v1003 = vunpack.c.l.b16 %v222
    %v1004 = vunpack.c.h.b16 %v222
    %v1005 = vunpack.c.l.b16 %v223
    %v1006 = vunpack.c.h.b16 %v223
    %v1007 = vunpack.c.l.b16 %v224
    %v1008 = vunpack.c.h.b16 %v224
    %v1009 = vunpack.c.l.b16 %v225
    %v1010 = vunpack.c.h.b16 %v225
    %v1011 = vunpack.c.l.b16 %v226
    %v1012 = vunpack.c.h.b16 %v226
    %v1013 = vunpack.c.l.b16 %v227
    %v1014 = vunpack.c.h.b16 %v227
    %v1015 = vunpack.c.l.b16 %v228
    %v1016 = vunpack.c.h.b16 %v228
    %v1017 = vunpack.c.l.b16 %v229
    %v1018 = vunpack.c.h.b16 %v229
    %v1019 = vunpack.c.l.b16 %v230
    %v1020 = vunpack.c.h.b16 %v230
    %v1021 = vunpack.c.l.b16 %v231
    %v1022 = vunpack.c.h.b16 %v231
    %v1023 = vunpack.c.l.b16 %v232
    %v1024 = vunpack.c.h.b16 %v232
    %v1025 = vunpack.c.l.b16 %v233
    %v1026 = vunpack.c.h.b16 %v233
    %v1027 = vunpack.c.l.b16 %v234
    %v1028 = vunpack.c.h.b16 %v234
    %v1029 = vunpack.c.l.b16 %v235
    %v1030 = vunpack.c.h.b16 %v235
    %v1031 = vunpack.c.l.b16 %v236
    %v1032 = vunpack.c.h.b16 %v236
    %v1033 = vunpack.c.l.b16 %v237
    %v1034 = vunpack.c.h.b16 %v237
    %v1035 = vunpack.c.l.b16 %v238
    %v1036 = vunpack.c.h.b16 %v238
    %v1037 = vunpack.c.l.b16 %v239
    %v1038 = vunpack.c.h.b16 %v239
    %v1039 = vunpack.c.l.b16 %v240
    %v1040 = vunpack.c.h.b16 %v240
    %v1041 = vunpack.c.l.b16 %v241
    %v1042 = vunpack.c.h.b16 %v241
    %v1043 = vunpack.c.l.b16 %v242
    %v1044 = vunpack.c.h.b16 %v242
    %v1045 = vunpack.c.l.b16 %v243
    %v1046 = vunpack.c.h.b16 %v243
    %v1047 = vunpack.c.l.b16 %v244
    %v1048 = vunpack.c.h.b16 %v244
    %v1049 = vunpack.c.l.b16 %v245
    %v1050 = vunpack.c.h.b16 %v245
    %v1051 = vunpack.c.l.b16 %v246
    %v1052 = vunpack.c.h.b16 %v246
    %v1053 = vunpack.c.l.b16 %v247
    %v1054 = vunpack.c.h.b16 %v247
    %v1055 = vunpack.c.l.b16 %v248
    %v1056 = vunpack.c.h.b16 %v248
    %v1057 = vunpack.c.l.b16 %v249
    %v1058 = vunpack.c.h.b16 %v249
    %v1059 = vunpack.c.l.b16 %v250
    %v1060 = vunpack.c.h.b16 %v250
    %v1061 = vunpack.c.l.b16 %v251
    %v1062 = vunpack.c.h.b16 %v251
    %v1063 = vunpack.c.l.b16 %v252
    %v1064 = vunpack.c.h.b16 %v252
    %v1065 = vunpack.c.l.b16 %v253
    %v1066 = vunpack.c.h.b16 %v253
    %v1067 = vunpack.c.l.b16 %v254
    %v1068 = vunpack.c.h.b16 %v254
    %v1069 = vunpack.c.l.b16 %v255
    %v1070 = vunpack.c.h.b16 %v255
    %v1071 = vunpack.c.l.b16 %v256
    %v1072 = vunpack.c.h.b16 %v256
    %v1073 = vunpack.c.l.b16 %v257
    %v1074 = vunpack.c.h.b16 %v257
    %v1075 = vunpack.c.l.b16 %v258
    %v1076 = vunpack.c.h.b16 %v258
    %v1077 = vunpack.c.l.b16 %v259
    %v1078 = vunpack.c.h.b16 %v259
    %v1079 = vunpack.c.l.b16 %v260
    %v1080 = vunpack.c.h.b16 %v260
    %v1081 = vunpack.c.l.b16 %v261
    %v1082 = vunpack.c.h.b16 %v261
    %v1083 = vunpack.c.l.b16 %v262
    %v1084 = vunpack.c.h.b16 %v262
    %v1085 = vunpack.c.l.b16 %v263
    %v1086 = vunpack.c.h.b16 %v263
    %v1087 = vunpack.c.l.b16 %v264
    %v1088 = vunpack.c.h.b16 %v264
    %v1089 = vunpack.c.l.b16 %v265
    %v1090 = vunpack.c.h.b16 %v265
    %v1091 = vunpack.c.l.b16 %v266
    %v1092 = vunpack.c.h.b16 %v266
    %v1093 = vunpack.c.l.b16 %v267
    %v1094 = vunpack.c.h.b16 %v267
    %v1095 = vunpack.c.l.b16 %v268
    %v1096 = vunpack.c.h.b16 %v268
    %v1097 = vunpack.c.l.b16 %v269
    %v1098 = vunpack.c.h.b16 %v269
    %v1099 = vunpack.c.l.b16 %v270
    %v1100 = vunpack.c.h.b16 %v270
    %v1101 = vunpack.c.l.b16 %v271
    %v1102 = vunpack.c.h.b16 %v271
    %v1103 = vunpack.c.l.b16 %v272
    %v1104 = vunpack.c.h.b16 %v272
    %v1105 = vunpack.c.l.b16 %v273
    %v1106 = vunpack.c.h.b16 %v273
    %v1107 = vunpack.c.l.b16 %v274
    %v1108 = vunpack.c.h.b16 %v274
    %v1109 = vunpack.c.l.b16 %v275
    %v1110 = vunpack.c.h.b16 %v275
    %v1111 = vunpack.c.l.b16 %v276
    %v1112 = vunpack.c.h.b16 %v276
    %v1113 = vunpack.c.l.b16 %v277
    %v1114 = vunpack.c.h.b16 %v277
    %v1115 = vunpack.c.l.b16 %v278
    %v1116 = vunpack.c.h.b16 %v278
    %v1117 = vunpack.c.l.b16 %v279
    %v1118 = vunpack.c.h.b16 %v279
    %v1119 = vunpack.c.l.b16 %v280
    %v1120 = vunpack.c.h.b16 %v280
    %v1121 = vunpack.c.l.b16 %v281
    %v1122 = vunpack.c.h.b16 %v281
    %v1123 = vunpack.c.l.b16 %v282
    %v1124 = vunpack.c.h.b16 %v282
    %v1125 = vunpack.c.l.b16 %v283
    %v1126 = vunpack.c.h.b16 %v283
    %v1127 = vunpack.c.l.b16 %v284
    %v1128 = vunpack.c.h.b16 %v284
    %v1129 = vunpack.c.l.b16 %v285
    %v1130 = vunpack.c.h.b16 %v285
    %v1131 = vunpack.c.l.b16 %v286
    %v1132 = vunpack.c.h.b16 %v286
    %v1133 = vunpack.c.l.b16 %v287
    %v1134 = vunpack.c.h.b16 %v287
    %v1135 = vunpack.c.l.b16 %v288
    %v1136 = vunpack.c.h.b16 %v288
    %v1137 = vunpack.c.l.b16 %v289
    %v1138 = vunpack.c.h.b16 %v289
    %v1139 = vunpack.c.l.b16 %v290
    %v1140 = vunpack.c.h.b16 %v290
    %v1141 = vunpack.c.l.b16 %v291
    %v1142 = vunpack.c.h.b16 %v291
    %v1143 = vunpack.c.l.b16 %v292
    %v1144 = vunpack.c.h.b16 %v292
    %v1145 = vunpack.c.l.b16 %v293
    %v1146 = vunpack.c.h.b16 %v293
    %v1147 = vunpack.c.l.b16 %v294
    %v1148 = vunpack.c.h.b16 %v294
    %v1149 = vunpack.c.l.b16 %v295
    %v1150 = vunpack.c.h.b16 %v295
    %v1151 = vunpack.c.l.b16 %v296
    %v1152 = vunpack.c.h.b16 %v296
    %v1153 = vunpack.c.l.b16 %v297
    %v1154 = vunpack.c.h.b16 %v297
    %v1155 = vunpack.c.l.b16 %v298
    %v1156 = vunpack.c.h.b16 %v298
    %v1157 = vunpack.c.l.b16 %v299
    %v1158 = vunpack.c.h.b16 %v299
    %v1159 = vunpack.c.l.b16 %v300
    %v1160 = vunpack.c.h.b16 %v300
    %v1161 = vunpack.c.l.b16 %v301
    %v1162 = vunpack.c.h.b16 %v301
    %v1163 = vunpack.c.l.b16 %v302
    %v1164 = vunpack.c.h.b16 %v302
    %v1165 = vunpack.c.l.b16 %v303
    %v1166 = vunpack.c.h.b16 %v303
    %v1167 = vunpack.c.l.b16 %v304
    %v1168 = vunpack.c.h.b16 %v304
    %v1169 = vunpack.c.l.b16 %v305
    %v1170 = vunpack.c.h.b16 %v305
    %v1171 = vunpack.c.l.b16 %v306
    %v1172 = vunpack.c.h.b16 %v306
    %v1173 = vunpack.c.l.b16 %v307
    %v1174 = vunpack.c.h.b16 %v307
    %v1175 = vunpack.c.l.b16 %v308
    %v1176 = vunpack.c.h.b16 %v308
    %v1177 = vunpack.c.l.b16 %v309
    %v1178 = vunpack.c.h.b16 %v309
    %v1179 = vunpack.c.l.b16 %v310
    %v1180 = vunpack.c.h.b16 %v310
    %v1181 = vunpack.c.l.b16 %v311
    %v1182 = vunpack.c.h.b16 %v311
    %v1183 = vunpack.c.l.b16 %v312
    %v1184 = vunpack.c.h.b16 %v312
    %v1185 = vunpack.c.l.b16 %v313
    %v1186 = vunpack.c.h.b16 %v313
    %v1187 = vunpack.c.l.b16 %v314
    %v1188 = vunpack.c.h.b16 %v314
    %v1189 = vunpack.c.l.b16 %v315
    %v1190 = vunpack.c.h.b16 %v315
    %v1191 = vunpack.c.l.b16 %v316
    %v1192 = vunpack.c.h.b16 %v316
    %v1193 = vunpack.c.l.b16 %v317
    %v1194 = vunpack.c.h.b16 %v317
    %v1195 = vunpack.c.l.b16 %v318
    %v1196 = vunpack.c.h.b16 %v318
    %v1197 = vunpack.c.l.b16 %v319
    %v1198 = vunpack.c.h.b16 %v319
    %v1199 = vunpack.c.l.b16 %v320
    %v1200 = vunpack.c.h.b16 %v320
    %v1201 = vunpack.c.l.b16 %v321
    %v1202 = vunpack.c.h.b16 %v321
    %v1203 = vunpack.c.l.b16 %v322
    %v1204 = vunpack.c.h.b16 %v322
    %v1205 = vunpack.c.l.b16 %v323
    %v1206 = vunpack.c.h.b16 %v323
    %v1207 = vunpack.c.l.b16 %v324
    %v1208 = vunpack.c.h.b16 %v324
    %v1209 = vunpack.c.l.b16 %v325
    %v1210 = vunpack.c.h.b16 %v325
    %v1211 = vunpack.c.l.b16 %v326
    %v1212 = vunpack.c.h.b16 %v326
    %v1213 = vunpack.c.l.b16 %v327
    %v1214 = vunpack.c.h.b16 %v327
    %v1215 = vunpack.c.l.b16 %v328
    %v1216 = vunpack.c.h.b16 %v328
    %v1217 = vunpack.c.l.b16 %v329
    %v1218 = vunpack.c.h.b16 %v329
    %v1219 = vunpack.c.l.b16 %v330
    %v1220 = vunpack.c.h.b16 %v330
    %v1221 = vunpack.c.l.b16 %v331
    %v1222 = vunpack.c.h.b16 %v331
    %v1223 = vunpack.c.l.b16 %v332
    %v1224 = vunpack.c.h.b16 %v332
    %v1225 = vunpack.c.l.b16 %v333
    %v1226 = vunpack.c.h.b16 %v333
    %v1227 = vunpack.c.l.b16 %v334
    %v1228 = vunpack.c.h.b16 %v334
    %v1229 = vunpack.c.l.b16 %v335
    %v1230 = vunpack.c.h.b16 %v335
    %v1231 = vunpack.c.l.b16 %v336
    %v1232 = vunpack.c.h.b16 %v336
    %v1233 = vunpack.c.l.b16 %v337
    %v1234 = vunpack.c.h.b16 %v337
    %v1235 = vunpack.c.l.b16 %v338
    %v1236 = vunpack.c.h.b16 %v338
    %v1237 = vunpack.c.l.b16 %v339
    %v1238 = vunpack.c.h.b16 %v339
    %v1239 = vunpack.c.l.b16 %v340
    %v1240 = vunpack.c.h.b16 %v340
    %v1241 = vunpack.c.l.b16 %v341
    %v1242 = vunpack.c.h.b16 %v341
    %v1243 = vunpack.c.l.b16 %v342
    %v1244 = vunpack.c.h.b16 %v342
    %v1245 = vunpack.c.l.b16 %v343
    %v1246 = vunpack.c.h.b16 %v343
    %v1247 = vunpack.c.l.b16 %v344
    %v1248 = vunpack.c.h.b16 %v344
    %v1249 = vunpack.c.l.b16 %v345
    %v1250 = vunpack.c.h.b16 %v345
    %v1251 = vunpack.c.l.b16 %v346
    %v1252 = vunpack.c.h.b16 %v346
    %v1253 = vunpack.c.l.b16 %v347
    %v1254 = vunpack.c.h.b16 %v347
    %v1255 = vunpack.c.l.b16 %v348
    %v1256 = vunpack.c.h.b16 %v348
    %v1257 = vunpack.c.l.b16 %v349
    %v1258 = vunpack.c.h.b16 %v349
    %v1259 = vunpack.c.l.b16 %v350
    %v1260 = vunpack.c.h.b16 %v350
    %v1261 = vunpack.c.l.b16 %v351
    %v1262 = vunpack.c.h.b16 %v351
    %v1263 = vunpack.c.l.b16 %v352
    %v1264 = vunpack.c.h.b16 %v352
    %v1265 = vunpack.c.l.b16 %v353
    %v1266 = vunpack.c.h.b16 %v353
    %v1267 = vunpack.c.l.b16 %v354
    %v1268 = vunpack.c.h.b16 %v354
    %v1269 = vunpack.c.l.b16 %v355
    %v1270 = vunpack.c.h.b16 %v355
    %v1271 = vunpack.c.l.b16 %v356
    %v1272 = vunpack.c.h.b16 %v356
    %v1273 = vunpack.c.l.b16 %v357
    %v1274 = vunpack.c.h.b16 %v357
    %v1275 = vunpack.c.l.b16 %v358
    %v1276 = vunpack.c.h.b16 %v358
    %v1277 = vunpack.c.l.b16 %v359
    %v1278 = vunpack.c.h.b16 %v359
    %v1279 = vunpack.c.l.b16 %v360
    %v1280 = vunpack.c.h.b16 %v360
    %v1281 = vunpack.c.l.b16 %v361
    %v1282 = vunpack.c.h.b16 %v361
    %v1283 = vunpack.c.l.b16 %v362
    %v1284 = vunpack.c.h.b16 %v362
    %v1285 = vunpack.c.l.b16 %v363
    %v1286 = vunpack.c.h.b16 %v363
    %v1287 = vunpack.c.l.b16 %v364
    %v1288 = vunpack.c.h.b16 %v364
    %v1289 = vunpack.c.l.b16 %v365
    %v1290 = vunpack.c.h.b16 %v365
    %v1291 = vunpack.c.l.b16 %v366
    %v1292 = vunpack.c.h.b16 %v366
    %v1293 = vunpack.c.l.b16 %v367
    %v1294 = vunpack.c.h.b16 %v367
    %v1295 = vunpack.c.l.b16 %v368
    %v1296 = vunpack.c.h.b16 %v368
    %v1297 = vunpack.c.l.b16 %v369
    %v1298 = vunpack.c.h.b16 %v369
    %v1299 = vunpack.c.l.b16 %v370
    %v1300 = vunpack.c.h.b16 %v370
    %v1301 = vunpack.c.l.b16 %v371
    %v1302 = vunpack.c.h.b16 %v371
    %v1303 = vunpack.c.l.b16 %v372
    %v1304 = vunpack.c.h.b16 %v372
    %v1305 = vunpack.c.l.b16 %v373
    %v1306 = vunpack.c.h.b16 %v373
    %v1307 = vunpack.c.l.b16 %v374
    %v1308 = vunpack.c.h.b16 %v374
    %v1309 = vunpack.c.l.b16 %v375
    %v1310 = vunpack.c.h.b16 %v375
    %v1311 = vunpack.c.l.b16 %v376
    %v1312 = vunpack.c.h.b16 %v376
    %v1313 = vunpack.c.l.b16 %v377
    %v1314 = vunpack.c.h.b16 %v377
    %v1315 = vunpack.c.l.b16 %v378
    %v1316 = vunpack.c.h.b16 %v378
    %v1317 = vunpack.c.l.b16 %v379
    %v1318 = vunpack.c.h.b16 %v379
    %v1319 = vunpack.c.l.b16 %v380
    %v1320 = vunpack.c.h.b16 %v380
    %v1321 = vunpack.c.l.b16 %v381
    %v1322 = vunpack.c.h.b16 %v381
    %v1323 = vunpack.c.l.b16 %v382
    %v1324 = vunpack.c.h.b16 %v382
    %v1325 = vunpack.c.l.b16 %v383
    %v1326 = vunpack.c.h.b16 %v383
    %v1327 = vunpack.c.l.b16 %v384
    %v1328 = vunpack.c.h.b16 %v384
    %v1329 = vunpack.c.l.b16 %v385
    %v1330 = vunpack.c.h.b16 %v385
    %v1331 = vunpack.c.l.b16 %v386
    %v1332 = vunpack.c.h.b16 %v386
    %v1333 = vunpack.c.l.b16 %v387
    %v1334 = vunpack.c.h.b16 %v387
    %v1335 = vunpack.c.l.b16 %v388
    %v1336 = vunpack.c.h.b16 %v388
    %v1337 = vunpack.c.l.b16 %v389
    %v1338 = vunpack.c.h.b16 %v389
    %v1339 = vunpack.c.l.b16 %v390
    %v1340 = vunpack.c.h.b16 %v390
    %v1341 = vunpack.c.l.b16 %v391
    %v1342 = vunpack.c.h.b16 %v391
    %v1343 = vunpack.c.l.b16 %v392
    %v1344 = vunpack.c.h.b16 %v392
    %v1345 = vunpack.c.l.b16 %v393
    %v1346 = vunpack.c.h.b16 %v393
    %v1347 = vunpack.c.l.b16 %v394
    %v1348 = vunpack.c.h.b16 %v394
    %v1349 = vunpack.c.l.b16 %v395
    %v1350 = vunpack.c.h.b16 %v395
    %v1351 = vunpack.c.l.b16 %v396
    %v1352 = vunpack.c.h.b16 %v396
    %v1353 = vunpack.c.l.b16 %v397
    %v1354 = vunpack.c.h.b16 %v397
    %v1355 = vunpack.c.l.b16 %v398
    %v1356 = vunpack.c.h.b16 %v398
    %v1357 = vunpack.c.l.b16 %v399
    %v1358 = vunpack.c.h.b16 %v399
    %v1359 = vunpack.c.l.b16 %v400
    %v1360 = vunpack.c.h.b16 %v400
    %v1361 = vunpack.c.l.b16 %v401
    %v1362 = vunpack.c.h.b16 %v401
    %v1363 = vunpack.c.l.b16 %v402
    %v1364 = vunpack.c.h.b16 %v402
    %v1365 = vunpack.c.l.b16 %v403
    %v1366 = vunpack.c.h.b16 %v403
    %v1367 = vunpack.c.l.b16 %v404
    %v1368 = vunpack.c.h.b16 %v404
    %v1369 = vunpack.c.l.b16 %v405
    %v1370 = vunpack.c.h.b16 %v405
    %v1371 = vunpack.c.l.b16 %v406
    %v1372 = vunpack.c.h.b16 %v406
    %v1373 = vunpack.c.l.b16 %v407
    %v1374 = vunpack.c.h.b16 %v407
    %v1375 = vunpack.c.l.b16 %v408
    %v1376 = vunpack.c.h.b16 %v408
    %v1377 = vunpack.c.l.b16 %v409
    %v1378 = vunpack.c.h.b16 %v409
    %v1379 = vunpack.c.l.b16 %v410
    %v1380 = vunpack.c.h.b16 %v410
    %v1381 = vunpack.c.l.b16 %v411
    %v1382 = vunpack.c.h.b16 %v411
    %v1383 = vunpack.c.l.b16 %v412
    %v1384 = vunpack.c.h.b16 %v412
    %v1385 = vunpack.c.l.b16 %v413
    %v1386 = vunpack.c.h.b16 %v413
    %v1387 = vunpack.c.l.b16 %v414
    %v1388 = vunpack.c.h.b16 %v414
    %v1389 = vunpack.c.l.b16 %v415
    %v1390 = vunpack.c.h.b16 %v415
    %v1391 = vunpack.c.l.b16 %v416
    %v1392 = vunpack.c.h.b16 %v416
    %v1393 = vunpack.c.l.b16 %v417
    %v1394 = vunpack.c.h.b16 %v417
    %v1395 = vunpack.c.l.b16 %v418
    %v1396 = vunpack.c.h.b16 %v418
    %v1397 = vunpack.c.l.b16 %v419
    %v1398 = vunpack.c.h.b16 %v419
    %v1399 = vunpack.c.l.b16 %v420
    %v1400 = vunpack.c.h.b16 %v420
    %v1401 = vunpack.c.l.b16 %v421
    %v1402 = vunpack.c.h.b16 %v421
    %v1403 = vunpack.c.l.b16 %v422
    %v1404 = vunpack.c.h.b16 %v422
    %v1405 = vunpack.c.l.b16 %v423
    %v1406 = vunpack.c.h.b16 %v423
    %v1407 = vunpack.c.l.b16 %v424
    %v1408 = vunpack.c.h.b16 %v424
    %v1409 = vunpack.c.l.b16 %v425
    %v1410 = vunpack.c.h.b16 %v425
    %v1411 = vunpack.c.l.b16 %v426
    %v1412 = vunpack.c.h.b16 %v426
    %v1413 = vunpack.c.l.b16 %v427
    %v1414 = vunpack.c.h.b16 %v427
    %v1415 = vunpack.c.l.b16 %v428
    %v1416 = vunpack.c.h.b16 %v428
    %v1417 = vunpack.c.l.b16 %v429
    %v1418 = vunpack.c.h.b16 %v429
    %v1419 = vunpack.c.l.b16 %v430
    %v1420 = vunpack.c.h.b16 %v430
    %v1421 = vunpack.c.l.b16 %v431
    %v1422 = vunpack.c.h.b16 %v431
    %v1423 = vunpack.c.l.b16 %v432
    %v1424 = vunpack.c.h.b16 %v432
    %v1425 = vunpack.c.l.b16 %v433
    %v1426 = vunpack.c.h.b16 %v433
    %v1427 = vunpack.c.l.b16 %v434
    %v1428 = vunpack.c.h.b16 %v434
    %v1429 = vunpack.c.l.b16 %v435
    %v1430 = vunpack.c.h.b16 %v435
    %v1431 = vunpack.c.l.b16 %v436
    %v1432 = vunpack.c.h.b16 %v436
    %v1433 = vunpack.c.l.b16 %v437
    %v1434 = vunpack.c.h.b16 %v437
    %v1435 = vunpack.c.l.b16 %v438
    %v1436 = vunpack.c.h.b16 %v438
    %v1437 = vunpack.c.l.b16 %v439
    %v1438 = vunpack.c.h.b16 %v439
    %v1439 = vunpack.c.l.b16 %v440
    %v1440 = vunpack.c.h.b16 %v440
    %v1441 = vunpack.c.l.b16 %v441
    %v1442 = vunpack.c.h.b16 %v441
    %v1443 = vunpack.c.l.b16 %v442
    %v1444 = vunpack.c.h.b16 %v442
    %v1445 = vunpack.c.l.b16 %v443
    %v1446 = vunpack.c.h.b16 %v443
    %v1447 = vunpack.c.l.b16 %v444
    %v1448 = vunpack.c.h.b16 %v444
    %v1449 = vunpack.c.l.b16 %v445
    %v1450 = vunpack.c.h.b16 %v445
    %v1451 = vunpack.c.l.b16 %v446
    %v1452 = vunpack.c.h.b16 %v446
    %v1453 = vunpack.c.l.b16 %v447
    %v1454 = vunpack.c.h.b16 %v447
    %v1455 = vunpack.c.l.b16 %v448
    %v1456 = vunpack.c.h.b16 %v448
    %v1457 = vunpack.c.l.b16 %v449
    %v1458 = vunpack.c.h.b16 %v449
    %v1459 = vunpack.c.l.b16 %v450
    %v1460 = vunpack.c.h.b16 %v450
    %v1461 = vunpack.c.l.b16 %v451
    %v1462 = vunpack.c.h.b16 %v451
    %v1463 = vunpack.c.l.b16 %v452
    %v1464 = vunpack.c.h.b16 %v452
    %v1465 = vunpack.c.l.b16 %v453
    %v1466 = vunpack.c.h.b16 %v453
    %v1467 = vunpack.c.l.b16 %v454
    %v1468 = vunpack.c.h.b16 %v454
    %v1469 = vunpack.c.l.b16 %v455
    %v1470 = vunpack.c.h.b16 %v455
    %v1471 = vunpack.c.l.b16 %v456
    %v1472 = vunpack.c.h.b16 %v456
    %v1473 = vunpack.c.l.b16 %v457
    %v1474 = vunpack.c.h.b16 %v457
    %v1475 = vunpack.c.l.b16 %v458
    %v1476 = vunpack.c.h.b16 %v458
    %v1477 = vunpack.c.l.b16 %v459
    %v1478 = vunpack.c.h.b16 %v459
    %v1479 = vunpack.c.l.b16 %v460
    %v1480 = vunpack.c.h.b16 %v460
    %v1481 = vunpack.c.l.b16 %v461
    %v1482 = vunpack.c.h.b16 %v461
    %v1483 = vunpack.c.l.b16 %v462
    %v1484 = vunpack.c.h.b16 %v462
    %v1485 = vunpack.c.l.b16 %v463
    %v1486 = vunpack.c.h.b16 %v463
    %v1487 = vunpack.c.l.b16 %v464
    %v1488 = vunpack.c.h.b16 %v464
    %v1489 = vunpack.c.l.b16 %v465
    %v1490 = vunpack.c.h.b16 %v465
    %v1491 = vunpack.c.l.b16 %v466
    %v1492 = vunpack.c.h.b16 %v466
    %v1493 = vunpack.c.l.b16 %v467
    %v1494 = vunpack.c.h.b16 %v467
    %v1495 = vunpack.c.l.b16 %v468
    %v1496 = vunpack.c.h.b16 %v468
    %v1497 = vunpack.c.l.b16 %v469
    %v1498 = vunpack.c.h.b16 %v469
    %v1499 = vunpack.c.l.b16 %v470
    %v1500 = vunpack.c.h.b16 %v470
    %v1501 = vunpack.c.l.b16 %v471
    %v1502 = vunpack.c.h.b16 %v471
    %v1503 = vunpack.c.l.b16 %v472
    %v1504 = vunpack.c.h.b16 %v472
    %v1505 = vpack.c.b16 %v869, %v865
    %v1506 = vpack.c.b16 %v870, %v866
    %v1507 = vpack.c.b16 %v871, %v867
    %v1508 = vpack.c.b16 %v872, %v868
    %v1509 = vpack.c.b16 %v877, %v873
    %v1510 = vpack.c.b16 %v878, %v874
    %v1511 = vpack.c.b16 %v879, %v875
    %v1512 = vpack.c.b16 %v880, %v876
    %v1513 = vpack.c.b16 %v885, %v881
    %v1514 = vpack.c.b16 %v886, %v882
    %v1515 = vpack.c.b16 %v887, %v883
    %v1516 = vpack.c.b16 %v888, %v884
    %v1517 = vpack.c.b16 %v893, %v889
    %v1518 = vpack.c.b16 %v894, %v890
    %v1519 = vpack.c.b16 %v895, %v891
    %v1520 = vpack.c.b16 %v896, %v892
    %v1521 = vpack.c.b16 %v901, %v897
    %v1522 = vpack.c.b16 %v902, %v898
    %v1523 = vpack.c.b16 %v903, %v899
    %v1524 = vpack.c.b16 %v904, %v900
    %v1525 = vpack.c.b16 %v909, %v905
    %v1526 = vpack.c.b16 %v910, %v906
    %v1527 = vpack.c.b16 %v911, %v907
    %v1528 = vpack.c.b16 %v912, %v908
    %v1529 = vpack.c.b16 %v917, %v913
    %v1530 = vpack.c.b16 %v918, %v914
    %v1531 = vpack.c.b16 %v919, %v915
    %v1532 = vpack.c.b16 %v920, %v916
    %v1533 = vpack.c.b16 %v925, %v921
    %v1534 = vpack.c.b16 %v926, %v922
    %v1535 = vpack.c.b16 %v927, %v923
    %v1536 = vpack.c.b16 %v928, %v924
    %v1537 = vpack.c.b16 %v933, %v929
    %v1538 = vpack.c.b16 %v934, %v930
    %v1539 = vpack.c.b16 %v935, %v931
    %v1540 = vpack.c.b16 %v936, %v932
    %v1541 = vpack.c.b16 %v941, %v937
    %v1542 = vpack.c.b16 %v942, %v938
    %v1543 = vpack.c.b16 %v943, %v939
    %v1544 = vpack.c.b16 %v944, %v940
    %v1545 = vpack.c.b16 %v949, %v945
    %v1546 = vpack.c.b16 %v950, %v946
    %v1547 = vpack.c.b16 %v951, %v947
    %v1548 = vpack.c.b16 %v952, %v948
    %v1549 = vpack.c.b16 %v957, %v953
    %v1550 = vpack.c.b16 %v958, %v954
    %v1551 = vpack.c.b16 %v959, %v955
    %v1552 = vpack.c.b16 %v960, %v956
    %v1553 = vpack.c.b16 %v965, %v961
    %v1554 = vpack.c.b16 %v966, %v962
    %v1555 = vpack.c.b16 %v967, %v963
    %v1556 = vpack.c.b16 %v968, %v964
    %v1557 = vpack.c.b16 %v973, %v969
    %v1558 = vpack.c.b16 %v974, %v970
    %v1559 = vpack.c.b16 %v975, %v971
    %v1560 = vpack.c.b16 %v976, %v972
    %v1561 = vpack.c.b16 %v981, %v977
    %v1562 = vpack.c.b16 %v982, %v978
    %v1563 = vpack.c.b16 %v983, %v979
    %v1564 = vpack.c.b16 %v984, %v980
    %v1565 = vpack.c.b16 %v989, %v985
    %v1566 = vpack.c.b16 %v990, %v986
    %v1567 = vpack.c.b16 %v991, %v987
    %v1568 = vpack.c.b16 %v992, %v988
    %v1569 = vpack.c.b16 %v997, %v993
    %v1570 = vpack.c.b16 %v998, %v994
    %v1571 = vpack.c.b16 %v999, %v995
    %v1572 = vpack.c.b16 %v1000, %v996
    %v1573 = vpack.c.b16 %v1005, %v1001
    %v1574 = vpack.c.b16 %v1006, %v1002
    %v1575 = vpack.c.b16 %v1007, %v1003
    %v1576 = vpack.c.b16 %v1008, %v1004
    %v1577 = vpack.c.b16 %v1013, %v1009
    %v1578 = vpack.c.b16 %v1014, %v1010
    %v1579 = vpack.c.b16 %v1015, %v1011
    %v1580 = vpack.c.b16 %v1016, %v1012
    %v1581 = vpack.c.b16 %v1021, %v1017
    %v1582 = vpack.c.b16 %v1022, %v1018
    %v1583 = vpack.c.b16 %v1023, %v1019
    %v1584 = vpack.c.b16 %v1024, %v1020
    %v1585 = vpack.c.b16 %v1029, %v1025
    %v1586 = vpack.c.b16 %v1030, %v1026
    %v1587 = vpack.c.b16 %v1031, %v1027
    %v1588 = vpack.c.b16 %v1032, %v1028
    %v1589 = vpack.c.b16 %v1037, %v1033
    %v1590 = vpack.c.b16 %v1038, %v1034
    %v1591 = vpack.c.b16 %v1039, %v1035
    %v1592 = vpack.c.b16 %v1040, %v1036
    %v1593 = vpack.c.b16 %v1045, %v1041
    %v1594 = vpack.c.b16 %v1046, %v1042
    %v1595 = vpack.c.b16 %v1047, %v1043
    %v1596 = vpack.c.b16 %v1048, %v1044
    %v1597 = vpack.c.b16 %v1053, %v1049
    %v1598 = vpack.c.b16 %v1054, %v1050
    %v1599 = vpack.c.b16 %v1055, %v1051
    %v1600 = vpack.c.b16 %v1056, %v1052
    %v1601 = vpack.c.b16 %v1061, %v1057
    %v1602 = vpack.c.b16 %v1062, %v1058
    %v1603 = vpack.c.b16 %v1063, %v1059
    %v1604 = vpack.c.b16 %v1064, %v1060
    %v1605 = vpack.c.b16 %v1069, %v1065
    %v1606 = vpack.c.b16 %v1070, %v1066
    %v1607 = vpack.c.b16 %v1071, %v1067
    %v1608 = vpack.c.b16 %v1072, %v1068
    %v1609 = vpack.c.b16 %v1077, %v1073
    %v1610 = vpack.c.b16 %v1078, %v1074
    %v1611 = vpack.c.b16 %v1079, %v1075
    %v1612 = vpack.c.b16 %v1080, %v1076
    %v1613 = vpack.c.b16 %v1085, %v1081
    %v1614 = vpack.c.b16 %v1086, %v1082
    %v1615 = vpack.c.b16 %v1087, %v1083
    %v1616 = vpack.c.b16 %v1088, %v1084
    %v1617 = vpack.c.b16 %v1093, %v1089
    %v1618 = vpack.c.b16 %v1094, %v1090
    %v1619 = vpack.c.b16 %v1095, %v1091
    %v1620 = vpack.c.b16 %v1096, %v1092
    %v1621 = vpack.c.b16 %v1101, %v1097
    %v1622 = vpack.c.b16 %v1102, %v1098
    %v1623 = vpack.c.b16 %v1103, %v1099
    %v1624 = vpack.c.b16 %v1104, %v1100
    %v1625 = vpack.c.b16 %v1109, %v1105
    %v1626 = vpack.c.b16 %v1110, %v1106
    %v1627 = vpack.c.b16 %v1111, %v1107
    %v1628 = vpack.c.b16 %v1112, %v1108
    %v1629 = vpack.c.b16 %v1117, %v1113
    %v1630 = vpack.c.b16 %v1118, %v1114
    %v1631 = vpack.c.b16 %v1119, %v1115
    %v1632 = vpack.c.b16 %v1120, %v1116
    %v1633 = vpack.c.b16 %v1125, %v1121
    %v1634 = vpack.c.b16 %v1126, %v1122
    %v1635 = vpack.c.b16 %v1127, %v1123
    %v1636 = vpack.c.b16 %v1128, %v1124
    %v1637 = vpack.c.b16 %v1133, %v1129
    %v1638 = vpack.c.b16 %v1134, %v1130
    %v1639 = vpack.c.b16 %v1135, %v1131
    %v1640 = vpack.c.b16 %v1136, %v1132
    %v1641 = vpack.c.b16 %v1141, %v1137
    %v1642 = vpack.c.b16 %v1142, %v1138
    %v1643 = vpack.c.b16 %v1143, %v1139
    %v1644 = vpack.c.b16 %v1144, %v1140
    %v1645 = vpack.c.b16 %v1149, %v1145
    %v1646 = vpack.c.b16 %v1150, %v1146
    %v1647 = vpack.c.b16 %v1151, %v1147
    %v1648 = vpack.c.b16 %v1152, %v1148
    %v1649 = vpack.c.b16 %v1157, %v1153
    %v1650 = vpack.c.b16 %v1158, %v1154
    %v1651 = vpack.c.b16 %v1159, %v1155
    %v1652 = vpack.c.b16 %v1160, %v1156
    %v1653 = vpack.c.b16 %v1165, %v1161
    %v1654 = vpack.c.b16 %v1166, %v1162
    %v1655 = vpack.c.b16 %v1167, %v1163
    %v1656 = vpack.c.b16 %v1168, %v1164
    %v1657 = vpack.c.b16 %v1173, %v1169
    %v1658 = vpack.c.b16 %v1174, %v1170
    %v1659 = vpack.c.b16 %v1175, %v1171
    %v1660 = vpack.c.b16 %v1176, %v1172
    %v1661 = vpack.c.b16 %v1181, %v1177
    %v1662 = vpack.c.b16 %v1182, %v1178
    %v1663 = vpack.c.b16 %v1183, %v1179
    %v1664 = vpack.c.b16 %v1184, %v1180
    %v1665 = vpack.c.b16 %v1189, %v1185
    %v1666 = vpack.c.b16 %v1190, %v1186
    %v1667 = vpack.c.b16 %v1191, %v1187
    %v1668 = vpack.c.b16 %v1192, %v1188
    %v1669 = vpack.c.b16 %v1197, %v1193
    %v1670 = vpack.c.b16 %v1198, %v1194
    %v1671 = vpack.c.b16 %v1199, %v1195
    %v1672 = vpack.c.b16 %v1200, %v1196
    %v1673 = vpack.c.b16 %v1205, %v1201
    %v1674 = vpack.c.b16 %v1206, %v1202
    %v1675 = vpack.c.b16 %v1207, %v1203
    %v1676 = vpack.c.b16 %v1208, %v1204
    %v1677 = vpack.c.b16 %v1213, %v1209
    %v1678 = vpack.c.b16 %v1214, %v1210
    %v1679 = vpack.c.b16 %v1215, %v1211
    %v1680 = vpack.c.b16 %v1216, %v1212
    %v1681 = vpack.c.b16 %v1221, %v1217
    %v1682 = vpack.c.b16 %v1222, %v1218
    %v1683 = vpack.c.b16 %v1223, %v1219
    %v1684 = vpack.c.b16 %v1224, %v1220
    %v1685 = vpack.c.b16 %v1229, %v1225
    %v1686 = vpack.c.b16 %v1230, %v1226
    %v1687 = vpack.c.b16 %v1231, %v1227
    %v1688 = vpack.c.b16 %v1232, %v1228
    %v1689 = vpack.c.b16 %v1237, %v1233
    %v1690 = vpack.c.b16 %v1238, %v1234
    %v1691 = vpack.c.b16 %v1239, %v1235
    %v1692 = vpack.c.b16 %v1240, %v1236
    %v1693 = vpack.c.b16 %v1245, %v1241
    %v1694 = vpack.c.b16 %v1246, %v1242
    %v1695 = vpack.c.b16 %v1247, %v1243
    %v1696 = vpack.c.b16 %v1248, %v1244
    %v1697 = vpack.c.b16 %v1253, %v1249
    %v1698 = vpack.c.b16 %v1254, %v1250
    %v1699 = vpack.c.b16 %v1255, %v1251
    %v1700 = vpack.c.b16 %v1256, %v1252
    %v1701 = vpack.c.b16 %v1261, %v1257
    %v1702 = vpack.c.b16 %v1262, %v1258
    %v1703 = vpack.c.b16 %v1263, %v1259
    %v1704 = vpack.c.b16 %v1264, %v1260
    %v1705 = vpack.c.b16 %v1269, %v1265
    %v1706 = vpack.c.b16 %v1270, %v1266
    %v1707 = vpack.c.b16 %v1271, %v1267
    %v1708 = vpack.c.b16 %v1272, %v1268
    %v1709 = vpack.c.b16 %v1277, %v1273
    %v1710 = vpack.c.b16 %v1278, %v1274
    %v1711 = vpack.c.b16 %v1279, %v1275
    %v1712 = vpack.c.b16 %v1280, %v1276
    %v1713 = vpack.c.b16 %v1285, %v1281
    %v1714 = vpack.c.b16 %v1286, %v1282
    %v1715 = vpack.c.b16 %v1287, %v1283
    %v1716 = vpack.c.b16 %v1288, %v1284
    %v1717 = vpack.c.b16 %v1293, %v1289
    %v1718 = vpack.c.b16 %v1294, %v1290
    %v1719 = vpack.c.b16 %v1295, %v1291
    %v1720 = vpack.c.b16 %v1296, %v1292
    %v1721 = vpack.c.b16 %v1301, %v1297
    %v1722 = vpack.c.b16 %v1302, %v1298
    %v1723 = vpack.c.b16 %v1303, %v1299
    %v1724 = vpack.c.b16 %v1304, %v1300
    %v1725 = vpack.c.b16 %v1309, %v1305
    %v1726 = vpack.c.b16 %v1310, %v1306
    %v1727 = vpack.c.b16 %v1311, %v1307
    %v1728 = vpack.c.b16 %v1312, %v1308
    %v1729 = vpack.c.b16 %v1317, %v1313
    %v1730 = vpack.c.b16 %v1318, %v1314
    %v1731 = vpack.c.b16 %v1319, %v1315
    %v1732 = vpack.c.b16 %v1320, %v1316
    %v1733 = vpack.c.b16 %v1325, %v1321
    %v1734 = vpack.c.b16 %v1326, %v1322
    %v1735 = vpack.c.b16 %v1327, %v1323
    %v1736 = vpack.c.b16 %v1328, %v1324
    %v1737 = vpack.c.b16 %v1333, %v1329
    %v1738 = vpack.c.b16 %v1334, %v1330
    %v1739 = vpack.c.b16 %v1335, %v1331
    %v1740 = vpack.c.b16 %v1336, %v1332
    %v1741 = vpack.c.b16 %v1341, %v1337
    %v1742 = vpack.c.b16 %v1342, %v1338
    %v1743 = vpack.c.b16 %v1343, %v1339
    %v1744 = vpack.c.b16 %v1344, %v1340
    %v1745 = vpack.c.b16 %v1349, %v1345
    %v1746 = vpack.c.b16 %v1350, %v1346
    %v1747 = vpack.c.b16 %v1351, %v1347
    %v1748 = vpack.c.b16 %v1352, %v1348
    %v1749 = vpack.c.b16 %v1357, %v1353
    %v1750 = vpack.c.b16 %v1358, %v1354
    %v1751 = vpack.c.b16 %v1359, %v1355
    %v1752 = vpack.c.b16 %v1360, %v1356
    %v1753 = vpack.c.b16 %v1365, %v1361
    %v1754 = vpack.c.b16 %v1366, %v1362
    %v1755 = vpack.c.b16 %v1367, %v1363
    %v1756 = vpack.c.b16 %v1368, %v1364
    %v1757 = vpack.c.b16 %v1373, %v1369
    %v1758 = vpack.c.b16 %v1374, %v1370
    %v1759 = vpack.c.b16 %v1375, %v1371
    %v1760 = vpack.c.b16 %v1376, %v1372
    %v1761 = vpack.c.b16 %v1381, %v1377
    %v1762 = vpack.c.b16 %v1382, %v1378
    %v1763 = vpack.c.b16 %v1383, %v1379
    %v1764 = vpack.c.b16 %v1384, %v1380
    %v1765 = vpack.c.b16 %v1389, %v1385
    %v1766 = vpack.c.b16 %v1390, %v1386
    %v1767 = vpack.c.b16 %v1391, %v1387
    %v1768 = vpack.c.b16 %v1392, %v1388
    %v1769 = vpack.c.b16 %v1397, %v1393
    %v1770 = vpack.c.b16 %v1398, %v1394
    %v1771 = vpack.c.b16 %v1399, %v1395
    %v1772 = vpack.c.b16 %v1400, %v1396
    %v1773 = vpack.c.b16 %v1405, %v1401
    %v1774 = vpack.c.b16 %v1406, %v1402
    %v1775 = vpack.c.b16 %v1407, %v1403
    %v1776 = vpack.c.b16 %v1408, %v1404
    %v1777 = vpack.c.b16 %v1413, %v1409
    %v1778 = vpack.c.b16 %v1414, %v1410
    %v1779 = vpack.c.b16 %v1415, %v1411
    %v1780 = vpack.c.b16 %v1416, %v1412
    %v1781 = vpack.c.b16 %v1421, %v1417
    %v1782 = vpack.c.b16 %v1422, %v1418
    %v1783 = vpack.c.b16 %v1423, %v1419
    %v1784 = vpack.c.b16 %v1424, %v1420
    %v1785 = vpack.c.b16 %v1429, %v1425
    %v1786 = vpack.c.b16 %v1430, %v1426
    %v1787 = vpack.c.b16 %v1431, %v1427
    %v1788 = vpack.c.b16 %v1432, %v1428
    %v1789 = vpack.c.b16 %v1437, %v1433
    %v1790 = vpack.c.b16 %v1438, %v1434
    %v1791 = vpack.c.b16 %v1439, %v1435
    %v1792 = vpack.c.b16 %v1440, %v1436
    %v1793 = vpack.c.b16 %v1445, %v1441
    %v1794 = vpack.c.b16 %v1446, %v1442
    %v1795 = vpack.c.b16 %v1447, %v1443
    %v1796 = vpack.c.b16 %v1448, %v1444
    %v1797 = vpack.c.b16 %v1453, %v1449
    %v1798 = vpack.c.b16 %v1454, %v1450
    %v1799 = vpack.c.b16 %v1455, %v1451
    %v1800 = vpack.c.b16 %v1456, %v1452
    %v1801 = vpack.c.b16 %v1461, %v1457
    %v1802 = vpack.c.b16 %v1462, %v1458
    %v1803 = vpack.c.b16 %v1463, %v1459
    %v1804 = vpack.c.b16 %v1464, %v1460
    %v1805 = vpack.c.b16 %v1469, %v1465
    %v1806 = vpack.c.b16 %v1470, %v1466
    %v1807 = vpack.c.b16 %v1471, %v1467
    %v1808 = vpack.c.b16 %v1472, %v1468
    %v1809 = vpack.c.b16 %v1477, %v1473
    %v1810 = vpack.c.b16 %v1478, %v1474
    %v1811 = vpack.c.b16 %v1479, %v1475
    %v1812 = vpack.c.b16 %v1480, %v1476
    %v1813 = vpack.c.b16 %v1485, %v1481
    %v1814 = vpack.c.b16 %v1486, %v1482
    %v1815 = vpack.c.b16 %v1487, %v1483
    %v1816 = vpack.c.b16 %v1488, %v1484
    %v1817 = vpack.c.b16 %v1493, %v1489
    %v1818 = vpack.c.b16 %v1494, %v1490
    %v1819 = vpack.c.b16 %v1495, %v1491
    %v1820 = vpack.c.b16 %v1496, %v1492
    %v1821 = vpack.c.b16 %v1501, %v1497
    %v1822 = vpack.c.b16 %v1502, %v1498
    %v1823 = vpack.c.b16 %v1503, %v1499
    %v1824 = vpack.c.b16 %v1504, %v1500
    %2145 = vmatprep.subr.bf16.mxu0 %v1506
    %2146 = vmatpush1.bf16.msra.mxu0 %v1505
    %2147 = vmatprep.subr.bf16.mxu0 %v1510
    %2148 = vmatpush1.bf16.msra.mxu0 %v1509
    %2149 = vmatprep.subr.bf16.mxu0 %v1514
    %2150 = vmatpush1.bf16.msra.mxu0 %v1513
    %2151 = vmatprep.subr.bf16.mxu0 %v1518
    %2152 = vmatpush1.bf16.msra.mxu0 %v1517
    %2153 = vmatprep.subr.bf16.mxu0 %v1522
    %2154 = vmatpush1.bf16.msra.mxu0 %v1521
    %2155 = vmatprep.subr.bf16.mxu0 %v1526
    %2156 = vmatpush1.bf16.msra.mxu0 %v1525
    %2157 = vmatprep.subr.bf16.mxu0 %v1530
    %2158 = vmatpush1.bf16.msra.mxu0 %v1529
    %2159 = vmatprep.subr.bf16.mxu0 %v1534
    %2160 = vmatpush1.bf16.msra.mxu0 %v1533
    %2161 = vmatprep.subr.bf16.mxu0 %v1538
    %2162 = vmatpush1.bf16.msra.mxu0 %v1537
    %2163 = vmatprep.subr.bf16.mxu0 %v1542
    %2164 = vmatpush1.bf16.msra.mxu0 %v1541
    %2165 = vmatprep.subr.bf16.mxu0 %v1546
    %2166 = vmatpush1.bf16.msra.mxu0 %v1545
    %2167 = vmatprep.subr.bf16.mxu0 %v1550
    %2168 = vmatpush1.bf16.msra.mxu0 %v1549
    %2169 = vmatprep.subr.bf16.mxu0 %v1554
    %2170 = vmatpush1.bf16.msra.mxu0 %v1553
    %2171 = vmatprep.subr.bf16.mxu0 %v1558
    %2172 = vmatpush1.bf16.msra.mxu0 %v1557
    %2173 = vmatprep.subr.bf16.mxu0 %v1562
    %2174 = vmatpush1.bf16.msra.mxu0 %v1561
    %2175 = vmatprep.subr.bf16.mxu0 %v1566
    %2176 = vmatpush1.bf16.msra.mxu0 %v1565
    %2177 = vmatprep.mubr.bf16.mxu0 %v526
    %2178 = vmatmul.mubr.bf16.gmra.mrb[0].mxu0 %v525
    %v2179 = vpop.f32.mrb[0].mxu0
    %v2180 = vadd.f32 %v478, %v2179
    %v2181 = vpop.f32.mrb[0].mxu0
    %v2182 = vadd.f32 %v482, %v2181
    %v2183 = vpop.f32.mrb[0].mxu0
    %v2184 = vadd.f32 %v478, %v2183
    %v2185 = vpop.f32.mrb[0].mxu0
    %v2186 = vadd.f32 %v482, %v2185
    %2187 = vdwg.mxu0
    %2188 = vmatprep.subr.bf16.mxu0 %v1570
    %2189 = vmatpush1.bf16.msra.mxu0 %v1569
    %2190 = vmatprep.subr.bf16.mxu0 %v1574
    %2191 = vmatpush1.bf16.msra.mxu0 %v1573
    %2192 = vmatprep.subr.bf16.mxu0 %v1578
    %2193 = vmatpush1.bf16.msra.mxu0 %v1577
    %2194 = vmatprep.subr.bf16.mxu0 %v1582
    %2195 = vmatpush1.bf16.msra.mxu0 %v1581
    %2196 = vmatprep.subr.bf16.mxu0 %v1586
    %2197 = vmatpush1.bf16.msra.mxu0 %v1585
    %2198 = vmatprep.subr.bf16.mxu0 %v1590
    %2199 = vmatpush1.bf16.msra.mxu0 %v1589
    %2200 = vmatprep.subr.bf16.mxu0 %v1594
    %2201 = vmatpush1.bf16.msra.mxu0 %v1593
    %2202 = vmatprep.subr.bf16.mxu0 %v1598
    %2203 = vmatpush1.bf16.msra.mxu0 %v1597
    %2204 = vmatprep.subr.bf16.mxu0 %v1602
    %2205 = vmatpush1.bf16.msra.mxu0 %v1601
    %2206 = vmatprep.subr.bf16.mxu0 %v1606
    %2207 = vmatpush1.bf16.msra.mxu0 %v1605
    %2208 = vmatprep.subr.bf16.mxu0 %v1610
    %2209 = vmatpush1.bf16.msra.mxu0 %v1609
    %2210 = vmatprep.subr.bf16.mxu0 %v1614
    %2211 = vmatpush1.bf16.msra.mxu0 %v1613
    %2212 = vmatprep.subr.bf16.mxu0 %v1618
    %2213 = vmatpush1.bf16.msra.mxu0 %v1617
    %2214 = vmatprep.subr.bf16.mxu0 %v1622
    %2215 = vmatpush1.bf16.msra.mxu0 %v1621
    %2216 = vmatprep.subr.bf16.mxu0 %v1626
    %2217 = vmatpush1.bf16.msra.mxu0 %v1625
    %2218 = vmatprep.subr.bf16.mxu0 %v1630
    %2219 = vmatpush1.bf16.msra.mxu0 %v1629
    %2220 = vmatprep.mubr.bf16.mxu0 %v528
    %2221 = vmatmul.mubr.bf16.gmra.mrb[0].mxu0 %v527
    %v2222 = vpop.f32.mrb[0].mxu0
    %v2223 = vadd.f32 %v2180, %v2222
    %v2224 = vpop.f32.mrb[0].mxu0
    %v2225 = vadd.f32 %v2182, %v2224
    %v2226 = vpop.f32.mrb[0].mxu0
    %v2227 = vadd.f32 %v2184, %v2226
    %v2228 = vpop.f32.mrb[0].mxu0
    %v2229 = vadd.f32 %v2186, %v2228
    %2230 = vdwg.mxu0
    %2231 = vmatprep.subr.bf16.mxu0 %v1634
    %2232 = vmatpush1.bf16.msra.mxu0 %v1633
    %2233 = vmatprep.subr.bf16.mxu0 %v1638
    %2234 = vmatpush1.bf16.msra.mxu0 %v1637
    %2235 = vmatprep.subr.bf16.mxu0 %v1642
    %2236 = vmatpush1.bf16.msra.mxu0 %v1641
    %2237 = vmatprep.subr.bf16.mxu0 %v1646
    %2238 = vmatpush1.bf16.msra.mxu0 %v1645
    %2239 = vmatprep.subr.bf16.mxu0 %v1650
    %2240 = vmatpush1.bf16.msra.mxu0 %v1649
    %2241 = vmatprep.subr.bf16.mxu0 %v1654
    %2242 = vmatpush1.bf16.msra.mxu0 %v1653
    %2243 = vmatprep.subr.bf16.mxu0 %v1658
    %2244 = vmatpush1.bf16.msra.mxu0 %v1657
    %2245 = vmatprep.subr.bf16.mxu0 %v1662
    %2246 = vmatpush1.bf16.msra.mxu0 %v1661
    %2247 = vmatprep.subr.bf16.mxu0 %v1666
    %2248 = vmatpush1.bf16.msra.mxu0 %v1665
    %2249 = vmatprep.subr.bf16.mxu0 %v1670
    %2250 = vmatpush1.bf16.msra.mxu0 %v1669
    %2251 = vmatprep.subr.bf16.mxu0 %v1674
    %2252 = vmatpush1.bf16.msra.mxu0 %v1673
    %2253 = vmatprep.subr.bf16.mxu0 %v1678
    %2254 = vmatpush1.bf16.msra.mxu0 %v1677
    %2255 = vmatprep.subr.bf16.mxu0 %v1682
    %2256 = vmatpush1.bf16.msra.mxu0 %v1681
    %2257 = vmatprep.subr.bf16.mxu0 %v1686
    %2258 = vmatpush1.bf16.msra.mxu0 %v1685
    %2259 = vmatprep.subr.bf16.mxu0 %v1690
    %2260 = vmatpush1.bf16.msra.mxu0 %v1689
    %2261 = vmatprep.subr.bf16.mxu0 %v1694
    %2262 = vmatpush1.bf16.msra.mxu0 %v1693
    %2263 = vmatprep.mubr.bf16.mxu0 %v530
    %2264 = vmatmul.mubr.bf16.gmra.mrb[0].mxu0 %v529
    %v2265 = vpop.f32.mrb[0].mxu0
    %v2266 = vadd.f32 %v2223, %v2265
    %v2267 = vpop.f32.mrb[0].mxu0
    %v2268 = vadd.f32 %v2225, %v2267
    %v2269 = vpop.f32.mrb[0].mxu0
    %v2270 = vadd.f32 %v2227, %v2269
    %v2271 = vpop.f32.mrb[0].mxu0
    %v2272 = vadd.f32 %v2229, %v2271
    %2273 = vdwg.mxu0
    %2274 = vmatprep.subr.bf16.mxu0 %v1698
    %2275 = vmatpush1.bf16.msra.mxu0 %v1697
    %2276 = vmatprep.subr.bf16.mxu0 %v1702
    %2277 = vmatpush1.bf16.msra.mxu0 %v1701
    %2278 = vmatprep.subr.bf16.mxu0 %v1706
    %2279 = vmatpush1.bf16.msra.mxu0 %v1705
    %2280 = vmatprep.subr.bf16.mxu0 %v1710
    %2281 = vmatpush1.bf16.msra.mxu0 %v1709
    %2282 = vmatprep.subr.bf16.mxu0 %v1714
    %2283 = vmatpush1.bf16.msra.mxu0 %v1713
    %2284 = vmatprep.subr.bf16.mxu0 %v1718
    %2285 = vmatpush1.bf16.msra.mxu0 %v1717
    %2286 = vmatprep.subr.bf16.mxu0 %v1722
    %2287 = vmatpush1.bf16.msra.mxu0 %v1721
    %2288 = vmatprep.subr.bf16.mxu0 %v1726
    %2289 = vmatpush1.bf16.msra.mxu0 %v1725
    %2290 = vmatprep.subr.bf16.mxu0 %v1730
    %2291 = vmatpush1.bf16.msra.mxu0 %v1729
    %2292 = vmatprep.subr.bf16.mxu0 %v1734
    %2293 = vmatpush1.bf16.msra.mxu0 %v1733
    %2294 = vmatprep.subr.bf16.mxu0 %v1738
    %2295 = vmatpush1.bf16.msra.mxu0 %v1737
    %2296 = vmatprep.subr.bf16.mxu0 %v1742
    %2297 = vmatpush1.bf16.msra.mxu0 %v1741
    %2298 = vmatprep.subr.bf16.mxu0 %v1746
    %2299 = vmatpush1.bf16.msra.mxu0 %v1745
    %2300 = vmatprep.subr.bf16.mxu0 %v1750
    %2301 = vmatpush1.bf16.msra.mxu0 %v1749
    %2302 = vmatprep.subr.bf16.mxu0 %v1754
    %2303 = vmatpush1.bf16.msra.mxu0 %v1753
    %2304 = vmatprep.subr.bf16.mxu0 %v1758
    %2305 = vmatpush1.bf16.msra.mxu0 %v1757
    %2306 = vmatprep.mubr.bf16.mxu0 %v532
    %2307 = vmatmul.mubr.bf16.gmra.mrb[0].mxu0 %v531
    %v2308 = vpop.f32.mrb[0].mxu0
    %v2309 = vadd.f32 %v2266, %v2308
    %v2310 = vpop.f32.mrb[0].mxu0
    %v2311 = vadd.f32 %v2268, %v2310
    %v2312 = vpop.f32.mrb[0].mxu0
    %v2313 = vadd.f32 %v2270, %v2312
    %v2314 = vpop.f32.mrb[0].mxu0
    %v2315 = vadd.f32 %v2272, %v2314
    %2316 = vdwg.mxu0
    %2317 = vmatprep.subr.bf16.mxu0 %v1762
    %2318 = vmatpush1.bf16.msra.mxu0 %v1761
    %2319 = vmatprep.subr.bf16.mxu0 %v1766
    %2320 = vmatpush1.bf16.msra.mxu0 %v1765
    %2321 = vmatprep.subr.bf16.mxu0 %v1770
    %2322 = vmatpush1.bf16.msra.mxu0 %v1769
    %2323 = vmatprep.subr.bf16.mxu0 %v1774
    %2324 = vmatpush1.bf16.msra.mxu0 %v1773
    %2325 = vmatprep.subr.bf16.mxu0 %v1778
    %2326 = vmatpush1.bf16.msra.mxu0 %v1777
    %2327 = vmatprep.subr.bf16.mxu0 %v1782
    %2328 = vmatpush1.bf16.msra.mxu0 %v1781
    %2329 = vmatprep.subr.bf16.mxu0 %v1786
    %2330 = vmatpush1.bf16.msra.mxu0 %v1785
    %2331 = vmatprep.subr.bf16.mxu0 %v1790
    %2332 = vmatpush1.bf16.msra.mxu0 %v1789
    %2333 = vmatprep.subr.bf16.mxu0 %v1794
    %2334 = vmatpush1.bf16.msra.mxu0 %v1793
    %2335 = vmatprep.subr.bf16.mxu0 %v1798
    %2336 = vmatpush1.bf16.msra.mxu0 %v1797
    %2337 = vmatprep.subr.bf16.mxu0 %v1802
    %2338 = vmatpush1.bf16.msra.mxu0 %v1801
    %2339 = vmatprep.subr.bf16.mxu0 %v1806
    %2340 = vmatpush1.bf16.msra.mxu0 %v1805
    %2341 = vmatprep.subr.bf16.mxu0 %v1810
    %2342 = vmatpush1.bf16.msra.mxu0 %v1809
    %2343 = vmatprep.subr.bf16.mxu0 %v1814
    %2344 = vmatpush1.bf16.msra.mxu0 %v1813
    %2345 = vmatprep.subr.bf16.mxu0 %v1818
    %2346 = vmatpush1.bf16.msra.mxu0 %v1817
    %2347 = vmatprep.subr.bf16.mxu0 %v1822
    %2348 = vmatpush1.bf16.msra.mxu0 %v1821
    %2349 = vmatprep.mubr.bf16.mxu0 %v534
    %2350 = vmatmul.mubr.bf16.gmra.mrb[0].mxu0 %v533
    %v2351 = vpop.f32.mrb[0].mxu0
    %v2352 = vadd.f32 %v2309, %v2351
    %v2353 = vpop.f32.mrb[0].mxu0
    %v2354 = vadd.f32 %v2311, %v2353
    %v2355 = vpop.f32.mrb[0].mxu0
    %v2356 = vadd.f32 %v2313, %v2355
    %v2357 = vpop.f32.mrb[0].mxu0
    %v2358 = vadd.f32 %v2315, %v2357
    %2359 = vdwg.mxu0
    %2360 = vmatprep.subr.bf16.mxu0 %v1508
    %2361 = vmatpush1.bf16.msra.mxu0 %v1507
    %2362 = vmatprep.subr.bf16.mxu0 %v1512
    %2363 = vmatpush1.bf16.msra.mxu0 %v1511
    %2364 = vmatprep.subr.bf16.mxu0 %v1516
    %2365 = vmatpush1.bf16.msra.mxu0 %v1515
    %2366 = vmatprep.subr.bf16.mxu0 %v1520
    %2367 = vmatpush1.bf16.msra.mxu0 %v1519
    %2368 = vmatprep.subr.bf16.mxu0 %v1524
    %2369 = vmatpush1.bf16.msra.mxu0 %v1523
    %2370 = vmatprep.subr.bf16.mxu0 %v1528
    %2371 = vmatpush1.bf16.msra.mxu0 %v1527
    %2372 = vmatprep.subr.bf16.mxu0 %v1532
    %2373 = vmatpush1.bf16.msra.mxu0 %v1531
    %2374 = vmatprep.subr.bf16.mxu0 %v1536
    %2375 = vmatpush1.bf16.msra.mxu0 %v1535
    %2376 = vmatprep.subr.bf16.mxu0 %v1540
    %2377 = vmatpush1.bf16.msra.mxu0 %v1539
    %2378 = vmatprep.subr.bf16.mxu0 %v1544
    %2379 = vmatpush1.bf16.msra.mxu0 %v1543
    %2380 = vmatprep.subr.bf16.mxu0 %v1548
    %2381 = vmatpush1.bf16.msra.mxu0 %v1547
    %2382 = vmatprep.subr.bf16.mxu0 %v1552
    %2383 = vmatpush1.bf16.msra.mxu0 %v1551
    %2384 = vmatprep.subr.bf16.mxu0 %v1556
    %2385 = vmatpush1.bf16.msra.mxu0 %v1555
    %2386 = vmatprep.subr.bf16.mxu0 %v1560
    %2387 = vmatpush1.bf16.msra.mxu0 %v1559
    %2388 = vmatprep.subr.bf16.mxu0 %v1564
    %2389 = vmatpush1.bf16.msra.mxu0 %v1563
    %2390 = vmatprep.subr.bf16.mxu0 %v1568
    %2391 = vmatpush1.bf16.msra.mxu0 %v1567
    %2392 = vmatprep.mubr.bf16.mxu0 %v526
    %2393 = vmatmul.mubr.bf16.gmra.mrb[0].mxu0 %v525
    %v2394 = vpop.f32.mrb[0].mxu0
    %v2395 = vadd.f32 %v486, %v2394
    %v2396 = vpop.f32.mrb[0].mxu0
    %v2397 = vadd.f32 %v490, %v2396
    %v2398 = vpop.f32.mrb[0].mxu0
    %v2399 = vadd.f32 %v486, %v2398
    %v2400 = vpop.f32.mrb[0].mxu0
    %v2401 = vadd.f32 %v490, %v2400
    %2402 = vdwg.mxu0
    %2403 = vmatprep.subr.bf16.mxu0 %v1572
    %2404 = vmatpush1.bf16.msra.mxu0 %v1571
    %2405 = vmatprep.subr.bf16.mxu0 %v1576
    %2406 = vmatpush1.bf16.msra.mxu0 %v1575
    %2407 = vmatprep.subr.bf16.mxu0 %v1580
    %2408 = vmatpush1.bf16.msra.mxu0 %v1579
    %2409 = vmatprep.subr.bf16.mxu0 %v1584
    %2410 = vmatpush1.bf16.msra.mxu0 %v1583
    %2411 = vmatprep.subr.bf16.mxu0 %v1588
    %2412 = vmatpush1.bf16.msra.mxu0 %v1587
    %2413 = vmatprep.subr.bf16.mxu0 %v1592
    %2414 = vmatpush1.bf16.msra.mxu0 %v1591
    %2415 = vmatprep.subr.bf16.mxu0 %v1596
    %2416 = vmatpush1.bf16.msra.mxu0 %v1595
    %2417 = vmatprep.subr.bf16.mxu0 %v1600
    %2418 = vmatpush1.bf16.msra.mxu0 %v1599
    %2419 = vmatprep.subr.bf16.mxu0 %v1604
    %2420 = vmatpush1.bf16.msra.mxu0 %v1603
    %2421 = vmatprep.subr.bf16.mxu0 %v1608
    %2422 = vmatpush1.bf16.msra.mxu0 %v1607
    %2423 = vmatprep.subr.bf16.mxu0 %v1612
    %2424 = vmatpush1.bf16.msra.mxu0 %v1611
    %2425 = vmatprep.subr.bf16.mxu0 %v1616
    %2426 = vmatpush1.bf16.msra.mxu0 %v1615
    %2427 = vmatprep.subr.bf16.mxu0 %v1620
    %2428 = vmatpush1.bf16.msra.mxu0 %v1619
    %2429 = vmatprep.subr.bf16.mxu0 %v1624
    %2430 = vmatpush1.bf16.msra.mxu0 %v1623
    %2431 = vmatprep.subr.bf16.mxu0 %v1628
    %2432 = vmatpush1.bf16.msra.mxu0 %v1627
    %2433 = vmatprep.subr.bf16.mxu0 %v1632
    %2434 = vmatpush1.bf16.msra.mxu0 %v1631
    %2435 = vmatprep.mubr.bf16.mxu0 %v528
    %2436 = vmatmul.mubr.bf16.gmra.mrb[0].mxu0 %v527
    %v2437 = vpop.f32.mrb[0].mxu0
    %v2438 = vadd.f32 %v2395, %v2437
    %v2439 = vpop.f32.mrb[0].mxu0
    %v2440 = vadd.f32 %v2397, %v2439
    %v2441 = vpop.f32.mrb[0].mxu0
    %v2442 = vadd.f32 %v2399, %v2441
    %v2443 = vpop.f32.mrb[0].mxu0
    %v2444 = vadd.f32 %v2401, %v2443
    %2445 = vdwg.mxu0
    %2446 = vmatprep.subr.bf16.mxu0 %v1636
    %2447 = vmatpush1.bf16.msra.mxu0 %v1635
    %2448 = vmatprep.subr.bf16.mxu0 %v1640
    %2449 = vmatpush1.bf16.msra.mxu0 %v1639
    %2450 = vmatprep.subr.bf16.mxu0 %v1644
    %2451 = vmatpush1.bf16.msra.mxu0 %v1643
    %2452 = vmatprep.subr.bf16.mxu0 %v1648
    %2453 = vmatpush1.bf16.msra.mxu0 %v1647
    %2454 = vmatprep.subr.bf16.mxu0 %v1652
    %2455 = vmatpush1.bf16.msra.mxu0 %v1651
    %2456 = vmatprep.subr.bf16.mxu0 %v1656
    %2457 = vmatpush1.bf16.msra.mxu0 %v1655
    %2458 = vmatprep.subr.bf16.mxu0 %v1660
    %2459 = vmatpush1.bf16.msra.mxu0 %v1659
    %2460 = vmatprep.subr.bf16.mxu0 %v1664
    %2461 = vmatpush1.bf16.msra.mxu0 %v1663
    %2462 = vmatprep.subr.bf16.mxu0 %v1668
    %2463 = vmatpush1.bf16.msra.mxu0 %v1667
    %2464 = vmatprep.subr.bf16.mxu0 %v1672
    %2465 = vmatpush1.bf16.msra.mxu0 %v1671
    %2466 = vmatprep.subr.bf16.mxu0 %v1676
    %2467 = vmatpush1.bf16.msra.mxu0 %v1675
    %2468 = vmatprep.subr.bf16.mxu0 %v1680
    %2469 = vmatpush1.bf16.msra.mxu0 %v1679
    %2470 = vmatprep.subr.bf16.mxu0 %v1684
    %2471 = vmatpush1.bf16.msra.mxu0 %v1683
    %2472 = vmatprep.subr.bf16.mxu0 %v1688
    %2473 = vmatpush1.bf16.msra.mxu0 %v1687
    %2474 = vmatprep.subr.bf16.mxu0 %v1692
    %2475 = vmatpush1.bf16.msra.mxu0 %v1691
    %2476 = vmatprep.subr.bf16.mxu0 %v1696
    %2477 = vmatpush1.bf16.msra.mxu0 %v1695
    %2478 = vmatprep.mubr.bf16.mxu0 %v530
    %2479 = vmatmul.mubr.bf16.gmra.mrb[0].mxu0 %v529
    %v2480 = vpop.f32.mrb[0].mxu0
    %v2481 = vadd.f32 %v2438, %v2480
    %v2482 = vpop.f32.mrb[0].mxu0
    %v2483 = vadd.f32 %v2440, %v2482
    %v2484 = vpop.f32.mrb[0].mxu0
    %v2485 = vadd.f32 %v2442, %v2484
    %v2486 = vpop.f32.mrb[0].mxu0
    %v2487 = vadd.f32 %v2444, %v2486
    %2488 = vdwg.mxu0
    %2489 = vmatprep.subr.bf16.mxu0 %v1700
    %2490 = vmatpush1.bf16.msra.mxu0 %v1699
    %2491 = vmatprep.subr.bf16.mxu0 %v1704
    %2492 = vmatpush1.bf16.msra.mxu0 %v1703
    %2493 = vmatprep.subr.bf16.mxu0 %v1708
    %2494 = vmatpush1.bf16.msra.mxu0 %v1707
    %2495 = vmatprep.subr.bf16.mxu0 %v1712
    %2496 = vmatpush1.bf16.msra.mxu0 %v1711
    %2497 = vmatprep.subr.bf16.mxu0 %v1716
    %2498 = vmatpush1.bf16.msra.mxu0 %v1715
    %2499 = vmatprep.subr.bf16.mxu0 %v1720
    %2500 = vmatpush1.bf16.msra.mxu0 %v1719
    %2501 = vmatprep.subr.bf16.mxu0 %v1724
    %2502 = vmatpush1.bf16.msra.mxu0 %v1723
    %2503 = vmatprep.subr.bf16.mxu0 %v1728
    %2504 = vmatpush1.bf16.msra.mxu0 %v1727
    %2505 = vmatprep.subr.bf16.mxu0 %v1732
    %2506 = vmatpush1.bf16.msra.mxu0 %v1731
    %2507 = vmatprep.subr.bf16.mxu0 %v1736
    %2508 = vmatpush1.bf16.msra.mxu0 %v1735
    %2509 = vmatprep.subr.bf16.mxu0 %v1740
    %2510 = vmatpush1.bf16.msra.mxu0 %v1739
    %2511 = vmatprep.subr.bf16.mxu0 %v1744
    %2512 = vmatpush1.bf16.msra.mxu0 %v1743
    %2513 = vmatprep.subr.bf16.mxu0 %v1748
    %2514 = vmatpush1.bf16.msra.mxu0 %v1747
    %2515 = vmatprep.subr.bf16.mxu0 %v1752
    %2516 = vmatpush1.bf16.msra.mxu0 %v1751
    %2517 = vmatprep.subr.bf16.mxu0 %v1756
    %2518 = vmatpush1.bf16.msra.mxu0 %v1755
    %2519 = vmatprep.subr.bf16.mxu0 %v1760
    %2520 = vmatpush1.bf16.msra.mxu0 %v1759
    %2521 = vmatprep.mubr.bf16.mxu0 %v532
    %2522 = vmatmul.mubr.bf16.gmra.mrb[0].mxu0 %v531
    %v2523 = vpop.f32.mrb[0].mxu0
    %v2524 = vadd.f32 %v2481, %v2523
    %v2525 = vpop.f32.mrb[0].mxu0
    %v2526 = vadd.f32 %v2483, %v2525
    %v2527 = vpop.f32.mrb[0].mxu0
    %v2528 = vadd.f32 %v2485, %v2527
    %v2529 = vpop.f32.mrb[0].mxu0
    %v2530 = vadd.f32 %v2487, %v2529
    %2531 = vdwg.mxu0
    %2532 = vmatprep.subr.bf16.mxu0 %v1764
    %2533 = vmatpush1.bf16.msra.mxu0 %v1763
    %2534 = vmatprep.subr.bf16.mxu0 %v1768
    %2535 = vmatpush1.bf16.msra.mxu0 %v1767
    %2536 = vmatprep.subr.bf16.mxu0 %v1772
    %2537 = vmatpush1.bf16.msra.mxu0 %v1771
    %2538 = vmatprep.subr.bf16.mxu0 %v1776
    %2539 = vmatpush1.bf16.msra.mxu0 %v1775
    %2540 = vmatprep.subr.bf16.mxu0 %v1780
    %2541 = vmatpush1.bf16.msra.mxu0 %v1779
    %2542 = vmatprep.subr.bf16.mxu0 %v1784
    %2543 = vmatpush1.bf16.msra.mxu0 %v1783
    %2544 = vmatprep.subr.bf16.mxu0 %v1788
    %2545 = vmatpush1.bf16.msra.mxu0 %v1787
    %2546 = vmatprep.subr.bf16.mxu0 %v1792
    %2547 = vmatpush1.bf16.msra.mxu0 %v1791
    %2548 = vmatprep.subr.bf16.mxu0 %v1796
    %2549 = vmatpush1.bf16.msra.mxu0 %v1795
    %2550 = vmatprep.subr.bf16.mxu0 %v1800
    %2551 = vmatpush1.bf16.msra.mxu0 %v1799
    %2552 = vmatprep.subr.bf16.mxu0 %v1804
    %2553 = vmatpush1.bf16.msra.mxu0 %v1803
    %2554 = vmatprep.subr.bf16.mxu0 %v1808
    %2555 = vmatpush1.bf16.msra.mxu0 %v1807
    %2556 = vmatprep.subr.bf16.mxu0 %v1812
    %2557 = vmatpush1.bf16.msra.mxu0 %v1811
    %2558 = vmatprep.subr.bf16.mxu0 %v1816
    %2559 = vmatpush1.bf16.msra.mxu0 %v1815
    %2560 = vmatprep.subr.bf16.mxu0 %v1820
    %2561 = vmatpush1.bf16.msra.mxu0 %v1819
    %2562 = vmatprep.subr.bf16.mxu0 %v1824
    %2563 = vmatpush1.bf16.msra.mxu0 %v1823
    %2564 = vmatprep.mubr.bf16.mxu0 %v534
    %2565 = vmatmul.mubr.bf16.gmra.mrb[0].mxu0 %v533
    %v2566 = vpop.f32.mrb[0].mxu0
    %v2567 = vadd.f32 %v2524, %v2566
    %v2568 = vpop.f32.mrb[0].mxu0
    %v2569 = vadd.f32 %v2526, %v2568
    %v2570 = vpop.f32.mrb[0].mxu0
    %v2571 = vadd.f32 %v2528, %v2570
    %v2572 = vpop.f32.mrb[0].mxu0
    %v2573 = vadd.f32 %v2530, %v2572
    %2574 = vdwg.mxu0
    %v2575 = vmax.f32 %v2352, 0.0
    %v2576 = vmax.f32 %v2354, 0.0
    %v2577 = vmax.f32 %v2567, 0.0
    %v2578 = vmax.f32 %v2569, 0.0
    %v2579 = vmax.f32 %v2356, 0.0
    %v2580 = vmax.f32 %v2358, 0.0
    %v2581 = vmax.f32 %v2571, 0.0
    %v2582 = vmax.f32 %v2573, 0.0
    %v2583 = vld [vmem:[#allocation10] sm:$0xff]
    %v2584 = vld [vmem:[#allocation10 + $0x8] sm:$0xff]
    %s2585 = sld [smem:[#allocation2]]
    %v2586 = vmul.f32 %v2575, %v2575
    %v2587 = vmul.f32 %v2576, %v2576
    %v2588 = vmul.f32 %v2577, %v2577
    %v2589 = vmul.f32 %v2578, %v2578
    %v2590 = vmul.f32 %v2579, %v2579
    %v2591 = vmul.f32 %v2580, %v2580
    %v2592 = vmul.f32 %v2581, %v2581
    %v2593 = vmul.f32 %v2582, %v2582
    %v2594 = vadd.f32 %v2586, %v2587
    %v2595 = vadd.f32 %v2594, %v2588
    %v2596 = vadd.f32 %v2595, %v2589
    %2597 = vadd.xlane.f32.xlu0 %v2596
    %v2598 = vpop.xlane.xlu0 %2597
    %v2599 = vadd.f32 %v2590, %v2591
    %v2600 = vadd.f32 %v2599, %v2592
    %v2601 = vadd.f32 %v2600, %v2593
    %2602 = vadd.xlane.f32.xlu0 %v2601
    %v2603 = vpop.xlane.xlu0 %2602
    %v2604 = vmax.f32 %v2598, 1e-24
    %v2605 = vmax.f32 %v2603, 1e-24
    %v2606 = vrsqrt.pop %v2604
    %v2607 = vrsqrt.pop %v2605
    %v2608 = vmul.f32 %v2575, %v2606
    %v2609 = vmul.f32 %v2576, %v2606
    %v2610 = vmul.f32 %v2577, %v2606
    %v2611 = vmul.f32 %v2578, %v2606
    %v2612 = vmul.f32 %v2579, %v2607
    %v2613 = vmul.f32 %v2580, %v2607
    %v2614 = vmul.f32 %v2581, %v2607
    %v2615 = vmul.f32 %v2582, %v2607
    %v2616 = vpack.c.bf16 %v2612, %v2608
    %v2617 = vpack.c.bf16 %v2613, %v2609
    %v2618 = vpack.c.bf16 %v2614, %v2610
    %v2619 = vpack.c.bf16 %v2615, %v2611
    %2620 = vmatprep.subr.bf16.mxu0 %v2617
    %2621 = vmatpush1.bf16.xpose.msra.mxu0 %v2616
    %2622 = vmatprep.subr.bf16.mxu0 0
    %2623 = vmatpush1.bf16.xpose.msra.mxu0 0
    %2624 = vmatprep.subr.bf16.mxu0 0
    %2625 = vmatpush1.bf16.xpose.msra.mxu0 0
    %2626 = vmatprep.subr.bf16.mxu0 0
    %2627 = vmatpush1.bf16.xpose.msra.mxu0 0
    %2628 = vmatprep.subr.bf16.mxu0 0
    %2629 = vmatpush1.bf16.xpose.msra.mxu0 0
    %2630 = vmatprep.subr.bf16.mxu0 0
    %2631 = vmatpush1.bf16.xpose.msra.mxu0 0
    %2632 = vmatprep.subr.bf16.mxu0 0
    %2633 = vmatpush1.bf16.xpose.msra.mxu0 0
    %2634 = vmatprep.subr.bf16.mxu0 0
    %2635 = vmatpush1.bf16.xpose.msra.mxu0 0
    %2636 = vmatprep.subr.bf16.mxu0 0
    %2637 = vmatpush1.bf16.xpose.msra.mxu0 0
    %2638 = vmatprep.subr.bf16.mxu0 0
    %2639 = vmatpush1.bf16.xpose.msra.mxu0 0
    %2640 = vmatprep.subr.bf16.mxu0 0
    %2641 = vmatpush1.bf16.xpose.msra.mxu0 0
    %2642 = vmatprep.subr.bf16.mxu0 0
    %2643 = vmatpush1.bf16.xpose.msra.mxu0 0
    %2644 = vmatprep.subr.bf16.mxu0 0
    %2645 = vmatpush1.bf16.xpose.msra.mxu0 0
    %2646 = vmatprep.subr.bf16.mxu0 0
    %2647 = vmatpush1.bf16.xpose.msra.mxu0 0
    %2648 = vmatprep.subr.bf16.mxu0 0
    %2649 = vmatpush1.bf16.xpose.msra.mxu0 0
    %2650 = vmatprep.subr.bf16.mxu0 0
    %2651 = vmatpush1.bf16.xpose.msra.mxu0 0
    %2652 = vmatprep.mubr.bf16.mxu0 %v2617
    %2653 = vmatmul.mubr.bf16.gmra.mrb[0].mxu0 %v2616
    %v2654 = vpop.f32.mrb[0].mxu0
    %v2655 = vadd.f32 0.0, %v2654
    %v2656 = vpop.f32.mrb[0].mxu0
    %v2657 = vpop.f32.mrb[0].mxu0
    %v2658 = vadd.f32 0.0, %v2657
    %v2659 = vpop.f32.mrb[0].mxu0
    %2660 = vdwg.mxu0
    %2661 = vmatprep.subr.bf16.mxu0 %v2619
    %2662 = vmatpush1.bf16.xpose.msra.mxu0 %v2618
    %2663 = vmatprep.subr.bf16.mxu0 0
    %2664 = vmatpush1.bf16.xpose.msra.mxu0 0
    %2665 = vmatprep.subr.bf16.mxu0 0
    %2666 = vmatpush1.bf16.xpose.msra.mxu0 0
    %2667 = vmatprep.subr.bf16.mxu0 0
    %2668 = vmatpush1.bf16.xpose.msra.mxu0 0
    %2669 = vmatprep.subr.bf16.mxu0 0
    %2670 = vmatpush1.bf16.xpose.msra.mxu0 0
    %2671 = vmatprep.subr.bf16.mxu0 0
    %2672 = vmatpush1.bf16.xpose.msra.mxu0 0
    %2673 = vmatprep.subr.bf16.mxu0 0
    %2674 = vmatpush1.bf16.xpose.msra.mxu0 0
    %2675 = vmatprep.subr.bf16.mxu0 0
    %2676 = vmatpush1.bf16.xpose.msra.mxu0 0
    %2677 = vmatprep.subr.bf16.mxu0 0
    %2678 = vmatpush1.bf16.xpose.msra.mxu0 0
    %2679 = vmatprep.subr.bf16.mxu0 0
    %2680 = vmatpush1.bf16.xpose.msra.mxu0 0
    %2681 = vmatprep.subr.bf16.mxu0 0
    %2682 = vmatpush1.bf16.xpose.msra.mxu0 0
    %2683 = vmatprep.subr.bf16.mxu0 0
    %2684 = vmatpush1.bf16.xpose.msra.mxu0 0
    %2685 = vmatprep.subr.bf16.mxu0 0
    %2686 = vmatpush1.bf16.xpose.msra.mxu0 0
    %2687 = vmatprep.subr.bf16.mxu0 0
    %2688 = vmatpush1.bf16.xpose.msra.mxu0 0
    %2689 = vmatprep.subr.bf16.mxu0 0
    %2690 = vmatpush1.bf16.xpose.msra.mxu0 0
    %2691 = vmatprep.subr.bf16.mxu0 0
    %2692 = vmatpush1.bf16.xpose.msra.mxu0 0
    %2693 = vmatprep.mubr.bf16.mxu0 %v2619
    %2694 = vmatmul.mubr.bf16.gmra.mrb[0].mxu0 %v2618
    %v2695 = vpop.f32.mrb[0].mxu0
    %v2696 = vadd.f32 %v2655, %v2695
    %v2697 = vpop.f32.mrb[0].mxu0
    %v2698 = vpop.f32.mrb[0].mxu0
    %v2699 = vadd.f32 %v2658, %v2698
    %v2700 = vpop.f32.mrb[0].mxu0
    %2701 = vdwg.mxu0
    %v2702 = vstv %s2585
    %v2703 = vmul.f32 %v2702, %v2696
    %v2704 = vmul.f32 %v2702, %v2699
    %v2705 = vadd.f32 %v2703, %v2583
    %v2706 = vadd.f32 %v2704, %v2584
    %vm2707 = vcmask 130048
    %v2708 = vsel %vm2707, %v2705, -inf
    %2709 = vmax.xlane.f32.xlu0 %v2708
    %v2710 = vpop.xlane.xlu0 %2709
    %v2711 = vsel %vm2707, %v2706, -inf
    %2712 = vmax.xlane.f32.xlu0 %v2711
    %v2713 = vpop.xlane.xlu0 %2712
    %v2714 = vsub.f32 %v2705, %v2710
    %v2715 = vsub.f32 %v2706, %v2713
    %v2716 = vmul.f32 %v2714, 1.442695
    %v2717 = vpow.pop %v2716
    %v2718 = vmul.f32 %v2715, 1.442695
    %v2719 = vpow.pop %v2718
    %v2720 = vsel %vm2707, %v2717, 0.0
    %2721 = vadd.xlane.f32.xlu0 %v2720
    %v2722 = vpop.xlane.xlu0 %2721
    %v2723 = vsel %vm2707, %v2719, 0.0
    %2724 = vadd.xlane.f32.xlu0 %v2723
    %v2725 = vpop.xlane.xlu0 %2724
    %v2726 = vrcp.pop %v2722
    %v2727 = vrcp.pop %v2725
    %v2728 = vmul.f32 %v2717, %v2726
    %v2729 = vmul.f32 %v2719, %v2727
    %v2730 = vpack.c.bf16 %v2729, %v2728
    %v2731 = vpack.c.bf16 %v2579, %v2575
    %v2732 = vpack.c.bf16 %v2580, %v2576
    %v2733 = vpack.c.bf16 %v2581, %v2577
    %v2734 = vpack.c.bf16 %v2582, %v2578
    %v2736 = vsel %vm2707, %v2730, 0
    %2738 = vmatprep.subr.bf16.mxu0 %v2732
    %2739 = vmatpush1.bf16.msra.mxu0 %v2731
    %2740 = vmatprep.subr.bf16.mxu0 0
    %2741 = vmatpush1.bf16.msra.mxu0 0
    %2742 = vmatprep.subr.bf16.mxu0 0
    %2743 = vmatpush1.bf16.msra.mxu0 0
    %2744 = vmatprep.subr.bf16.mxu0 0
    %2745 = vmatpush1.bf16.msra.mxu0 0
    %2746 = vmatprep.subr.bf16.mxu0 0
    %2747 = vmatpush1.bf16.msra.mxu0 0
    %2748 = vmatprep.subr.bf16.mxu0 0
    %2749 = vmatpush1.bf16.msra.mxu0 0
    %2750 = vmatprep.subr.bf16.mxu0 0
    %2751 = vmatpush1.bf16.msra.mxu0 0
    %2752 = vmatprep.subr.bf16.mxu0 0
    %2753 = vmatpush1.bf16.msra.mxu0 0
    %2754 = vmatprep.subr.bf16.mxu0 0
    %2755 = vmatpush1.bf16.msra.mxu0 0
    %2756 = vmatprep.subr.bf16.mxu0 0
    %2757 = vmatpush1.bf16.msra.mxu0 0
    %2758 = vmatprep.subr.bf16.mxu0 0
    %2759 = vmatpush1.bf16.msra.mxu0 0
    %2760 = vmatprep.subr.bf16.mxu0 0
    %2761 = vmatpush1.bf16.msra.mxu0 0
    %2762 = vmatprep.subr.bf16.mxu0 0
    %2763 = vmatpush1.bf16.msra.mxu0 0
    %2764 = vmatprep.subr.bf16.mxu0 0
    %2765 = vmatpush1.bf16.msra.mxu0 0
    %2766 = vmatprep.subr.bf16.mxu0 0
    %2767 = vmatpush1.bf16.msra.mxu0 0
    %2768 = vmatprep.subr.bf16.mxu0 0
    %2769 = vmatpush1.bf16.msra.mxu0 0
    %2770 = vmatprep.mubr.bf16.mxu0 0
    %2771 = vmatmul.mubr.bf16.gmra.mrb[0].mxu0 %v2736
    %v2772 = vpop.f32.mrb[0].mxu0
    %v2773 = vadd.f32 0.0, %v2772
    %v2774 = vpop.f32.mrb[0].mxu0
    %v2775 = vadd.f32 0.0, %v2774
    %v2776 = vpop.f32.mrb[0].mxu0
    %v2777 = vadd.f32 0.0, %v2776
    %v2778 = vpop.f32.mrb[0].mxu0
    %v2779 = vadd.f32 0.0, %v2778
    %2780 = vdwg.mxu0
    %2781 = vmatprep.subr.bf16.mxu0 %v2734
    %2782 = vmatpush1.bf16.msra.mxu0 %v2733
    %2783 = vmatprep.subr.bf16.mxu0 0
    %2784 = vmatpush1.bf16.msra.mxu0 0
    %2785 = vmatprep.subr.bf16.mxu0 0
    %2786 = vmatpush1.bf16.msra.mxu0 0
    %2787 = vmatprep.subr.bf16.mxu0 0
    %2788 = vmatpush1.bf16.msra.mxu0 0
    %2789 = vmatprep.subr.bf16.mxu0 0
    %2790 = vmatpush1.bf16.msra.mxu0 0
    %2791 = vmatprep.subr.bf16.mxu0 0
    %2792 = vmatpush1.bf16.msra.mxu0 0
    %2793 = vmatprep.subr.bf16.mxu0 0
    %2794 = vmatpush1.bf16.msra.mxu0 0
    %2795 = vmatprep.subr.bf16.mxu0 0
    %2796 = vmatpush1.bf16.msra.mxu0 0
    %2797 = vmatprep.subr.bf16.mxu0 0
    %2798 = vmatpush1.bf16.msra.mxu0 0
    %2799 = vmatprep.subr.bf16.mxu0 0
    %2800 = vmatpush1.bf16.msra.mxu0 0
    %2801 = vmatprep.subr.bf16.mxu0 0
    %2802 = vmatpush1.bf16.msra.mxu0 0
    %2803 = vmatprep.subr.bf16.mxu0 0
    %2804 = vmatpush1.bf16.msra.mxu0 0
    %2805 = vmatprep.subr.bf16.mxu0 0
    %2806 = vmatpush1.bf16.msra.mxu0 0
    %2807 = vmatprep.subr.bf16.mxu0 0
    %2808 = vmatpush1.bf16.msra.mxu0 0
    %2809 = vmatprep.subr.bf16.mxu0 0
    %2810 = vmatpush1.bf16.msra.mxu0 0
    %2811 = vmatprep.subr.bf16.mxu0 0
    %2812 = vmatpush1.bf16.msra.mxu0 0
    %2813 = vmatprep.mubr.bf16.mxu0 0
    %2814 = vmatmul.mubr.bf16.gmra.mrb[0].mxu0 %v2736
    %v2815 = vpop.f32.mrb[0].mxu0
    %v2816 = vadd.f32 0.0, %v2815
    %v2817 = vpop.f32.mrb[0].mxu0
    %v2818 = vadd.f32 0.0, %v2817
    %v2819 = vpop.f32.mrb[0].mxu0
    %v2820 = vadd.f32 0.0, %v2819
    %v2821 = vpop.f32.mrb[0].mxu0
    %v2822 = vadd.f32 0.0, %v2821
    %2823 = vdwg.mxu0
    %s2824 = sld [smem:[#allocation2 + $0x1]]
    %v2825 = vmul.f32 %v2773, %v2773
    %v2826 = vmul.f32 %v2775, %v2775
    %v2827 = vmul.f32 %v2816, %v2816
    %v2828 = vmul.f32 %v2818, %v2818
    %v2829 = vmul.f32 %v2777, %v2777
    %v2830 = vmul.f32 %v2779, %v2779
    %v2831 = vmul.f32 %v2820, %v2820
    %v2832 = vmul.f32 %v2822, %v2822
    %v2833 = vadd.f32 %v2825, %v2826
    %v2834 = vadd.f32 %v2833, %v2827
    %v2835 = vadd.f32 %v2834, %v2828
    %2836 = vadd.xlane.f32.xlu0 %v2835
    %v2837 = vpop.xlane.xlu0 %2836
    %v2838 = vadd.f32 %v2829, %v2830
    %v2839 = vadd.f32 %v2838, %v2831
    %v2840 = vadd.f32 %v2839, %v2832
    %2841 = vadd.xlane.f32.xlu0 %v2840
    %v2842 = vpop.xlane.xlu0 %2841
    %v2843 = vmax.f32 %v2837, 1e-24
    %v2844 = vmax.f32 %v2842, 1e-24
    %v2845 = vrsqrt.pop %v2843
    %v2846 = vrsqrt.pop %v2844
    %v2847 = vmul.f32 %v2773, %v2845
    %v2848 = vmul.f32 %v2775, %v2845
    %v2849 = vmul.f32 %v2816, %v2845
    %v2850 = vmul.f32 %v2818, %v2845
    %v2851 = vmul.f32 %v2777, %v2846
    %v2852 = vmul.f32 %v2779, %v2846
    %v2853 = vmul.f32 %v2820, %v2846
    %v2854 = vmul.f32 %v2822, %v2846
    %v2855 = vpack.c.bf16 %v2851, %v2847
    %v2856 = vpack.c.bf16 %v2852, %v2848
    %v2857 = vpack.c.bf16 %v2853, %v2849
    %v2858 = vpack.c.bf16 %v2854, %v2850
    %2859 = vmatprep.subr.bf16.mxu0 %v2856
    %2860 = vmatpush1.bf16.xpose.msra.mxu0 %v2855
    %2861 = vmatprep.subr.bf16.mxu0 0
    %2862 = vmatpush1.bf16.xpose.msra.mxu0 0
    %2863 = vmatprep.subr.bf16.mxu0 0
    %2864 = vmatpush1.bf16.xpose.msra.mxu0 0
    %2865 = vmatprep.subr.bf16.mxu0 0
    %2866 = vmatpush1.bf16.xpose.msra.mxu0 0
    %2867 = vmatprep.subr.bf16.mxu0 0
    %2868 = vmatpush1.bf16.xpose.msra.mxu0 0
    %2869 = vmatprep.subr.bf16.mxu0 0
    %2870 = vmatpush1.bf16.xpose.msra.mxu0 0
    %2871 = vmatprep.subr.bf16.mxu0 0
    %2872 = vmatpush1.bf16.xpose.msra.mxu0 0
    %2873 = vmatprep.subr.bf16.mxu0 0
    %2874 = vmatpush1.bf16.xpose.msra.mxu0 0
    %2875 = vmatprep.subr.bf16.mxu0 0
    %2876 = vmatpush1.bf16.xpose.msra.mxu0 0
    %2877 = vmatprep.subr.bf16.mxu0 0
    %2878 = vmatpush1.bf16.xpose.msra.mxu0 0
    %2879 = vmatprep.subr.bf16.mxu0 0
    %2880 = vmatpush1.bf16.xpose.msra.mxu0 0
    %2881 = vmatprep.subr.bf16.mxu0 0
    %2882 = vmatpush1.bf16.xpose.msra.mxu0 0
    %2883 = vmatprep.subr.bf16.mxu0 0
    %2884 = vmatpush1.bf16.xpose.msra.mxu0 0
    %2885 = vmatprep.subr.bf16.mxu0 0
    %2886 = vmatpush1.bf16.xpose.msra.mxu0 0
    %2887 = vmatprep.subr.bf16.mxu0 0
    %2888 = vmatpush1.bf16.xpose.msra.mxu0 0
    %2889 = vmatprep.subr.bf16.mxu0 0
    %2890 = vmatpush1.bf16.xpose.msra.mxu0 0
    %2891 = vmatprep.mubr.bf16.mxu0 %v2856
    %2892 = vmatmul.mubr.bf16.gmra.mrb[0].mxu0 %v2855
    %v2893 = vpop.f32.mrb[0].mxu0
    %v2894 = vadd.f32 0.0, %v2893
    %v2895 = vpop.f32.mrb[0].mxu0
    %v2896 = vpop.f32.mrb[0].mxu0
    %v2897 = vadd.f32 0.0, %v2896
    %v2898 = vpop.f32.mrb[0].mxu0
    %2899 = vdwg.mxu0
    %2900 = vmatprep.subr.bf16.mxu0 %v2858
    %2901 = vmatpush1.bf16.xpose.msra.mxu0 %v2857
    %2902 = vmatprep.subr.bf16.mxu0 0
    %2903 = vmatpush1.bf16.xpose.msra.mxu0 0
    %2904 = vmatprep.subr.bf16.mxu0 0
    %2905 = vmatpush1.bf16.xpose.msra.mxu0 0
    %2906 = vmatprep.subr.bf16.mxu0 0
    %2907 = vmatpush1.bf16.xpose.msra.mxu0 0
    %2908 = vmatprep.subr.bf16.mxu0 0
    %2909 = vmatpush1.bf16.xpose.msra.mxu0 0
    %2910 = vmatprep.subr.bf16.mxu0 0
    %2911 = vmatpush1.bf16.xpose.msra.mxu0 0
    %2912 = vmatprep.subr.bf16.mxu0 0
    %2913 = vmatpush1.bf16.xpose.msra.mxu0 0
    %2914 = vmatprep.subr.bf16.mxu0 0
    %2915 = vmatpush1.bf16.xpose.msra.mxu0 0
    %2916 = vmatprep.subr.bf16.mxu0 0
    %2917 = vmatpush1.bf16.xpose.msra.mxu0 0
    %2918 = vmatprep.subr.bf16.mxu0 0
    %2919 = vmatpush1.bf16.xpose.msra.mxu0 0
    %2920 = vmatprep.subr.bf16.mxu0 0
    %2921 = vmatpush1.bf16.xpose.msra.mxu0 0
    %2922 = vmatprep.subr.bf16.mxu0 0
    %2923 = vmatpush1.bf16.xpose.msra.mxu0 0
    %2924 = vmatprep.subr.bf16.mxu0 0
    %2925 = vmatpush1.bf16.xpose.msra.mxu0 0
    %2926 = vmatprep.subr.bf16.mxu0 0
    %2927 = vmatpush1.bf16.xpose.msra.mxu0 0
    %2928 = vmatprep.subr.bf16.mxu0 0
    %2929 = vmatpush1.bf16.xpose.msra.mxu0 0
    %2930 = vmatprep.subr.bf16.mxu0 0
    %2931 = vmatpush1.bf16.xpose.msra.mxu0 0
    %2932 = vmatprep.mubr.bf16.mxu0 %v2858
    %2933 = vmatmul.mubr.bf16.gmra.mrb[0].mxu0 %v2857
    %v2934 = vpop.f32.mrb[0].mxu0
    %v2935 = vadd.f32 %v2894, %v2934
    %v2936 = vpop.f32.mrb[0].mxu0
    %v2937 = vpop.f32.mrb[0].mxu0
    %v2938 = vadd.f32 %v2897, %v2937
    %v2939 = vpop.f32.mrb[0].mxu0
    %2940 = vdwg.mxu0
    %v2941 = vstv %s2824
    %v2942 = vmul.f32 %v2941, %v2935
    %v2943 = vmul.f32 %v2941, %v2938
    %v2944 = vadd.f32 %v2942, %v2583
    %v2945 = vadd.f32 %v2943, %v2584
    %v2946 = vsel %vm2707, %v2944, -inf
    %2947 = vmax.xlane.f32.xlu0 %v2946
    %v2948 = vpop.xlane.xlu0 %2947
    %v2949 = vsel %vm2707, %v2945, -inf
    %2950 = vmax.xlane.f32.xlu0 %v2949
    %v2951 = vpop.xlane.xlu0 %2950
    %v2952 = vsub.f32 %v2944, %v2948
    %v2953 = vsub.f32 %v2945, %v2951
    %v2954 = vmul.f32 %v2952, 1.442695
    %v2955 = vpow.pop %v2954
    %v2956 = vmul.f32 %v2953, 1.442695
    %v2957 = vpow.pop %v2956
    %v2958 = vsel %vm2707, %v2955, 0.0
    %2959 = vadd.xlane.f32.xlu0 %v2958
    %v2960 = vpop.xlane.xlu0 %2959
    %v2961 = vsel %vm2707, %v2957, 0.0
    %2962 = vadd.xlane.f32.xlu0 %v2961
    %v2963 = vpop.xlane.xlu0 %2962
    %v2964 = vrcp.pop %v2960
    %v2965 = vrcp.pop %v2963
    %v2966 = vmul.f32 %v2955, %v2964
    %v2967 = vmul.f32 %v2957, %v2965
    %v2968 = vpack.c.bf16 %v2967, %v2966
    %v2969 = vpack.c.bf16 %v2777, %v2773
    %v2970 = vpack.c.bf16 %v2779, %v2775
    %v2971 = vpack.c.bf16 %v2820, %v2816
    %v2972 = vpack.c.bf16 %v2822, %v2818
    %v2974 = vsel %vm2707, %v2968, 0
    %2976 = vmatprep.subr.bf16.mxu0 %v2970
    %2977 = vmatpush1.bf16.msra.mxu0 %v2969
    %2978 = vmatprep.subr.bf16.mxu0 0
    %2979 = vmatpush1.bf16.msra.mxu0 0
    %2980 = vmatprep.subr.bf16.mxu0 0
    %2981 = vmatpush1.bf16.msra.mxu0 0
    %2982 = vmatprep.subr.bf16.mxu0 0
    %2983 = vmatpush1.bf16.msra.mxu0 0
    %2984 = vmatprep.subr.bf16.mxu0 0
    %2985 = vmatpush1.bf16.msra.mxu0 0
    %2986 = vmatprep.subr.bf16.mxu0 0
    %2987 = vmatpush1.bf16.msra.mxu0 0
    %2988 = vmatprep.subr.bf16.mxu0 0
    %2989 = vmatpush1.bf16.msra.mxu0 0
    %2990 = vmatprep.subr.bf16.mxu0 0
    %2991 = vmatpush1.bf16.msra.mxu0 0
    %2992 = vmatprep.subr.bf16.mxu0 0
    %2993 = vmatpush1.bf16.msra.mxu0 0
    %2994 = vmatprep.subr.bf16.mxu0 0
    %2995 = vmatpush1.bf16.msra.mxu0 0
    %2996 = vmatprep.subr.bf16.mxu0 0
    %2997 = vmatpush1.bf16.msra.mxu0 0
    %2998 = vmatprep.subr.bf16.mxu0 0
    %2999 = vmatpush1.bf16.msra.mxu0 0
    %3000 = vmatprep.subr.bf16.mxu0 0
    %3001 = vmatpush1.bf16.msra.mxu0 0
    %3002 = vmatprep.subr.bf16.mxu0 0
    %3003 = vmatpush1.bf16.msra.mxu0 0
    %3004 = vmatprep.subr.bf16.mxu0 0
    %3005 = vmatpush1.bf16.msra.mxu0 0
    %3006 = vmatprep.subr.bf16.mxu0 0
    %3007 = vmatpush1.bf16.msra.mxu0 0
    %3008 = vmatprep.mubr.bf16.mxu0 0
    %3009 = vmatmul.mubr.bf16.gmra.mrb[0].mxu0 %v2974
    %v3010 = vpop.f32.mrb[0].mxu0
    %v3011 = vadd.f32 0.0, %v3010
    %v3012 = vpop.f32.mrb[0].mxu0
    %v3013 = vadd.f32 0.0, %v3012
    %v3014 = vpop.f32.mrb[0].mxu0
    %v3015 = vadd.f32 0.0, %v3014
    %v3016 = vpop.f32.mrb[0].mxu0
    %v3017 = vadd.f32 0.0, %v3016
    %3018 = vdwg.mxu0
    %3019 = vmatprep.subr.bf16.mxu0 %v2972
    %3020 = vmatpush1.bf16.msra.mxu0 %v2971
    %3021 = vmatprep.subr.bf16.mxu0 0
    %3022 = vmatpush1.bf16.msra.mxu0 0
    %3023 = vmatprep.subr.bf16.mxu0 0
    %3024 = vmatpush1.bf16.msra.mxu0 0
    %3025 = vmatprep.subr.bf16.mxu0 0
    %3026 = vmatpush1.bf16.msra.mxu0 0
    %3027 = vmatprep.subr.bf16.mxu0 0
    %3028 = vmatpush1.bf16.msra.mxu0 0
    %3029 = vmatprep.subr.bf16.mxu0 0
    %3030 = vmatpush1.bf16.msra.mxu0 0
    %3031 = vmatprep.subr.bf16.mxu0 0
    %3032 = vmatpush1.bf16.msra.mxu0 0
    %3033 = vmatprep.subr.bf16.mxu0 0
    %3034 = vmatpush1.bf16.msra.mxu0 0
    %3035 = vmatprep.subr.bf16.mxu0 0
    %3036 = vmatpush1.bf16.msra.mxu0 0
    %3037 = vmatprep.subr.bf16.mxu0 0
    %3038 = vmatpush1.bf16.msra.mxu0 0
    %3039 = vmatprep.subr.bf16.mxu0 0
    %3040 = vmatpush1.bf16.msra.mxu0 0
    %3041 = vmatprep.subr.bf16.mxu0 0
    %3042 = vmatpush1.bf16.msra.mxu0 0
    %3043 = vmatprep.subr.bf16.mxu0 0
    %3044 = vmatpush1.bf16.msra.mxu0 0
    %3045 = vmatprep.subr.bf16.mxu0 0
    %3046 = vmatpush1.bf16.msra.mxu0 0
    %3047 = vmatprep.subr.bf16.mxu0 0
    %3048 = vmatpush1.bf16.msra.mxu0 0
    %3049 = vmatprep.subr.bf16.mxu0 0
    %3050 = vmatpush1.bf16.msra.mxu0 0
    %3051 = vmatprep.mubr.bf16.mxu0 0
    %3052 = vmatmul.mubr.bf16.gmra.mrb[0].mxu0 %v2974
    %v3053 = vpop.f32.mrb[0].mxu0
    %v3054 = vadd.f32 0.0, %v3053
    %v3055 = vpop.f32.mrb[0].mxu0
    %v3056 = vadd.f32 0.0, %v3055
    %v3057 = vpop.f32.mrb[0].mxu0
    %v3058 = vadd.f32 0.0, %v3057
    %v3059 = vpop.f32.mrb[0].mxu0
    %v3060 = vadd.f32 0.0, %v3059
    %3061 = vdwg.mxu0
    %v3062 = vpack.c.bf16 %v3015, %v3011
    %v3063 = vpack.c.bf16 %v3017, %v3013
    %v3064 = vpack.c.bf16 %v3058, %v3054
    %v3065 = vpack.c.bf16 %v3060, %v3056
    %v3066 = vld [vmem:[#allocation12] sm:$0xff]
    %v3067 = vld [vmem:[#allocation12 + $0x8] sm:$0xff]
    %v3068 = vld [vmem:[#allocation12 + $0x10] sm:$0xff]
    %v3069 = vld [vmem:[#allocation12 + $0x18] sm:$0xff]
    %v3070 = vld [vmem:[#allocation12 + $0x20] sm:$0xff]
    %v3071 = vld [vmem:[#allocation12 + $0x28] sm:$0xff]
    %v3072 = vld [vmem:[#allocation12 + $0x30] sm:$0xff]
    %v3073 = vld [vmem:[#allocation12 + $0x38] sm:$0xff]
    %v3074 = vld [vmem:[#allocation12 + $0x40] sm:$0xff]
    %v3075 = vld [vmem:[#allocation12 + $0x48] sm:$0xff]
    %v3076 = vld [vmem:[#allocation12 + $0x50] sm:$0xff]
    %v3077 = vld [vmem:[#allocation12 + $0x58] sm:$0xff]
    %v3078 = vld [vmem:[#allocation12 + $0x60] sm:$0xff]
    %v3079 = vld [vmem:[#allocation12 + $0x68] sm:$0xff]
    %v3080 = vld [vmem:[#allocation12 + $0x70] sm:$0xff]
    %v3081 = vld [vmem:[#allocation12 + $0x78] sm:$0xff]
    %v3082 = vld [vmem:[#allocation12 + $0x80] sm:$0xff]
    %v3083 = vld [vmem:[#allocation12 + $0x88] sm:$0xff]
    %v3084 = vld [vmem:[#allocation12 + $0x90] sm:$0xff]
    %v3085 = vld [vmem:[#allocation12 + $0x98] sm:$0xff]
    %v3086 = vld [vmem:[#allocation12 + $0xa0] sm:$0xff]
    %v3087 = vld [vmem:[#allocation12 + $0xa8] sm:$0xff]
    %v3088 = vld [vmem:[#allocation12 + $0xb0] sm:$0xff]
    %v3089 = vld [vmem:[#allocation12 + $0xb8] sm:$0xff]
    %v3090 = vld [vmem:[#allocation12 + $0xc0] sm:$0xff]
    %v3091 = vld [vmem:[#allocation12 + $0xc8] sm:$0xff]
    %v3092 = vld [vmem:[#allocation12 + $0xd0] sm:$0xff]
    %v3093 = vld [vmem:[#allocation12 + $0xd8] sm:$0xff]
    %v3094 = vld [vmem:[#allocation12 + $0xe0] sm:$0xff]
    %v3095 = vld [vmem:[#allocation12 + $0xe8] sm:$0xff]
    %v3096 = vld [vmem:[#allocation12 + $0xf0] sm:$0xff]
    %v3097 = vld [vmem:[#allocation12 + $0xf8] sm:$0xff]
    %v3098 = vld [vmem:[#allocation12 + $0x100] sm:$0xff]
    %v3099 = vld [vmem:[#allocation12 + $0x108] sm:$0xff]
    %v3100 = vld [vmem:[#allocation12 + $0x110] sm:$0xff]
    %v3101 = vld [vmem:[#allocation12 + $0x118] sm:$0xff]
    %v3102 = vld [vmem:[#allocation12 + $0x120] sm:$0xff]
    %v3103 = vld [vmem:[#allocation12 + $0x128] sm:$0xff]
    %v3104 = vld [vmem:[#allocation12 + $0x130] sm:$0xff]
    %v3105 = vld [vmem:[#allocation12 + $0x138] sm:$0xff]
    %v3106 = vld [vmem:[#allocation12 + $0x140] sm:$0xff]
    %v3107 = vld [vmem:[#allocation12 + $0x148] sm:$0xff]
    %v3108 = vld [vmem:[#allocation12 + $0x150] sm:$0xff]
    %v3109 = vld [vmem:[#allocation12 + $0x158] sm:$0xff]
    %v3110 = vld [vmem:[#allocation12 + $0x160] sm:$0xff]
    %v3111 = vld [vmem:[#allocation12 + $0x168] sm:$0xff]
    %v3112 = vld [vmem:[#allocation12 + $0x170] sm:$0xff]
    %v3113 = vld [vmem:[#allocation12 + $0x178] sm:$0xff]
    %v3114 = vld [vmem:[#allocation12 + $0x180] sm:$0xff]
    %v3115 = vld [vmem:[#allocation12 + $0x188] sm:$0xff]
    %v3116 = vld [vmem:[#allocation12 + $0x190] sm:$0xff]
    %v3117 = vld [vmem:[#allocation12 + $0x198] sm:$0xff]
    %v3118 = vld [vmem:[#allocation12 + $0x1a0] sm:$0xff]
    %v3119 = vld [vmem:[#allocation12 + $0x1a8] sm:$0xff]
    %v3120 = vld [vmem:[#allocation12 + $0x1b0] sm:$0xff]
    %v3121 = vld [vmem:[#allocation12 + $0x1b8] sm:$0xff]
    %v3122 = vld [vmem:[#allocation12 + $0x1c0] sm:$0xff]
    %v3123 = vld [vmem:[#allocation12 + $0x1c8] sm:$0xff]
    %v3124 = vld [vmem:[#allocation12 + $0x1d0] sm:$0xff]
    %v3125 = vld [vmem:[#allocation12 + $0x1d8] sm:$0xff]
    %v3126 = vld [vmem:[#allocation12 + $0x1e0] sm:$0xff]
    %v3127 = vld [vmem:[#allocation12 + $0x1e8] sm:$0xff]
    %v3128 = vld [vmem:[#allocation12 + $0x1f0] sm:$0xff]
    %v3129 = vld [vmem:[#allocation12 + $0x1f8] sm:$0xff]
    %v3130 = vld [vmem:[#allocation13] sm:$0x3]
    %v3132 = vlaneseq
    %v3133 = vshrl.u32 %v3132, 7
    %v3134 = vsub.s32 0, %v3133
    %v3135 = vrot.slane %v3130, %v3134
    %v3136 = vlaneseq
    %v3137 = vshrl.u32 %v3136, 7
    %v3138 = vsub.s32 1, %v3137
    %v3139 = vrot.slane %v3130, %v3138
    %v3206 = vunpack.c.l.b16 %v3066
    %v3207 = vunpack.c.h.b16 %v3066
    %v3208 = vunpack.c.l.b16 %v3067
    %v3209 = vunpack.c.h.b16 %v3067
    %v3210 = vunpack.c.l.b16 %v3068
    %v3211 = vunpack.c.h.b16 %v3068
    %v3212 = vunpack.c.l.b16 %v3069
    %v3213 = vunpack.c.h.b16 %v3069
    %v3214 = vunpack.c.l.b16 %v3070
    %v3215 = vunpack.c.h.b16 %v3070
    %v3216 = vunpack.c.l.b16 %v3071
    %v3217 = vunpack.c.h.b16 %v3071
    %v3218 = vunpack.c.l.b16 %v3072
    %v3219 = vunpack.c.h.b16 %v3072
    %v3220 = vunpack.c.l.b16 %v3073
    %v3221 = vunpack.c.h.b16 %v3073
    %v3222 = vunpack.c.l.b16 %v3074
    %v3223 = vunpack.c.h.b16 %v3074
    %v3224 = vunpack.c.l.b16 %v3075
    %v3225 = vunpack.c.h.b16 %v3075
    %v3226 = vunpack.c.l.b16 %v3076
    %v3227 = vunpack.c.h.b16 %v3076
    %v3228 = vunpack.c.l.b16 %v3077
    %v3229 = vunpack.c.h.b16 %v3077
    %v3230 = vunpack.c.l.b16 %v3078
    %v3231 = vunpack.c.h.b16 %v3078
    %v3232 = vunpack.c.l.b16 %v3079
    %v3233 = vunpack.c.h.b16 %v3079
    %v3234 = vunpack.c.l.b16 %v3080
    %v3235 = vunpack.c.h.b16 %v3080
    %v3236 = vunpack.c.l.b16 %v3081
    %v3237 = vunpack.c.h.b16 %v3081
    %v3238 = vunpack.c.l.b16 %v3082
    %v3239 = vunpack.c.h.b16 %v3082
    %v3240 = vunpack.c.l.b16 %v3083
    %v3241 = vunpack.c.h.b16 %v3083
    %v3242 = vunpack.c.l.b16 %v3084
    %v3243 = vunpack.c.h.b16 %v3084
    %v3244 = vunpack.c.l.b16 %v3085
    %v3245 = vunpack.c.h.b16 %v3085
    %v3246 = vunpack.c.l.b16 %v3086
    %v3247 = vunpack.c.h.b16 %v3086
    %v3248 = vunpack.c.l.b16 %v3087
    %v3249 = vunpack.c.h.b16 %v3087
    %v3250 = vunpack.c.l.b16 %v3088
    %v3251 = vunpack.c.h.b16 %v3088
    %v3252 = vunpack.c.l.b16 %v3089
    %v3253 = vunpack.c.h.b16 %v3089
    %v3254 = vunpack.c.l.b16 %v3090
    %v3255 = vunpack.c.h.b16 %v3090
    %v3256 = vunpack.c.l.b16 %v3091
    %v3257 = vunpack.c.h.b16 %v3091
    %v3258 = vunpack.c.l.b16 %v3092
    %v3259 = vunpack.c.h.b16 %v3092
    %v3260 = vunpack.c.l.b16 %v3093
    %v3261 = vunpack.c.h.b16 %v3093
    %v3262 = vunpack.c.l.b16 %v3094
    %v3263 = vunpack.c.h.b16 %v3094
    %v3264 = vunpack.c.l.b16 %v3095
    %v3265 = vunpack.c.h.b16 %v3095
    %v3266 = vunpack.c.l.b16 %v3096
    %v3267 = vunpack.c.h.b16 %v3096
    %v3268 = vunpack.c.l.b16 %v3097
    %v3269 = vunpack.c.h.b16 %v3097
    %v3270 = vunpack.c.l.b16 %v3098
    %v3271 = vunpack.c.h.b16 %v3098
    %v3272 = vunpack.c.l.b16 %v3099
    %v3273 = vunpack.c.h.b16 %v3099
    %v3274 = vunpack.c.l.b16 %v3100
    %v3275 = vunpack.c.h.b16 %v3100
    %v3276 = vunpack.c.l.b16 %v3101
    %v3277 = vunpack.c.h.b16 %v3101
    %v3278 = vunpack.c.l.b16 %v3102
    %v3279 = vunpack.c.h.b16 %v3102
    %v3280 = vunpack.c.l.b16 %v3103
    %v3281 = vunpack.c.h.b16 %v3103
    %v3282 = vunpack.c.l.b16 %v3104
    %v3283 = vunpack.c.h.b16 %v3104
    %v3284 = vunpack.c.l.b16 %v3105
    %v3285 = vunpack.c.h.b16 %v3105
    %v3286 = vunpack.c.l.b16 %v3106
    %v3287 = vunpack.c.h.b16 %v3106
    %v3288 = vunpack.c.l.b16 %v3107
    %v3289 = vunpack.c.h.b16 %v3107
    %v3290 = vunpack.c.l.b16 %v3108
    %v3291 = vunpack.c.h.b16 %v3108
    %v3292 = vunpack.c.l.b16 %v3109
    %v3293 = vunpack.c.h.b16 %v3109
    %v3294 = vunpack.c.l.b16 %v3110
    %v3295 = vunpack.c.h.b16 %v3110
    %v3296 = vunpack.c.l.b16 %v3111
    %v3297 = vunpack.c.h.b16 %v3111
    %v3298 = vunpack.c.l.b16 %v3112
    %v3299 = vunpack.c.h.b16 %v3112
    %v3300 = vunpack.c.l.b16 %v3113
    %v3301 = vunpack.c.h.b16 %v3113
    %v3302 = vunpack.c.l.b16 %v3114
    %v3303 = vunpack.c.h.b16 %v3114
    %v3304 = vunpack.c.l.b16 %v3115
    %v3305 = vunpack.c.h.b16 %v3115
    %v3306 = vunpack.c.l.b16 %v3116
    %v3307 = vunpack.c.h.b16 %v3116
    %v3308 = vunpack.c.l.b16 %v3117
    %v3309 = vunpack.c.h.b16 %v3117
    %v3310 = vunpack.c.l.b16 %v3118
    %v3311 = vunpack.c.h.b16 %v3118
    %v3312 = vunpack.c.l.b16 %v3119
    %v3313 = vunpack.c.h.b16 %v3119
    %v3314 = vunpack.c.l.b16 %v3120
    %v3315 = vunpack.c.h.b16 %v3120
    %v3316 = vunpack.c.l.b16 %v3121
    %v3317 = vunpack.c.h.b16 %v3121
    %v3318 = vunpack.c.l.b16 %v3122
    %v3319 = vunpack.c.h.b16 %v3122
    %v3320 = vunpack.c.l.b16 %v3123
    %v3321 = vunpack.c.h.b16 %v3123
    %v3322 = vunpack.c.l.b16 %v3124
    %v3323 = vunpack.c.h.b16 %v3124
    %v3324 = vunpack.c.l.b16 %v3125
    %v3325 = vunpack.c.h.b16 %v3125
    %v3326 = vunpack.c.l.b16 %v3126
    %v3327 = vunpack.c.h.b16 %v3126
    %v3328 = vunpack.c.l.b16 %v3127
    %v3329 = vunpack.c.h.b16 %v3127
    %v3330 = vunpack.c.l.b16 %v3128
    %v3331 = vunpack.c.h.b16 %v3128
    %v3332 = vunpack.c.l.b16 %v3129
    %v3333 = vunpack.c.h.b16 %v3129
    %v3334 = vpack.c.b16 %v3208, %v3206
    %v3335 = vpack.c.b16 %v3209, %v3207
    %v3336 = vpack.c.b16 %v3212, %v3210
    %v3337 = vpack.c.b16 %v3213, %v3211
    %v3338 = vpack.c.b16 %v3216, %v3214
    %v3339 = vpack.c.b16 %v3217, %v3215
    %v3340 = vpack.c.b16 %v3220, %v3218
    %v3341 = vpack.c.b16 %v3221, %v3219
    %v3342 = vpack.c.b16 %v3224, %v3222
    %v3343 = vpack.c.b16 %v3225, %v3223
    %v3344 = vpack.c.b16 %v3228, %v3226
    %v3345 = vpack.c.b16 %v3229, %v3227
    %v3346 = vpack.c.b16 %v3232, %v3230
    %v3347 = vpack.c.b16 %v3233, %v3231
    %v3348 = vpack.c.b16 %v3236, %v3234
    %v3349 = vpack.c.b16 %v3237, %v3235
    %v3350 = vpack.c.b16 %v3240, %v3238
    %v3351 = vpack.c.b16 %v3241, %v3239
    %v3352 = vpack.c.b16 %v3244, %v3242
    %v3353 = vpack.c.b16 %v3245, %v3243
    %v3354 = vpack.c.b16 %v3248, %v3246
    %v3355 = vpack.c.b16 %v3249, %v3247
    %v3356 = vpack.c.b16 %v3252, %v3250
    %v3357 = vpack.c.b16 %v3253, %v3251
    %v3358 = vpack.c.b16 %v3256, %v3254
    %v3359 = vpack.c.b16 %v3257, %v3255
    %v3360 = vpack.c.b16 %v3260, %v3258
    %v3361 = vpack.c.b16 %v3261, %v3259
    %v3362 = vpack.c.b16 %v3264, %v3262
    %v3363 = vpack.c.b16 %v3265, %v3263
    %v3364 = vpack.c.b16 %v3268, %v3266
    %v3365 = vpack.c.b16 %v3269, %v3267
    %v3366 = vpack.c.b16 %v3272, %v3270
    %v3367 = vpack.c.b16 %v3273, %v3271
    %v3368 = vpack.c.b16 %v3276, %v3274
    %v3369 = vpack.c.b16 %v3277, %v3275
    %v3370 = vpack.c.b16 %v3280, %v3278
    %v3371 = vpack.c.b16 %v3281, %v3279
    %v3372 = vpack.c.b16 %v3284, %v3282
    %v3373 = vpack.c.b16 %v3285, %v3283
    %v3374 = vpack.c.b16 %v3288, %v3286
    %v3375 = vpack.c.b16 %v3289, %v3287
    %v3376 = vpack.c.b16 %v3292, %v3290
    %v3377 = vpack.c.b16 %v3293, %v3291
    %v3378 = vpack.c.b16 %v3296, %v3294
    %v3379 = vpack.c.b16 %v3297, %v3295
    %v3380 = vpack.c.b16 %v3300, %v3298
    %v3381 = vpack.c.b16 %v3301, %v3299
    %v3382 = vpack.c.b16 %v3304, %v3302
    %v3383 = vpack.c.b16 %v3305, %v3303
    %v3384 = vpack.c.b16 %v3308, %v3306
    %v3385 = vpack.c.b16 %v3309, %v3307
    %v3386 = vpack.c.b16 %v3312, %v3310
    %v3387 = vpack.c.b16 %v3313, %v3311
    %v3388 = vpack.c.b16 %v3316, %v3314
    %v3389 = vpack.c.b16 %v3317, %v3315
    %v3390 = vpack.c.b16 %v3320, %v3318
    %v3391 = vpack.c.b16 %v3321, %v3319
    %v3392 = vpack.c.b16 %v3324, %v3322
    %v3393 = vpack.c.b16 %v3325, %v3323
    %v3394 = vpack.c.b16 %v3328, %v3326
    %v3395 = vpack.c.b16 %v3329, %v3327
    %v3396 = vpack.c.b16 %v3332, %v3330
    %v3397 = vpack.c.b16 %v3333, %v3331
    %3462 = vmatprep.subr.bf16.mxu0 %v3335
    %3463 = vmatpush1.bf16.msra.mxu0 %v3334
    %3464 = vmatprep.subr.bf16.mxu0 %v3337
    %3465 = vmatpush1.bf16.msra.mxu0 %v3336
    %3466 = vmatprep.subr.bf16.mxu0 %v3339
    %3467 = vmatpush1.bf16.msra.mxu0 %v3338
    %3468 = vmatprep.subr.bf16.mxu0 %v3341
    %3469 = vmatpush1.bf16.msra.mxu0 %v3340
    %3470 = vmatprep.subr.bf16.mxu0 %v3343
    %3471 = vmatpush1.bf16.msra.mxu0 %v3342
    %3472 = vmatprep.subr.bf16.mxu0 %v3345
    %3473 = vmatpush1.bf16.msra.mxu0 %v3344
    %3474 = vmatprep.subr.bf16.mxu0 %v3347
    %3475 = vmatpush1.bf16.msra.mxu0 %v3346
    %3476 = vmatprep.subr.bf16.mxu0 %v3349
    %3477 = vmatpush1.bf16.msra.mxu0 %v3348
    %3478 = vmatprep.subr.bf16.mxu0 %v3351
    %3479 = vmatpush1.bf16.msra.mxu0 %v3350
    %3480 = vmatprep.subr.bf16.mxu0 %v3353
    %3481 = vmatpush1.bf16.msra.mxu0 %v3352
    %3482 = vmatprep.subr.bf16.mxu0 %v3355
    %3483 = vmatpush1.bf16.msra.mxu0 %v3354
    %3484 = vmatprep.subr.bf16.mxu0 %v3357
    %3485 = vmatpush1.bf16.msra.mxu0 %v3356
    %3486 = vmatprep.subr.bf16.mxu0 %v3359
    %3487 = vmatpush1.bf16.msra.mxu0 %v3358
    %3488 = vmatprep.subr.bf16.mxu0 %v3361
    %3489 = vmatpush1.bf16.msra.mxu0 %v3360
    %3490 = vmatprep.subr.bf16.mxu0 %v3363
    %3491 = vmatpush1.bf16.msra.mxu0 %v3362
    %3492 = vmatprep.subr.bf16.mxu0 %v3365
    %3493 = vmatpush1.bf16.msra.mxu0 %v3364
    %3494 = vmatprep.mubr.bf16.mxu0 %v3063
    %3495 = vmatmul.mubr.bf16.gmra.mrb[0].mxu0 %v3062
    %v3496 = vpop.f32.mrb[0].mxu0
    %v3497 = vadd.f32 %v3135, %v3496
    %v3498 = vpop.f32.mrb[0].mxu0
    %v3499 = vadd.f32 %v3139, %v3498
    %v3500 = vpop.f32.mrb[0].mxu0
    %v3501 = vadd.f32 %v3135, %v3500
    %v3502 = vpop.f32.mrb[0].mxu0
    %v3503 = vadd.f32 %v3139, %v3502
    %3504 = vdwg.mxu0
    %3505 = vmatprep.subr.bf16.mxu0 %v3367
    %3506 = vmatpush1.bf16.msra.mxu0 %v3366
    %3507 = vmatprep.subr.bf16.mxu0 %v3369
    %3508 = vmatpush1.bf16.msra.mxu0 %v3368
    %3509 = vmatprep.subr.bf16.mxu0 %v3371
    %3510 = vmatpush1.bf16.msra.mxu0 %v3370
    %3511 = vmatprep.subr.bf16.mxu0 %v3373
    %3512 = vmatpush1.bf16.msra.mxu0 %v3372
    %3513 = vmatprep.subr.bf16.mxu0 %v3375
    %3514 = vmatpush1.bf16.msra.mxu0 %v3374
    %3515 = vmatprep.subr.bf16.mxu0 %v3377
    %3516 = vmatpush1.bf16.msra.mxu0 %v3376
    %3517 = vmatprep.subr.bf16.mxu0 %v3379
    %3518 = vmatpush1.bf16.msra.mxu0 %v3378
    %3519 = vmatprep.subr.bf16.mxu0 %v3381
    %3520 = vmatpush1.bf16.msra.mxu0 %v3380
    %3521 = vmatprep.subr.bf16.mxu0 %v3383
    %3522 = vmatpush1.bf16.msra.mxu0 %v3382
    %3523 = vmatprep.subr.bf16.mxu0 %v3385
    %3524 = vmatpush1.bf16.msra.mxu0 %v3384
    %3525 = vmatprep.subr.bf16.mxu0 %v3387
    %3526 = vmatpush1.bf16.msra.mxu0 %v3386
    %3527 = vmatprep.subr.bf16.mxu0 %v3389
    %3528 = vmatpush1.bf16.msra.mxu0 %v3388
    %3529 = vmatprep.subr.bf16.mxu0 %v3391
    %3530 = vmatpush1.bf16.msra.mxu0 %v3390
    %3531 = vmatprep.subr.bf16.mxu0 %v3393
    %3532 = vmatpush1.bf16.msra.mxu0 %v3392
    %3533 = vmatprep.subr.bf16.mxu0 %v3395
    %3534 = vmatpush1.bf16.msra.mxu0 %v3394
    %3535 = vmatprep.subr.bf16.mxu0 %v3397
    %3536 = vmatpush1.bf16.msra.mxu0 %v3396
    %3537 = vmatprep.mubr.bf16.mxu0 %v3065
    %3538 = vmatmul.mubr.bf16.gmra.mrb[0].mxu0 %v3064
    %v3539 = vpop.f32.mrb[0].mxu0
    %v3540 = vadd.f32 %v3497, %v3539
    %v3541 = vpop.f32.mrb[0].mxu0
    %v3542 = vadd.f32 %v3499, %v3541
    %v3543 = vpop.f32.mrb[0].mxu0
    %v3544 = vadd.f32 %v3501, %v3543
    %v3545 = vpop.f32.mrb[0].mxu0
    %v3546 = vadd.f32 %v3503, %v3545
    %3547 = vdwg.mxu0
    %v3548 = vmax.f32 %v3540, 0.0
    %v3549 = vmax.f32 %v3542, 0.0
    %v3550 = vmax.f32 %v3544, 0.0
    %v3551 = vmax.f32 %v3546, 0.0
    %v3552 = vld [vmem:[%s7] sm:$0xff]
    %v3553 = vld [vmem:[%s7 + $0x8] sm:$0xff]
    %3554 = vxpose.xlu0.b32.start [1/16] %v3552, 128
    %3555 = vxpose.xlu0.b32.cont [2/16] %v3553, 128
    %3556 = vxpose.xlu0.b32.cont [3/16] 0.0, 128
    %3557 = vxpose.xlu0.b32.cont [4/16] 0.0, 128
    %3558 = vxpose.xlu0.b32.cont [5/16] 0.0, 128
    %3559 = vxpose.xlu0.b32.cont [6/16] 0.0, 128
    %3560 = vxpose.xlu0.b32.cont [7/16] 0.0, 128
    %3561 = vxpose.xlu0.b32.cont [8/16] 0.0, 128
    %3562 = vxpose.xlu0.b32.cont [9/16] 0.0, 128
    %3563 = vxpose.xlu0.b32.cont [10/16] 0.0, 128
    %3564 = vxpose.xlu0.b32.cont [11/16] 0.0, 128
    %3565 = vxpose.xlu0.b32.cont [12/16] 0.0, 128
    %3566 = vxpose.xlu0.b32.cont [13/16] 0.0, 128
    %3567 = vxpose.xlu0.b32.cont [14/16] 0.0, 128
    %3568 = vxpose.xlu0.b32.cont [15/16] 0.0, 128
    %3569 = vxpose.xlu0.b32.end [16/16] 0.0, 128
    %v3570 = vpop.trf.xlu0
    %v3571 = vpop.trf.xlu0
    %v3572 = vpop.trf.xlu0
    %v3573 = vpop.trf.xlu0
    %v3574 = vpop.trf.xlu0
    %v3575 = vpop.trf.xlu0
    %v3576 = vpop.trf.xlu0
    %v3577 = vpop.trf.xlu0
    %v3578 = vpop.trf.xlu0
    %v3579 = vpop.trf.xlu0
    %v3580 = vpop.trf.xlu0
    %v3581 = vpop.trf.xlu0
    %v3582 = vpop.trf.xlu0
    %v3583 = vpop.trf.xlu0
    %v3584 = vpop.trf.xlu0
    %v3585 = vpop.trf.xlu0
    %v3587 = vsel %vm2707, %v3570, 0
    %3589 = vmatprep.subr.mxu0 %v3549
    %3590 = vmatpush1.msra.mxu0 %v3548
    %3591 = vmatprep.subr.mxu0 %v3551
    %3592 = vmatpush1.msra.mxu0 %v3550
    %3593 = vmatprep.subr.mxu0 0.0
    %3594 = vmatpush1.msra.mxu0 0.0
    %3595 = vmatprep.subr.mxu0 0.0
    %3596 = vmatpush1.msra.mxu0 0.0
    %3597 = vmatprep.subr.mxu0 0.0
    %3598 = vmatpush1.msra.mxu0 0.0
    %3599 = vmatprep.subr.mxu0 0.0
    %3600 = vmatpush1.msra.mxu0 0.0
    %3601 = vmatprep.subr.mxu0 0.0
    %3602 = vmatpush1.msra.mxu0 0.0
    %3603 = vmatprep.subr.mxu0 0.0
    %3604 = vmatpush1.msra.mxu0 0.0
    %3605 = vmatprep.subr.mxu0 0.0
    %3606 = vmatpush1.msra.mxu0 0.0
    %3607 = vmatprep.subr.mxu0 0.0
    %3608 = vmatpush1.msra.mxu0 0.0
    %3609 = vmatprep.subr.mxu0 0.0
    %3610 = vmatpush1.msra.mxu0 0.0
    %3611 = vmatprep.subr.mxu0 0.0
    %3612 = vmatpush1.msra.mxu0 0.0
    %3613 = vmatprep.subr.mxu0 0.0
    %3614 = vmatpush1.msra.mxu0 0.0
    %3615 = vmatprep.subr.mxu0 0.0
    %3616 = vmatpush1.msra.mxu0 0.0
    %3617 = vmatprep.subr.mxu0 0.0
    %3618 = vmatpush1.msra.mxu0 0.0
    %3619 = vmatprep.subr.mxu0 0.0
    %3620 = vmatpush1.msra.mxu0 0.0
    %3621 = vmatprep.subr.mxu0 0.0
    %3622 = vmatpush1.msra.mxu0 0.0
    %3623 = vmatprep.subr.mxu0 0.0
    %3624 = vmatpush1.msra.mxu0 0.0
    %3625 = vmatprep.subr.mxu0 0.0
    %3626 = vmatpush1.msra.mxu0 0.0
    %3627 = vmatprep.subr.mxu0 0.0
    %3628 = vmatpush1.msra.mxu0 0.0
    %3629 = vmatprep.subr.mxu0 0.0
    %3630 = vmatpush1.msra.mxu0 0.0
    %3631 = vmatprep.subr.mxu0 0.0
    %3632 = vmatpush1.msra.mxu0 0.0
    %3633 = vmatprep.subr.mxu0 0.0
    %3634 = vmatpush1.msra.mxu0 0.0
    %3635 = vmatprep.subr.mxu0 0.0
    %3636 = vmatpush1.msra.mxu0 0.0
    %3637 = vmatprep.subr.mxu0 0.0
    %3638 = vmatpush1.msra.mxu0 0.0
    %3639 = vmatprep.subr.mxu0 0.0
    %3640 = vmatpush1.msra.mxu0 0.0
    %3641 = vmatprep.subr.mxu0 0.0
    %3642 = vmatpush1.msra.mxu0 0.0
    %3643 = vmatprep.subr.mxu0 0.0
    %3644 = vmatpush1.msra.mxu0 0.0
    %3645 = vmatprep.subr.mxu0 0.0
    %3646 = vmatpush1.msra.mxu0 0.0
    %3647 = vmatprep.subr.mxu0 0.0
    %3648 = vmatpush1.msra.mxu0 0.0
    %3649 = vmatprep.subr.mxu0 0.0
    %3650 = vmatpush1.msra.mxu0 0.0
    %3651 = vmatprep.subr.mxu0 0.0
    %3652 = vmatpush1.msra.mxu0 0.0
    %3653 = vmatprep.mubr.f32.mxu0 0.0
    %3654 = vmatmul.mubr.f32.gmra.mrb[0].mxu0 %v3587
    %v3655 = vpop.f32.mrb[0].mxu0
    %v3656 = vadd.f32 0.0, %v3655
    %v3657 = vpop.f32.mrb[0].mxu0
    %v3658 = vadd.f32 0.0, %v3657
    %3659 = vdwg.mxu0
    %v3660 = vld [vmem:[%s8] sm:$0x3]
    %3662 = vset.pattern.permute.xlu0 0
    %3663 = vperm.xlu0 %3662, %v3660
    %v3664 = vpop.permute.xlu0 %3663
    %v3666 = vmul.f32 %v3656, %v3664
    %v3667 = vmul.f32 %v3658, %v3664
    %vm3668 = vcmp.gt.f32.partialorder %v3552, 0.0
    %vm3669 = vcmp.gt.f32.partialorder %v3553, 0.0
    %v3670 = vsel %vm3668, 1, 0
    %v3671 = vsel %vm3669, 1, 0
    %3672 = vset.pattern.permute.xlu0 0
    %3673 = vperm.xlu0 %3672, %v3670
    %v3674 = vpop.permute.xlu0 %3673
    %3675 = vset.pattern.permute.xlu0 0
    %3676 = vperm.xlu0 %3675, %v3671
    %v3677 = vpop.permute.xlu0 %3676
    %vm3678 = vcmp.eq.s32.totalorder %v3674, 1
    %vm3679 = vcmp.eq.s32.totalorder %v3677, 1
    %v3680 = vsel %vm3678, %v3548, -1e+30
    %v3681 = vsel %vm3678, %v3549, -1e+30
    %v3682 = vsel %vm3679, %v3550, -1e+30
    %v3683 = vsel %vm3679, %v3551, -1e+30
    %v3684 = vmax.f32 %v3680, %v3682
    %v3685 = vrot.slane %v3684, 4
    %v3686 = vmax.f32 %v3684, %v3685
    %v3687 = vrot.slane %v3686, 2
    %v3688 = vmax.f32 %v3686, %v3687
    %v3689 = vrot.slane %v3688, 1
    %v3690 = vmax.f32 %v3688, %v3689
    %v3691 = vmax.f32 %v3681, %v3683
    %v3692 = vrot.slane %v3691, 4
    %v3693 = vmax.f32 %v3691, %v3692
    %v3694 = vrot.slane %v3693, 2
    %v3695 = vmax.f32 %v3693, %v3694
    %v3696 = vrot.slane %v3695, 1
    %v3697 = vmax.f32 %v3695, %v3696
    %3698 = vset.pattern.permute.xlu0 1
    %3699 = vperm.xlu0 %3698, %v3670
    %v3700 = vpop.permute.xlu0 %3699
    %3701 = vset.pattern.permute.xlu0 1
    %3702 = vperm.xlu0 %3701, %v3671
    %v3703 = vpop.permute.xlu0 %3702
    %vm3704 = vcmp.eq.s32.totalorder %v3700, 1
    %vm3705 = vcmp.eq.s32.totalorder %v3703, 1
    %v3706 = vsel %vm3704, %v3548, -1e+30
    %v3707 = vsel %vm3704, %v3549, -1e+30
    %v3708 = vsel %vm3705, %v3550, -1e+30
    %v3709 = vsel %vm3705, %v3551, -1e+30
    %v3710 = vmax.f32 %v3706, %v3708
    %v3711 = vrot.slane %v3710, 4
    %v3712 = vmax.f32 %v3710, %v3711
    %v3713 = vrot.slane %v3712, 2
    %v3714 = vmax.f32 %v3712, %v3713
    %v3715 = vrot.slane %v3714, 1
    %v3716 = vmax.f32 %v3714, %v3715
    %v3717 = vmax.f32 %v3707, %v3709
    %v3718 = vrot.slane %v3717, 4
    %v3719 = vmax.f32 %v3717, %v3718
    %v3720 = vrot.slane %v3719, 2
    %v3721 = vmax.f32 %v3719, %v3720
    %v3722 = vrot.slane %v3721, 1
    %v3723 = vmax.f32 %v3721, %v3722
    %vm3724 = vcmask 1040384
    %v3725 = vsel %vm3724, %v3690, %v3716
    %v3726 = vsel %vm3724, %v3697, %v3723
    %v3727 = vld [vmem:[%s9] sm:$0xff]
    %v3728 = vld [vmem:[%s9 + $0x8] sm:$0xff]
    %v3729 = vld [vmem:[%s9 + $0x10] sm:$0xff]
    %v3730 = vld [vmem:[%s9 + $0x18] sm:$0xff]
    %v3731 = vld [vmem:[%s9 + $0x20] sm:$0xff]
    %v3732 = vld [vmem:[%s9 + $0x28] sm:$0xff]
    %v3733 = vld [vmem:[%s9 + $0x30] sm:$0xff]
    %v3734 = vld [vmem:[%s9 + $0x38] sm:$0xff]
    %v3735 = vld [vmem:[%s9 + $0x40] sm:$0xff]
    %v3736 = vld [vmem:[%s9 + $0x48] sm:$0xff]
    %v3737 = vld [vmem:[%s9 + $0x50] sm:$0xff]
    %v3738 = vld [vmem:[%s9 + $0x58] sm:$0xff]
    %v3739 = vld [vmem:[%s9 + $0x60] sm:$0xff]
    %v3740 = vld [vmem:[%s9 + $0x68] sm:$0xff]
    %v3741 = vld [vmem:[%s9 + $0x70] sm:$0xff]
    %v3742 = vld [vmem:[%s9 + $0x78] sm:$0xff]
    %v3743 = vld [vmem:[%s9 + $0x80] sm:$0xff]
    %v3744 = vld [vmem:[%s9 + $0x88] sm:$0xff]
    %v3745 = vld [vmem:[%s9 + $0x90] sm:$0xff]
    %v3746 = vld [vmem:[%s9 + $0x98] sm:$0xff]
    %v3747 = vld [vmem:[%s9 + $0xa0] sm:$0xff]
    %v3748 = vld [vmem:[%s9 + $0xa8] sm:$0xff]
    %v3749 = vld [vmem:[%s9 + $0xb0] sm:$0xff]
    %v3750 = vld [vmem:[%s9 + $0xb8] sm:$0xff]
    %v3751 = vld [vmem:[%s9 + $0xc0] sm:$0xff]
    %v3752 = vld [vmem:[%s9 + $0xc8] sm:$0xff]
    %v3753 = vld [vmem:[%s9 + $0xd0] sm:$0xff]
    %v3754 = vld [vmem:[%s9 + $0xd8] sm:$0xff]
    %v3755 = vld [vmem:[%s9 + $0xe0] sm:$0xff]
    %v3756 = vld [vmem:[%s9 + $0xe8] sm:$0xff]
    %v3757 = vld [vmem:[%s9 + $0xf0] sm:$0xff]
    %v3758 = vld [vmem:[%s9 + $0xf8] sm:$0xff]
    %v3759 = vld [vmem:[%s10] sm:$0xff]
    %v3760 = vld [vmem:[%s10 + $0x8] sm:$0xff]
    %v3761 = vld [vmem:[%s10 + $0x10] sm:$0xff]
    %v3762 = vld [vmem:[%s10 + $0x18] sm:$0xff]
    %v3763 = vld [vmem:[%s10 + $0x20] sm:$0xff]
    %v3764 = vld [vmem:[%s10 + $0x28] sm:$0xff]
    %v3765 = vld [vmem:[%s10 + $0x30] sm:$0xff]
    %v3766 = vld [vmem:[%s10 + $0x38] sm:$0xff]
    %v3767 = vld [vmem:[%s10 + $0x40] sm:$0xff]
    %v3768 = vld [vmem:[%s10 + $0x48] sm:$0xff]
    %v3769 = vld [vmem:[%s10 + $0x50] sm:$0xff]
    %v3770 = vld [vmem:[%s10 + $0x58] sm:$0xff]
    %v3771 = vld [vmem:[%s10 + $0x60] sm:$0xff]
    %v3772 = vld [vmem:[%s10 + $0x68] sm:$0xff]
    %v3773 = vld [vmem:[%s10 + $0x70] sm:$0xff]
    %v3774 = vld [vmem:[%s10 + $0x78] sm:$0xff]
    %v3775 = vld [vmem:[%s10 + $0x80] sm:$0xff]
    %v3776 = vld [vmem:[%s10 + $0x88] sm:$0xff]
    %v3777 = vld [vmem:[%s10 + $0x90] sm:$0xff]
    %v3778 = vld [vmem:[%s10 + $0x98] sm:$0xff]
    %v3779 = vld [vmem:[%s10 + $0xa0] sm:$0xff]
    %v3780 = vld [vmem:[%s10 + $0xa8] sm:$0xff]
    %v3781 = vld [vmem:[%s10 + $0xb0] sm:$0xff]
    %v3782 = vld [vmem:[%s10 + $0xb8] sm:$0xff]
    %v3783 = vld [vmem:[%s10 + $0xc0] sm:$0xff]
    %v3784 = vld [vmem:[%s10 + $0xc8] sm:$0xff]
    %v3785 = vld [vmem:[%s10 + $0xd0] sm:$0xff]
    %v3786 = vld [vmem:[%s10 + $0xd8] sm:$0xff]
    %v3787 = vld [vmem:[%s10 + $0xe0] sm:$0xff]
    %v3788 = vld [vmem:[%s10 + $0xe8] sm:$0xff]
    %v3789 = vld [vmem:[%s10 + $0xf0] sm:$0xff]
    %v3790 = vld [vmem:[%s10 + $0xf8] sm:$0xff]
    %3791 = vmatprep.subr.mxu0 0.0
    %3792 = vmatpush1.msra.mxu0 %v3759
    %3793 = vmatprep.subr.mxu0 0.0
    %3794 = vmatpush1.msra.mxu0 %v3760
    %3795 = vmatprep.subr.mxu0 0.0
    %3796 = vmatpush1.msra.mxu0 %v3761
    %3797 = vmatprep.subr.mxu0 0.0
    %3798 = vmatpush1.msra.mxu0 %v3762
    %3799 = vmatprep.subr.mxu0 0.0
    %3800 = vmatpush1.msra.mxu0 %v3763
    %3801 = vmatprep.subr.mxu0 0.0
    %3802 = vmatpush1.msra.mxu0 %v3764
    %3803 = vmatprep.subr.mxu0 0.0
    %3804 = vmatpush1.msra.mxu0 %v3765
    %3805 = vmatprep.subr.mxu0 0.0
    %3806 = vmatpush1.msra.mxu0 %v3766
    %3807 = vmatprep.subr.mxu0 0.0
    %3808 = vmatpush1.msra.mxu0 %v3767
    %3809 = vmatprep.subr.mxu0 0.0
    %3810 = vmatpush1.msra.mxu0 %v3768
    %3811 = vmatprep.subr.mxu0 0.0
    %3812 = vmatpush1.msra.mxu0 %v3769
    %3813 = vmatprep.subr.mxu0 0.0
    %3814 = vmatpush1.msra.mxu0 %v3770
    %3815 = vmatprep.subr.mxu0 0.0
    %3816 = vmatpush1.msra.mxu0 %v3771
    %3817 = vmatprep.subr.mxu0 0.0
    %3818 = vmatpush1.msra.mxu0 %v3772
    %3819 = vmatprep.subr.mxu0 0.0
    %3820 = vmatpush1.msra.mxu0 %v3773
    %3821 = vmatprep.subr.mxu0 0.0
    %3822 = vmatpush1.msra.mxu0 %v3774
    %3823 = vmatprep.subr.mxu0 0.0
    %3824 = vmatpush1.msra.mxu0 %v3775
    %3825 = vmatprep.subr.mxu0 0.0
    %3826 = vmatpush1.msra.mxu0 %v3776
    %3827 = vmatprep.subr.mxu0 0.0
    %3828 = vmatpush1.msra.mxu0 %v3777
    %3829 = vmatprep.subr.mxu0 0.0
    %3830 = vmatpush1.msra.mxu0 %v3778
    %3831 = vmatprep.subr.mxu0 0.0
    %3832 = vmatpush1.msra.mxu0 %v3779
    %3833 = vmatprep.subr.mxu0 0.0
    %3834 = vmatpush1.msra.mxu0 %v3780
    %3835 = vmatprep.subr.mxu0 0.0
    %3836 = vmatpush1.msra.mxu0 %v3781
    %3837 = vmatprep.subr.mxu0 0.0
    %3838 = vmatpush1.msra.mxu0 %v3782
    %3839 = vmatprep.subr.mxu0 0.0
    %3840 = vmatpush1.msra.mxu0 %v3783
    %3841 = vmatprep.subr.mxu0 0.0
    %3842 = vmatpush1.msra.mxu0 %v3784
    %3843 = vmatprep.subr.mxu0 0.0
    %3844 = vmatpush1.msra.mxu0 %v3785
    %3845 = vmatprep.subr.mxu0 0.0
    %3846 = vmatpush1.msra.mxu0 %v3786
    %3847 = vmatprep.subr.mxu0 0.0
    %3848 = vmatpush1.msra.mxu0 %v3787
    %3849 = vmatprep.subr.mxu0 0.0
    %3850 = vmatpush1.msra.mxu0 %v3788
    %3851 = vmatprep.subr.mxu0 0.0
    %3852 = vmatpush1.msra.mxu0 %v3789
    %3853 = vmatprep.subr.mxu0 0.0
    %3854 = vmatpush1.msra.mxu0 %v3790
    %3855 = vmatprep.mubr.f32.mxu0 %v3667
    %3856 = vmatmul.mubr.f32.gmra.mrb[0].mxu0 %v3666
    %v3857 = vpop.f32.mrb[0].mxu0
    %v3858 = vadd.f32 0.0, %v3857
    %v3859 = vpop.f32.mrb[0].mxu0
    %3860 = vdwg.mxu0
    %3861 = vmatprep.subr.mxu0 0.0
    %3862 = vmatpush1.msra.mxu0 %v3727
    %3863 = vmatprep.subr.mxu0 0.0
    %3864 = vmatpush1.msra.mxu0 %v3728
    %3865 = vmatprep.subr.mxu0 0.0
    %3866 = vmatpush1.msra.mxu0 %v3729
    %3867 = vmatprep.subr.mxu0 0.0
    %3868 = vmatpush1.msra.mxu0 %v3730
    %3869 = vmatprep.subr.mxu0 0.0
    %3870 = vmatpush1.msra.mxu0 %v3731
    %3871 = vmatprep.subr.mxu0 0.0
    %3872 = vmatpush1.msra.mxu0 %v3732
    %3873 = vmatprep.subr.mxu0 0.0
    %3874 = vmatpush1.msra.mxu0 %v3733
    %3875 = vmatprep.subr.mxu0 0.0
    %3876 = vmatpush1.msra.mxu0 %v3734
    %3877 = vmatprep.subr.mxu0 0.0
    %3878 = vmatpush1.msra.mxu0 %v3735
    %3879 = vmatprep.subr.mxu0 0.0
    %3880 = vmatpush1.msra.mxu0 %v3736
    %3881 = vmatprep.subr.mxu0 0.0
    %3882 = vmatpush1.msra.mxu0 %v3737
    %3883 = vmatprep.subr.mxu0 0.0
    %3884 = vmatpush1.msra.mxu0 %v3738
    %3885 = vmatprep.subr.mxu0 0.0
    %3886 = vmatpush1.msra.mxu0 %v3739
    %3887 = vmatprep.subr.mxu0 0.0
    %3888 = vmatpush1.msra.mxu0 %v3740
    %3889 = vmatprep.subr.mxu0 0.0
    %3890 = vmatpush1.msra.mxu0 %v3741
    %3891 = vmatprep.subr.mxu0 0.0
    %3892 = vmatpush1.msra.mxu0 %v3742
    %3893 = vmatprep.subr.mxu0 0.0
    %3894 = vmatpush1.msra.mxu0 %v3743
    %3895 = vmatprep.subr.mxu0 0.0
    %3896 = vmatpush1.msra.mxu0 %v3744
    %3897 = vmatprep.subr.mxu0 0.0
    %3898 = vmatpush1.msra.mxu0 %v3745
    %3899 = vmatprep.subr.mxu0 0.0
    %3900 = vmatpush1.msra.mxu0 %v3746
    %3901 = vmatprep.subr.mxu0 0.0
    %3902 = vmatpush1.msra.mxu0 %v3747
    %3903 = vmatprep.subr.mxu0 0.0
    %3904 = vmatpush1.msra.mxu0 %v3748
    %3905 = vmatprep.subr.mxu0 0.0
    %3906 = vmatpush1.msra.mxu0 %v3749
    %3907 = vmatprep.subr.mxu0 0.0
    %3908 = vmatpush1.msra.mxu0 %v3750
    %3909 = vmatprep.subr.mxu0 0.0
    %3910 = vmatpush1.msra.mxu0 %v3751
    %3911 = vmatprep.subr.mxu0 0.0
    %3912 = vmatpush1.msra.mxu0 %v3752
    %3913 = vmatprep.subr.mxu0 0.0
    %3914 = vmatpush1.msra.mxu0 %v3753
    %3915 = vmatprep.subr.mxu0 0.0
    %3916 = vmatpush1.msra.mxu0 %v3754
    %3917 = vmatprep.subr.mxu0 0.0
    %3918 = vmatpush1.msra.mxu0 %v3755
    %3919 = vmatprep.subr.mxu0 0.0
    %3920 = vmatpush1.msra.mxu0 %v3756
    %3921 = vmatprep.subr.mxu0 0.0
    %3922 = vmatpush1.msra.mxu0 %v3757
    %3923 = vmatprep.subr.mxu0 0.0
    %3924 = vmatpush1.msra.mxu0 %v3758
    %3925 = vmatprep.mubr.f32.mxu0 %v3726
    %3926 = vmatmul.mubr.f32.gmra.mrb[0].mxu0 %v3725
    %v3927 = vpop.f32.mrb[0].mxu0
    %v3928 = vadd.f32 %v3858, %v3927
    %v3929 = vpop.f32.mrb[0].mxu0
    %3930 = vdwg.mxu0
    %v3931 = vld [vmem:[#allocation15] sm:$0x1]
    %v3933 = vlaneseq
    %v3934 = vshrl.u32 %v3933, 7
    %v3935 = vsub.s32 0, %v3934
    %v3936 = vrot.slane %v3931, %v3935
    %v3938 = vadd.f32 %v3928, %v3936
    %vm3939 = vcmask 41984
    %3940 = vst.msk [vmem:[#allocation16] sm:$0x3] %vm3939, %v3938
    // Predicated region
    $region82: #{tpu_custom_call.1} parent=1 // pred_check
      _
    $region83: #{tpu_custom_call.1} parent=1 // pred_check_branch
      %3942 = sbr.rel (0) target = $region85
    $region84: #{tpu_custom_call.1} parent=1 // pred_region
      %s3944 = ssub.s32 32, 32
      %3945 = vsyncadd [#allocation4], %s3944
      %s3947 = sshll.u32 [#allocation16], 4
      %s3948 = int_to_ptr.vmem [resolvable:$true] %s3947
      %3950 = dma.vmem_to_hbm [thread:$0]  %s3948, 32, %s12, [#allocation4]
    $region85: #{tpu_custom_call.1} parent=1 // pred_fallthru
      _
    // Predicated region
    $region86: #{tpu_custom_call.1} parent=1 // pred_check
      _
    $region87: #{tpu_custom_call.1} parent=1 // pred_check_branch
      %3952 = sbr.rel (0) target = $region89
    $region88: #{tpu_custom_call.1} parent=1 // pred_region
      %3953 = dma.done [#allocation4], 32
    $region89: #{tpu_custom_call.1} parent=1 // pred_fallthru
      _
    %3954 = vsyncpa [#allocation3], 1
    %3955 = vsyncpa [#allocation8], 1
    %3956 = vsyncpa [#allocation11], 1
    %3957 = vsyncpa [#allocation14], 1
    %3958 = vsyncpa [#allocation4], 1
    %3959 = vsyncpa [#allocation5], 1

</llo_original>
